<compile_context>
chip_gen: v7x
topology: tpu7x:2x2x1
jax: 0.10.0
libtpu: 0.0.40
codegen_flags: <defaults>
</compile_context>

<pallas_src>
import jax
import jax.numpy as jnp
from jax import lax
from jax.experimental import pallas as pl
from jax.experimental.pallas import tpu as pltpu  # noqa: F401  (kept for TPU-specific tuning hooks)

# ---------------- synthetic config (small, TPU-friendly) ----------------
B, S = 2, 8                # batch, seq
H = 128                    # bert_dim
NUM_LAYERS = 2
NUM_HEADS = 2
HEAD_DIM = H // NUM_HEADS
INTER = 256                # FFN intermediate
VOCAB = 130                # must cover CLS=101 / SEP=102
MAX_POS = 16
TYPE_VOCAB = 2
NUM_INTENT = 8             # config.num_intent
NUM_SLOT = 16              # config.num_slot
LN_EPS = 1e-12
CLS_ID, SEP_ID = 101, 102
LANE = 128                 # pad narrow head outputs to full lane width


# ---------------- in-kernel helpers ----------------
def _ln(x, g, b):
    mu = jnp.mean(x, axis=-1, keepdims=True)
    var = jnp.mean(jnp.square(x - mu), axis=-1, keepdims=True)
    return (x - mu) * lax.rsqrt(var + LN_EPS) * g + b


def _ce_mean(logits_pad, onehot_pad, num_valid):
    # mean over rows of (logsumexp - target_logit); padded lanes masked out.
    col = lax.broadcasted_iota(jnp.int32, logits_pad.shape, 1)
    masked = jnp.where(col < num_valid, logits_pad, -1e30)
    m = jnp.max(masked, axis=-1, keepdims=True)
    lse = m + jnp.log(jnp.sum(jnp.exp(masked - m), axis=-1, keepdims=True))
    tgt = jnp.sum(onehot_pad * logits_pad, axis=-1, keepdims=True)
    return jnp.mean(lse - tgt)


# ---------------- the single fused kernel ----------------
def fused_kernel(emb_ref, bias_ref, pm_ref, emb_g_ref, emb_b_ref,
                 wqkv_ref, bqkv_ref, wo_ref, bo_ref, ln1_g_ref, ln1_b_ref,
                 wi_ref, bi_ref, wo2_ref, bo2_ref, ln2_g_ref, ln2_b_ref,
                 pool_w_ref, pool_b_ref, int_w_ref, int_b_ref,
                 slot_w_ref, slot_b_ref, oh_i_ref, oh_s_ref,
                 intent_ref, slot_ref, losses_ref):
    bias = bias_ref[...]                                  # (B, S) additive attention-mask bias
    scale = 1.0 / (HEAD_DIM ** 0.5)

    # ---- embeddings LayerNorm ----
    x2d = _ln(emb_ref[...].reshape(B * S, H), emb_g_ref[...], emb_b_ref[...])

    # ---- encoder layers (small static layer count -> unrolled) ----
    for l in range(NUM_LAYERS):
        # full-width fused QKV projection: (B*S,H) x (H,3H)
        qkv = jnp.dot(x2d, wqkv_ref[l], preferred_element_type=jnp.float32) + bqkv_ref[l]
        q = qkv[:, 0:H].reshape(B, S, H)
        k = qkv[:, H:2 * H].reshape(B, S, H)
        v = qkv[:, 2 * H:3 * H].reshape(B, S, H)

        ctx_heads = []
        for h in range(NUM_HEADS):                        # head split on activations only
            sl = slice(h * HEAD_DIM, (h + 1) * HEAD_DIM)
            qh, kh, vh = q[..., sl], k[..., sl], v[..., sl]
            scores = jnp.einsum('bqd,bkd->bqk', qh, kh,
                                preferred_element_type=jnp.float32) * scale
            scores = scores + bias[:, None, :]
            m = jnp.max(scores, axis=-1, keepdims=True)
            p = jnp.exp(scores - m)
            p = p * pl.reciprocal(jnp.sum(p, axis=-1, keepdims=True), approx=True)
            ctx_heads.append(jnp.einsum('bqk,bkd->bqd', p, vh,
                                        preferred_element_type=jnp.float32))
        ctx2d = jnp.concatenate(ctx_heads, axis=-1).reshape(B * S, H)

        # single full-width output projection on concatenated context
        attn = jnp.dot(ctx2d, wo_ref[l], preferred_element_type=jnp.float32) + bo_ref[l]
        x1 = _ln(attn + x2d, ln1_g_ref[l], ln1_b_ref[l])

        # FFN (2-D matmuls on (B*S, .))
        hff = jnp.dot(x1, wi_ref[l], preferred_element_type=jnp.float32) + bi_ref[l]
        hff = jax.nn.gelu(hff, approximate=True)
        ff = jnp.dot(hff, wo2_ref[l], preferred_element_type=jnp.float32) + bo2_ref[l]
        x2d = _ln(ff + x1, ln2_g_ref[l], ln2_b_ref[l])

    # ---- pooler + intent head (padded to 128 lanes) ----
    cls = x2d.reshape(B, S, H)[:, 0, :]                   # [CLS] token
    pooled = jnp.tanh(jnp.dot(cls, pool_w_ref[...],
                              preferred_element_type=jnp.float32) + pool_b_ref[...])
    intent_pad = jnp.dot(pooled, int_w_ref[...],
                         preferred_element_type=jnp.float32) + int_b_ref[...]
    intent_ref[...] = intent_pad

    # ---- slot head (padded to 128 lanes) ----
    slot_pad = jnp.dot(x2d, slot_w_ref[...],
                       preferred_element_type=jnp.float32) + slot_b_ref[...]
    slot_masked = slot_pad * pm_ref[...]                  # (x_mask - predict_masked) scaling
    slot_ref[...] = slot_masked

    # ---- CE losses fused in-kernel ----
    loss_i = _ce_mean(intent_pad, oh_i_ref[...], NUM_INTENT)
    loss_s = _ce_mean(slot_masked, oh_s_ref[...], NUM_SLOT)
    row = lax.broadcasted_iota(jnp.int32, (8, LANE), 0)
    losses_ref[...] = (jnp.where(row == 0, loss_i, 0.0)
                       + jnp.where(row == 1, loss_s, 0.0))


# ---------------- parameters (deterministic synthetic init, pre-stacked per layer) ----------------
def init_params(key):
    def nrm(k, shape):
        return jax.random.normal(k, shape, jnp.float32) * 0.02
    keys = iter(jax.random.split(key, 16))
    ones_l = jnp.ones((NUM_LAYERS, 1, H), jnp.float32)
    zeros_l = jnp.zeros((NUM_LAYERS, 1, H), jnp.float32)
    return {
        'word_emb': nrm(next(keys), (VOCAB, H)),
        'pos_emb': nrm(next(keys), (MAX_POS, H)),
        'type_emb': nrm(next(keys), (TYPE_VOCAB, H)),
        'emb_ln_g': jnp.ones((1, H), jnp.float32),
        'emb_ln_b': jnp.zeros((1, H), jnp.float32),
        'wqkv': nrm(next(keys), (NUM_LAYERS, H, 3 * H)),
        'bqkv': jnp.zeros((NUM_LAYERS, 1, 3 * H), jnp.float32),
        'wo': nrm(next(keys), (NUM_LAYERS, H, H)),
        'bo': zeros_l,
        'ln1_g': ones_l, 'ln1_b': zeros_l,
        'wi': nrm(next(keys), (NUM_LAYERS, H, INTER)),
        'bi': jnp.zeros((NUM_LAYERS, 1, INTER), jnp.float32),
        'wo2': nrm(next(keys), (NUM_LAYERS, INTER, H)),
        'bo2': zeros_l,
        'ln2_g': ones_l, 'ln2_b': zeros_l,
        'pool_w': nrm(next(keys), (H, H)),
        'pool_b': jnp.zeros((1, H), jnp.float32),
        'int_w': nrm(next(keys), (H, NUM_INTENT)),
        'int_b': jnp.zeros((1, NUM_INTENT), jnp.float32),
        'slot_w': nrm(next(keys), (H, NUM_SLOT)),
        'slot_b': jnp.zeros((1, NUM_SLOT), jnp.float32),
    }


# ---------------- Classifier.forward ----------------
def classifier_forward(params, x_ids, x_mask, x_type_ids, label_intent=None, label_slot=None):
    # Embedding gathers / padding are XLA glue; everything else runs in ONE fused Pallas kernel.
    pos = jnp.arange(S)
    emb = (jnp.take(params['word_emb'], x_ids, axis=0)
           + params['pos_emb'][pos][None, :, :]
           + jnp.take(params['type_emb'], x_type_ids, axis=0)).astype(jnp.float32)

    mask_f = x_mask.astype(jnp.float32)
    bias = (1.0 - mask_f) * -10000.0                       # get_extended_attention_mask
    special = jnp.logical_or(x_ids == CLS_ID, x_ids == SEP_ID).astype(jnp.float32)
    pm = (mask_f - special).reshape(B * S, 1)              # (x_mask - predict_masked)

    # pad narrow head weights / one-hot targets to the 128-lane width used in-kernel
    int_w = jnp.pad(params['int_w'], ((0, 0), (0, LANE - NUM_INTENT)))
    int_b = jnp.pad(params['int_b'], ((0, 0), (0, LANE - NUM_INTENT)))
    slot_w = jnp.pad(params['slot_w'], ((0, 0), (0, LANE - NUM_SLOT)))
    slot_b = jnp.pad(params['slot_b'], ((0, 0), (0, LANE - NUM_SLOT)))

    oh_i = (jax.nn.one_hot(label_intent, NUM_INTENT, dtype=jnp.float32)
            if label_intent is not None else jnp.zeros((B, NUM_INTENT), jnp.float32))
    oh_s = (jax.nn.one_hot(label_slot, NUM_SLOT, dtype=jnp.float32)
            if label_slot is not None else jnp.zeros((B * S, NUM_SLOT), jnp.float32))
    oh_i = jnp.pad(oh_i, ((0, 0), (0, LANE - NUM_INTENT)))
    oh_s = jnp.pad(oh_s, ((0, 0), (0, LANE - NUM_SLOT)))

    inputs = [emb, bias, pm, params['emb_ln_g'], params['emb_ln_b'],
              params['wqkv'], params['bqkv'], params['wo'], params['bo'],
              params['ln1_g'], params['ln1_b'], params['wi'], params['bi'],
              params['wo2'], params['bo2'], params['ln2_g'], params['ln2_b'],
              params['pool_w'], params['pool_b'], int_w, int_b, slot_w, slot_b,
              oh_i, oh_s]
    out_shapes = (jax.ShapeDtypeStruct((B, LANE), jnp.float32),       # intent logits (padded)
                  jax.ShapeDtypeStruct((B * S, LANE), jnp.float32),   # slot logits (padded)
                  jax.ShapeDtypeStruct((8, LANE), jnp.float32))       # losses: row0=intent, row1=slot

    intent_pad, slot_pad, losses = pl.pallas_call(fused_kernel, out_shape=out_shapes)(*inputs)

    score_intent = intent_pad[:, :NUM_INTENT]
    score_slot = slot_pad[:, :NUM_SLOT]                    # already (B*S, num_slot)

    loss = None
    if label_intent is not None:
        loss = losses[0, 0]
    if label_slot is not None:
        loss = losses[1, 0] if loss is None else loss + losses[1, 0]
    return loss, score_intent, score_slot


if __name__ == "__main__":
    key = jax.random.PRNGKey(0)
    kp, kid, kint, kslot = jax.random.split(key, 4)
    params = init_params(kp)

    x_ids = jax.random.randint(kid, (B, S), 0, 100, dtype=jnp.int32)
    x_ids = x_ids.at[:, 0].set(CLS_ID)
    x_ids = x_ids.at[0, S - 1].set(SEP_ID)
    x_ids = x_ids.at[1, 5].set(SEP_ID)
    x_mask = jnp.ones((B, S), jnp.int32).at[1, S - 2:].set(0)
    x_type_ids = jnp.zeros((B, S), jnp.int32)
    label_intent = jax.random.randint(kint, (B,), 0, NUM_INTENT, dtype=jnp.int32)
    label_slot = jax.random.randint(kslot, (B * S,), 0, NUM_SLOT, dtype=jnp.int32)

    fwd = jax.jit(classifier_forward)
    loss, score_intent, score_slot = fwd(
        params, x_ids, x_mask, x_type_ids, label_intent, label_slot)
    jax.block_until_ready((loss, score_intent, score_slot))

    assert score_intent.shape == (B, NUM_INTENT)
    assert score_slot.shape == (B * S, NUM_SLOT)
    assert bool(jnp.isfinite(loss))
    print("KERNEL_OK")
</pallas_src>

<mosaic_0001>
module attributes {stable_mosaic.version = 11 : i64} {
  func.func @fused_kernel(%arg0: memref<2x8x128xf32, #tpu.memory_space<vmem>>, %arg1: memref<2x8xf32, #tpu.memory_space<vmem>>, %arg2: memref<16x1xf32, #tpu.memory_space<vmem>>, %arg3: memref<1x128xf32, #tpu.memory_space<vmem>>, %arg4: memref<1x128xf32, #tpu.memory_space<vmem>>, %arg5: memref<2x128x384xf32, #tpu.memory_space<vmem>>, %arg6: memref<2x1x384xf32, #tpu.memory_space<vmem>>, %arg7: memref<2x128x128xf32, #tpu.memory_space<vmem>>, %arg8: memref<2x1x128xf32, #tpu.memory_space<vmem>>, %arg9: memref<2x1x128xf32, #tpu.memory_space<vmem>>, %arg10: memref<2x1x128xf32, #tpu.memory_space<vmem>>, %arg11: memref<2x128x256xf32, #tpu.memory_space<vmem>>, %arg12: memref<2x1x256xf32, #tpu.memory_space<vmem>>, %arg13: memref<2x256x128xf32, #tpu.memory_space<vmem>>, %arg14: memref<2x1x128xf32, #tpu.memory_space<vmem>>, %arg15: memref<2x1x128xf32, #tpu.memory_space<vmem>>, %arg16: memref<2x1x128xf32, #tpu.memory_space<vmem>>, %arg17: memref<128x128xf32, #tpu.memory_space<vmem>>, %arg18: memref<1x128xf32, #tpu.memory_space<vmem>>, %arg19: memref<128x128xf32, #tpu.memory_space<vmem>>, %arg20: memref<1x128xf32, #tpu.memory_space<vmem>>, %arg21: memref<128x128xf32, #tpu.memory_space<vmem>>, %arg22: memref<1x128xf32, #tpu.memory_space<vmem>>, %arg23: memref<2x128xf32, #tpu.memory_space<vmem>>, %arg24: memref<16x128xf32, #tpu.memory_space<vmem>>, %arg25: memref<2x128xf32, #tpu.memory_space<vmem>>, %arg26: memref<16x128xf32, #tpu.memory_space<vmem>>, %arg27: memref<8x128xf32, #tpu.memory_space<vmem>>) attributes {dimension_semantics = [], scalar_prefetch = 0 : i64, scratch_operands = 0 : i64, tpu.core_type = #tpu.core_type<tc>} {
    %c0 = arith.constant 0 : index
    %c0_0 = arith.constant 0 : index
    %0 = vector.load %arg1[%c0, %c0_0] : memref<2x8xf32, #tpu.memory_space<vmem>>, vector<2x8xf32>
    %c0_1 = arith.constant 0 : index
    %c0_2 = arith.constant 0 : index
    %c0_3 = arith.constant 0 : index
    %1 = vector.load %arg0[%c0_1, %c0_2, %c0_3] : memref<2x8x128xf32, #tpu.memory_space<vmem>>, vector<2x8x128xf32>
    %2 = vector.shape_cast %1 : vector<2x8x128xf32> to vector<16x128xf32>
    %c0_4 = arith.constant 0 : index
    %c0_5 = arith.constant 0 : index
    %3 = vector.load %arg3[%c0_4, %c0_5] : memref<1x128xf32, #tpu.memory_space<vmem>>, vector<1x128xf32>
    %c0_6 = arith.constant 0 : index
    %c0_7 = arith.constant 0 : index
    %4 = vector.load %arg4[%c0_6, %c0_7] : memref<1x128xf32, #tpu.memory_space<vmem>>, vector<1x128xf32>
    %cst = arith.constant dense<0.000000e+00> : vector<16xf32>
    %5 = vector.multi_reduction <add>, %2, %cst [1] : vector<16x128xf32> to vector<16xf32>
    %6 = vector.shape_cast %5 : vector<16xf32> to vector<16x1xf32>
    %cst_8 = arith.constant 1.280000e+02 : f32
    %7 = vector.broadcast %cst_8 : f32 to vector<16x1xf32>
    %8 = arith.divf %6, %7 : vector<16x1xf32>
    %9 = vector.broadcast %8 : vector<16x1xf32> to vector<16x128xf32>
    %10 = arith.subf %2, %9 : vector<16x128xf32>
    %11 = arith.mulf %10, %10 : vector<16x128xf32>
    %cst_9 = arith.constant dense<0.000000e+00> : vector<16xf32>
    %12 = vector.multi_reduction <add>, %11, %cst_9 [1] : vector<16x128xf32> to vector<16xf32>
    %13 = vector.shape_cast %12 : vector<16xf32> to vector<16x1xf32>
    %cst_10 = arith.constant 1.280000e+02 : f32
    %14 = vector.broadcast %cst_10 : f32 to vector<16x1xf32>
    %15 = arith.divf %13, %14 : vector<16x1xf32>
    %16 = vector.broadcast %8 : vector<16x1xf32> to vector<16x128xf32>
    %17 = arith.subf %2, %16 : vector<16x128xf32>
    %cst_11 = arith.constant 9.99999996E-13 : f32
    %18 = vector.broadcast %cst_11 : f32 to vector<16x1xf32>
    %19 = arith.addf %15, %18 : vector<16x1xf32>
    %20 = math.rsqrt %19 : vector<16x1xf32>
    %21 = vector.broadcast %20 : vector<16x1xf32> to vector<16x128xf32>
    %22 = arith.mulf %17, %21 : vector<16x128xf32>
    %23 = vector.broadcast %3 : vector<1x128xf32> to vector<16x128xf32>
    %24 = arith.mulf %22, %23 : vector<16x128xf32>
    %25 = vector.broadcast %4 : vector<1x128xf32> to vector<16x128xf32>
    %26 = arith.addf %24, %25 : vector<16x128xf32>
    %c0_12 = arith.constant 0 : index
    %c0_13 = arith.constant 0 : index
    %c0_14 = arith.constant 0 : index
    %27 = vector.load %arg5[%c0_12, %c0_13, %c0_14] : memref<2x128x384xf32, #tpu.memory_space<vmem>>, vector<1x128x384xf32>
    %28 = vector.shape_cast %27 : vector<1x128x384xf32> to vector<128x384xf32>
    %cst_15 = arith.constant dense<0.000000e+00> : vector<16x384xf32>
    %29 = tpu.matmul %26, %28, %cst_15 {dimension_numbers = #tpu.dot_dimension_numbers<[1], [0], [0], [1], [0, 0, 1, 1], [], []>} : vector<16x128xf32>, vector<128x384xf32>, vector<16x384xf32> -> vector<16x384xf32>
    %c0_16 = arith.constant 0 : index
    %c0_17 = arith.constant 0 : index
    %c0_18 = arith.constant 0 : index
    %30 = vector.load %arg6[%c0_16, %c0_17, %c0_18] : memref<2x1x384xf32, #tpu.memory_space<vmem>>, vector<1x1x384xf32>
    %31 = vector.shape_cast %30 : vector<1x1x384xf32> to vector<1x384xf32>
    %32 = vector.broadcast %31 : vector<1x384xf32> to vector<16x384xf32>
    %33 = arith.addf %29, %32 : vector<16x384xf32>
    %34 = vector.extract_strided_slice %33 {offsets = [0, 0], sizes = [16, 128], strides = [1, 1]} : vector<16x384xf32> to vector<16x128xf32>
    %35 = vector.shape_cast %34 : vector<16x128xf32> to vector<2x8x128xf32>
    %36 = vector.extract_strided_slice %33 {offsets = [0, 128], sizes = [16, 128], strides = [1, 1]} : vector<16x384xf32> to vector<16x128xf32>
    %37 = vector.shape_cast %36 : vector<16x128xf32> to vector<2x8x128xf32>
    %38 = vector.extract_strided_slice %33 {offsets = [0, 256], sizes = [16, 128], strides = [1, 1]} : vector<16x384xf32> to vector<16x128xf32>
    %39 = vector.shape_cast %38 : vector<16x128xf32> to vector<2x8x128xf32>
    %40 = vector.extract_strided_slice %35 {offsets = [0, 0, 0], sizes = [2, 8, 64], strides = [1, 1, 1]} : vector<2x8x128xf32> to vector<2x8x64xf32>
    %41 = vector.extract_strided_slice %37 {offsets = [0, 0, 0], sizes = [2, 8, 64], strides = [1, 1, 1]} : vector<2x8x128xf32> to vector<2x8x64xf32>
    %42 = vector.extract_strided_slice %39 {offsets = [0, 0, 0], sizes = [2, 8, 64], strides = [1, 1, 1]} : vector<2x8x128xf32> to vector<2x8x64xf32>
    "tpu.trace_start"() <{level = 10 : i32, message = "bqd,bkd->bqk"}> : () -> ()
    %cst_19 = arith.constant dense<0.000000e+00> : vector<2x8x8xf32>
    %43 = tpu.matmul %40, %41, %cst_19 {dimension_numbers = #tpu.dot_dimension_numbers<[2], [2], [1], [1], [0, 0, 0, 1, 1, 1], [0], [0]>} : vector<2x8x64xf32>, vector<2x8x64xf32>, vector<2x8x8xf32> -> vector<2x8x8xf32>
    "tpu.trace_stop"() : () -> ()
    %cst_20 = arith.constant 1.250000e-01 : f32
    %44 = vector.broadcast %cst_20 : f32 to vector<2x8x8xf32>
    %45 = arith.mulf %43, %44 : vector<2x8x8xf32>
    %46 = vector.shape_cast %0 : vector<2x8xf32> to vector<2x1x8xf32>
    %47 = vector.broadcast %46 : vector<2x1x8xf32> to vector<2x8x8xf32>
    %48 = arith.addf %45, %47 : vector<2x8x8xf32>
    %cst_21 = arith.constant dense<0xFF800000> : vector<2x8xf32>
    %49 = vector.multi_reduction <maximumf>, %48, %cst_21 [2] : vector<2x8x8xf32> to vector<2x8xf32>
    %50 = vector.shape_cast %49 : vector<2x8xf32> to vector<2x8x1xf32>
    %51 = vector.broadcast %50 : vector<2x8x1xf32> to vector<2x8x8xf32>
    %52 = arith.subf %48, %51 : vector<2x8x8xf32>
    %53 = math.exp %52 : vector<2x8x8xf32>
    %cst_22 = arith.constant dense<0.000000e+00> : vector<2x8xf32>
    %54 = vector.multi_reduction <add>, %53, %cst_22 [2] : vector<2x8x8xf32> to vector<2x8xf32>
    %55 = vector.shape_cast %54 : vector<2x8xf32> to vector<2x8x1xf32>
    %56 = tpu.reciprocal %55 {approx = true} : vector<2x8x1xf32> -> vector<2x8x1xf32>
    %57 = vector.broadcast %56 : vector<2x8x1xf32> to vector<2x8x8xf32>
    %58 = arith.mulf %53, %57 : vector<2x8x8xf32>
    "tpu.trace_start"() <{level = 10 : i32, message = "bqk,bkd->bqd"}> : () -> ()
    %cst_23 = arith.constant dense<0.000000e+00> : vector<2x8x64xf32>
    %59 = tpu.matmul %58, %42, %cst_23 {dimension_numbers = #tpu.dot_dimension_numbers<[2], [1], [1], [2], [0, 0, 0, 1, 1, 2], [0], [0]>} : vector<2x8x8xf32>, vector<2x8x64xf32>, vector<2x8x64xf32> -> vector<2x8x64xf32>
    "tpu.trace_stop"() : () -> ()
    %60 = vector.extract_strided_slice %35 {offsets = [0, 0, 64], sizes = [2, 8, 64], strides = [1, 1, 1]} : vector<2x8x128xf32> to vector<2x8x64xf32>
    %61 = vector.extract_strided_slice %37 {offsets = [0, 0, 64], sizes = [2, 8, 64], strides = [1, 1, 1]} : vector<2x8x128xf32> to vector<2x8x64xf32>
    %62 = vector.extract_strided_slice %39 {offsets = [0, 0, 64], sizes = [2, 8, 64], strides = [1, 1, 1]} : vector<2x8x128xf32> to vector<2x8x64xf32>
    "tpu.trace_start"() <{level = 10 : i32, message = "bqd,bkd->bqk"}> : () -> ()
    %cst_24 = arith.constant dense<0.000000e+00> : vector<2x8x8xf32>
    %63 = tpu.matmul %60, %61, %cst_24 {dimension_numbers = #tpu.dot_dimension_numbers<[2], [2], [1], [1], [0, 0, 0, 1, 1, 1], [0], [0]>} : vector<2x8x64xf32>, vector<2x8x64xf32>, vector<2x8x8xf32> -> vector<2x8x8xf32>
    "tpu.trace_stop"() : () -> ()
    %cst_25 = arith.constant 1.250000e-01 : f32
    %64 = vector.broadcast %cst_25 : f32 to vector<2x8x8xf32>
    %65 = arith.mulf %63, %64 : vector<2x8x8xf32>
    %66 = vector.shape_cast %0 : vector<2x8xf32> to vector<2x1x8xf32>
    %67 = vector.broadcast %66 : vector<2x1x8xf32> to vector<2x8x8xf32>
    %68 = arith.addf %65, %67 : vector<2x8x8xf32>
    %cst_26 = arith.constant dense<0xFF800000> : vector<2x8xf32>
    %69 = vector.multi_reduction <maximumf>, %68, %cst_26 [2] : vector<2x8x8xf32> to vector<2x8xf32>
    %70 = vector.shape_cast %69 : vector<2x8xf32> to vector<2x8x1xf32>
    %71 = vector.broadcast %70 : vector<2x8x1xf32> to vector<2x8x8xf32>
    %72 = arith.subf %68, %71 : vector<2x8x8xf32>
    %73 = math.exp %72 : vector<2x8x8xf32>
    %cst_27 = arith.constant dense<0.000000e+00> : vector<2x8xf32>
    %74 = vector.multi_reduction <add>, %73, %cst_27 [2] : vector<2x8x8xf32> to vector<2x8xf32>
    %75 = vector.shape_cast %74 : vector<2x8xf32> to vector<2x8x1xf32>
    %76 = tpu.reciprocal %75 {approx = true} : vector<2x8x1xf32> -> vector<2x8x1xf32>
    %77 = vector.broadcast %76 : vector<2x8x1xf32> to vector<2x8x8xf32>
    %78 = arith.mulf %73, %77 : vector<2x8x8xf32>
    "tpu.trace_start"() <{level = 10 : i32, message = "bqk,bkd->bqd"}> : () -> ()
    %cst_28 = arith.constant dense<0.000000e+00> : vector<2x8x64xf32>
    %79 = tpu.matmul %78, %62, %cst_28 {dimension_numbers = #tpu.dot_dimension_numbers<[2], [1], [1], [2], [0, 0, 0, 1, 1, 2], [0], [0]>} : vector<2x8x8xf32>, vector<2x8x64xf32>, vector<2x8x64xf32> -> vector<2x8x64xf32>
    "tpu.trace_stop"() : () -> ()
    %80 = tpu.concatenate %59, %79 in 2 : vector<2x8x64xf32>, vector<2x8x64xf32> -> vector<2x8x128xf32>
    %81 = vector.shape_cast %80 : vector<2x8x128xf32> to vector<16x128xf32>
    %c0_29 = arith.constant 0 : index
    %c0_30 = arith.constant 0 : index
    %c0_31 = arith.constant 0 : index
    %82 = vector.load %arg7[%c0_29, %c0_30, %c0_31] : memref<2x128x128xf32, #tpu.memory_space<vmem>>, vector<1x128x128xf32>
    %83 = vector.shape_cast %82 : vector<1x128x128xf32> to vector<128x128xf32>
    %cst_32 = arith.constant dense<0.000000e+00> : vector<16x128xf32>
    %84 = tpu.matmul %81, %83, %cst_32 {dimension_numbers = #tpu.dot_dimension_numbers<[1], [0], [0], [1], [0, 0, 1, 1], [], []>} : vector<16x128xf32>, vector<128x128xf32>, vector<16x128xf32> -> vector<16x128xf32>
    %c0_33 = arith.constant 0 : index
    %c0_34 = arith.constant 0 : index
    %c0_35 = arith.constant 0 : index
    %85 = vector.load %arg8[%c0_33, %c0_34, %c0_35] : memref<2x1x128xf32, #tpu.memory_space<vmem>>, vector<1x1x128xf32>
    %86 = vector.shape_cast %85 : vector<1x1x128xf32> to vector<1x128xf32>
    %87 = vector.broadcast %86 : vector<1x128xf32> to vector<16x128xf32>
    %88 = arith.addf %84, %87 : vector<16x128xf32>
    %89 = arith.addf %88, %26 : vector<16x128xf32>
    %c0_36 = arith.constant 0 : index
    %c0_37 = arith.constant 0 : index
    %c0_38 = arith.constant 0 : index
    %90 = vector.load %arg9[%c0_36, %c0_37, %c0_38] : memref<2x1x128xf32, #tpu.memory_space<vmem>>, vector<1x1x128xf32>
    %91 = vector.shape_cast %90 : vector<1x1x128xf32> to vector<1x128xf32>
    %c0_39 = arith.constant 0 : index
    %c0_40 = arith.constant 0 : index
    %c0_41 = arith.constant 0 : index
    %92 = vector.load %arg10[%c0_39, %c0_40, %c0_41] : memref<2x1x128xf32, #tpu.memory_space<vmem>>, vector<1x1x128xf32>
    %93 = vector.shape_cast %92 : vector<1x1x128xf32> to vector<1x128xf32>
    %cst_42 = arith.constant dense<0.000000e+00> : vector<16xf32>
    %94 = vector.multi_reduction <add>, %89, %cst_42 [1] : vector<16x128xf32> to vector<16xf32>
    %95 = vector.shape_cast %94 : vector<16xf32> to vector<16x1xf32>
    %cst_43 = arith.constant 1.280000e+02 : f32
    %96 = vector.broadcast %cst_43 : f32 to vector<16x1xf32>
    %97 = arith.divf %95, %96 : vector<16x1xf32>
    %98 = vector.broadcast %97 : vector<16x1xf32> to vector<16x128xf32>
    %99 = arith.subf %89, %98 : vector<16x128xf32>
    %100 = arith.mulf %99, %99 : vector<16x128xf32>
    %cst_44 = arith.constant dense<0.000000e+00> : vector<16xf32>
    %101 = vector.multi_reduction <add>, %100, %cst_44 [1] : vector<16x128xf32> to vector<16xf32>
    %102 = vector.shape_cast %101 : vector<16xf32> to vector<16x1xf32>
    %cst_45 = arith.constant 1.280000e+02 : f32
    %103 = vector.broadcast %cst_45 : f32 to vector<16x1xf32>
    %104 = arith.divf %102, %103 : vector<16x1xf32>
    %105 = vector.broadcast %97 : vector<16x1xf32> to vector<16x128xf32>
    %106 = arith.subf %89, %105 : vector<16x128xf32>
    %cst_46 = arith.constant 9.99999996E-13 : f32
    %107 = vector.broadcast %cst_46 : f32 to vector<16x1xf32>
    %108 = arith.addf %104, %107 : vector<16x1xf32>
    %109 = math.rsqrt %108 : vector<16x1xf32>
    %110 = vector.broadcast %109 : vector<16x1xf32> to vector<16x128xf32>
    %111 = arith.mulf %106, %110 : vector<16x128xf32>
    %112 = vector.broadcast %91 : vector<1x128xf32> to vector<16x128xf32>
    %113 = arith.mulf %111, %112 : vector<16x128xf32>
    %114 = vector.broadcast %93 : vector<1x128xf32> to vector<16x128xf32>
    %115 = arith.addf %113, %114 : vector<16x128xf32>
    %c0_47 = arith.constant 0 : index
    %c0_48 = arith.constant 0 : index
    %c0_49 = arith.constant 0 : index
    %116 = vector.load %arg11[%c0_47, %c0_48, %c0_49] : memref<2x128x256xf32, #tpu.memory_space<vmem>>, vector<1x128x256xf32>
    %117 = vector.shape_cast %116 : vector<1x128x256xf32> to vector<128x256xf32>
    %cst_50 = arith.constant dense<0.000000e+00> : vector<16x256xf32>
    %118 = tpu.matmul %115, %117, %cst_50 {dimension_numbers = #tpu.dot_dimension_numbers<[1], [0], [0], [1], [0, 0, 1, 1], [], []>} : vector<16x128xf32>, vector<128x256xf32>, vector<16x256xf32> -> vector<16x256xf32>
    %c0_51 = arith.constant 0 : index
    %c0_52 = arith.constant 0 : index
    %c0_53 = arith.constant 0 : index
    %119 = vector.load %arg12[%c0_51, %c0_52, %c0_53] : memref<2x1x256xf32, #tpu.memory_space<vmem>>, vector<1x1x256xf32>
    %120 = vector.shape_cast %119 : vector<1x1x256xf32> to vector<1x256xf32>
    %121 = vector.broadcast %120 : vector<1x256xf32> to vector<16x256xf32>
    %122 = arith.addf %118, %121 : vector<16x256xf32>
    %123 = arith.mulf %122, %122 : vector<16x256xf32>
    %124 = arith.mulf %122, %123 : vector<16x256xf32>
    %cst_54 = arith.constant 4.471500e-02 : f32
    %125 = vector.broadcast %cst_54 : f32 to vector<16x256xf32>
    %126 = arith.mulf %125, %124 : vector<16x256xf32>
    %127 = arith.addf %122, %126 : vector<16x256xf32>
    %cst_55 = arith.constant 0.797884583 : f32
    %128 = vector.broadcast %cst_55 : f32 to vector<16x256xf32>
    %129 = arith.mulf %128, %127 : vector<16x256xf32>
    %130 = math.tanh %129 : vector<16x256xf32>
    %cst_56 = arith.constant 1.000000e+00 : f32
    %131 = vector.broadcast %cst_56 : f32 to vector<16x256xf32>
    %132 = arith.addf %131, %130 : vector<16x256xf32>
    %cst_57 = arith.constant 5.000000e-01 : f32
    %133 = vector.broadcast %cst_57 : f32 to vector<16x256xf32>
    %134 = arith.mulf %133, %132 : vector<16x256xf32>
    %135 = arith.mulf %122, %134 : vector<16x256xf32>
    %c0_58 = arith.constant 0 : index
    %c0_59 = arith.constant 0 : index
    %c0_60 = arith.constant 0 : index
    %136 = vector.load %arg13[%c0_58, %c0_59, %c0_60] : memref<2x256x128xf32, #tpu.memory_space<vmem>>, vector<1x256x128xf32>
    %137 = vector.shape_cast %136 : vector<1x256x128xf32> to vector<256x128xf32>
    %cst_61 = arith.constant dense<0.000000e+00> : vector<16x128xf32>
    %138 = tpu.matmul %135, %137, %cst_61 {dimension_numbers = #tpu.dot_dimension_numbers<[1], [0], [0], [1], [0, 0, 1, 1], [], []>} : vector<16x256xf32>, vector<256x128xf32>, vector<16x128xf32> -> vector<16x128xf32>
    %c0_62 = arith.constant 0 : index
    %c0_63 = arith.constant 0 : index
    %c0_64 = arith.constant 0 : index
    %139 = vector.load %arg14[%c0_62, %c0_63, %c0_64] : memref<2x1x128xf32, #tpu.memory_space<vmem>>, vector<1x1x128xf32>
    %140 = vector.shape_cast %139 : vector<1x1x128xf32> to vector<1x128xf32>
    %141 = vector.broadcast %140 : vector<1x128xf32> to vector<16x128xf32>
    %142 = arith.addf %138, %141 : vector<16x128xf32>
    %143 = arith.addf %142, %115 : vector<16x128xf32>
    %c0_65 = arith.constant 0 : index
    %c0_66 = arith.constant 0 : index
    %c0_67 = arith.constant 0 : index
    %144 = vector.load %arg15[%c0_65, %c0_66, %c0_67] : memref<2x1x128xf32, #tpu.memory_space<vmem>>, vector<1x1x128xf32>
    %145 = vector.shape_cast %144 : vector<1x1x128xf32> to vector<1x128xf32>
    %c0_68 = arith.constant 0 : index
    %c0_69 = arith.constant 0 : index
    %c0_70 = arith.constant 0 : index
    %146 = vector.load %arg16[%c0_68, %c0_69, %c0_70] : memref<2x1x128xf32, #tpu.memory_space<vmem>>, vector<1x1x128xf32>
    %147 = vector.shape_cast %146 : vector<1x1x128xf32> to vector<1x128xf32>
    %cst_71 = arith.constant dense<0.000000e+00> : vector<16xf32>
    %148 = vector.multi_reduction <add>, %143, %cst_71 [1] : vector<16x128xf32> to vector<16xf32>
    %149 = vector.shape_cast %148 : vector<16xf32> to vector<16x1xf32>
    %cst_72 = arith.constant 1.280000e+02 : f32
    %150 = vector.broadcast %cst_72 : f32 to vector<16x1xf32>
    %151 = arith.divf %149, %150 : vector<16x1xf32>
    %152 = vector.broadcast %151 : vector<16x1xf32> to vector<16x128xf32>
    %153 = arith.subf %143, %152 : vector<16x128xf32>
    %154 = arith.mulf %153, %153 : vector<16x128xf32>
    %cst_73 = arith.constant dense<0.000000e+00> : vector<16xf32>
    %155 = vector.multi_reduction <add>, %154, %cst_73 [1] : vector<16x128xf32> to vector<16xf32>
    %156 = vector.shape_cast %155 : vector<16xf32> to vector<16x1xf32>
    %cst_74 = arith.constant 1.280000e+02 : f32
    %157 = vector.broadcast %cst_74 : f32 to vector<16x1xf32>
    %158 = arith.divf %156, %157 : vector<16x1xf32>
    %159 = vector.broadcast %151 : vector<16x1xf32> to vector<16x128xf32>
    %160 = arith.subf %143, %159 : vector<16x128xf32>
    %cst_75 = arith.constant 9.99999996E-13 : f32
    %161 = vector.broadcast %cst_75 : f32 to vector<16x1xf32>
    %162 = arith.addf %158, %161 : vector<16x1xf32>
    %163 = math.rsqrt %162 : vector<16x1xf32>
    %164 = vector.broadcast %163 : vector<16x1xf32> to vector<16x128xf32>
    %165 = arith.mulf %160, %164 : vector<16x128xf32>
    %166 = vector.broadcast %145 : vector<1x128xf32> to vector<16x128xf32>
    %167 = arith.mulf %165, %166 : vector<16x128xf32>
    %168 = vector.broadcast %147 : vector<1x128xf32> to vector<16x128xf32>
    %169 = arith.addf %167, %168 : vector<16x128xf32>
    %c1 = arith.constant 1 : index
    %c0_76 = arith.constant 0 : index
    %c0_77 = arith.constant 0 : index
    %170 = vector.load %arg5[%c1, %c0_76, %c0_77] : memref<2x128x384xf32, #tpu.memory_space<vmem>>, vector<1x128x384xf32>
    %171 = vector.shape_cast %170 : vector<1x128x384xf32> to vector<128x384xf32>
    %cst_78 = arith.constant dense<0.000000e+00> : vector<16x384xf32>
    %172 = tpu.matmul %169, %171, %cst_78 {dimension_numbers = #tpu.dot_dimension_numbers<[1], [0], [0], [1], [0, 0, 1, 1], [], []>} : vector<16x128xf32>, vector<128x384xf32>, vector<16x384xf32> -> vector<16x384xf32>
    %c1_79 = arith.constant 1 : index
    %c0_80 = arith.constant 0 : index
    %c0_81 = arith.constant 0 : index
    %173 = vector.load %arg6[%c1_79, %c0_80, %c0_81] : memref<2x1x384xf32, #tpu.memory_space<vmem>>, vector<1x1x384xf32>
    %174 = vector.shape_cast %173 : vector<1x1x384xf32> to vector<1x384xf32>
    %175 = vector.broadcast %174 : vector<1x384xf32> to vector<16x384xf32>
    %176 = arith.addf %172, %175 : vector<16x384xf32>
    %177 = vector.extract_strided_slice %176 {offsets = [0, 0], sizes = [16, 128], strides = [1, 1]} : vector<16x384xf32> to vector<16x128xf32>
    %178 = vector.shape_cast %177 : vector<16x128xf32> to vector<2x8x128xf32>
    %179 = vector.extract_strided_slice %176 {offsets = [0, 128], sizes = [16, 128], strides = [1, 1]} : vector<16x384xf32> to vector<16x128xf32>
    %180 = vector.shape_cast %179 : vector<16x128xf32> to vector<2x8x128xf32>
    %181 = vector.extract_strided_slice %176 {offsets = [0, 256], sizes = [16, 128], strides = [1, 1]} : vector<16x384xf32> to vector<16x128xf32>
    %182 = vector.shape_cast %181 : vector<16x128xf32> to vector<2x8x128xf32>
    %183 = vector.extract_strided_slice %178 {offsets = [0, 0, 0], sizes = [2, 8, 64], strides = [1, 1, 1]} : vector<2x8x128xf32> to vector<2x8x64xf32>
    %184 = vector.extract_strided_slice %180 {offsets = [0, 0, 0], sizes = [2, 8, 64], strides = [1, 1, 1]} : vector<2x8x128xf32> to vector<2x8x64xf32>
    %185 = vector.extract_strided_slice %182 {offsets = [0, 0, 0], sizes = [2, 8, 64], strides = [1, 1, 1]} : vector<2x8x128xf32> to vector<2x8x64xf32>
    "tpu.trace_start"() <{level = 10 : i32, message = "bqd,bkd->bqk"}> : () -> ()
    %cst_82 = arith.constant dense<0.000000e+00> : vector<2x8x8xf32>
    %186 = tpu.matmul %183, %184, %cst_82 {dimension_numbers = #tpu.dot_dimension_numbers<[2], [2], [1], [1], [0, 0, 0, 1, 1, 1], [0], [0]>} : vector<2x8x64xf32>, vector<2x8x64xf32>, vector<2x8x8xf32> -> vector<2x8x8xf32>
    "tpu.trace_stop"() : () -> ()
    %cst_83 = arith.constant 1.250000e-01 : f32
    %187 = vector.broadcast %cst_83 : f32 to vector<2x8x8xf32>
    %188 = arith.mulf %186, %187 : vector<2x8x8xf32>
    %189 = vector.shape_cast %0 : vector<2x8xf32> to vector<2x1x8xf32>
    %190 = vector.broadcast %189 : vector<2x1x8xf32> to vector<2x8x8xf32>
    %191 = arith.addf %188, %190 : vector<2x8x8xf32>
    %cst_84 = arith.constant dense<0xFF800000> : vector<2x8xf32>
    %192 = vector.multi_reduction <maximumf>, %191, %cst_84 [2] : vector<2x8x8xf32> to vector<2x8xf32>
    %193 = vector.shape_cast %192 : vector<2x8xf32> to vector<2x8x1xf32>
    %194 = vector.broadcast %193 : vector<2x8x1xf32> to vector<2x8x8xf32>
    %195 = arith.subf %191, %194 : vector<2x8x8xf32>
    %196 = math.exp %195 : vector<2x8x8xf32>
    %cst_85 = arith.constant dense<0.000000e+00> : vector<2x8xf32>
    %197 = vector.multi_reduction <add>, %196, %cst_85 [2] : vector<2x8x8xf32> to vector<2x8xf32>
    %198 = vector.shape_cast %197 : vector<2x8xf32> to vector<2x8x1xf32>
    %199 = tpu.reciprocal %198 {approx = true} : vector<2x8x1xf32> -> vector<2x8x1xf32>
    %200 = vector.broadcast %199 : vector<2x8x1xf32> to vector<2x8x8xf32>
    %201 = arith.mulf %196, %200 : vector<2x8x8xf32>
    "tpu.trace_start"() <{level = 10 : i32, message = "bqk,bkd->bqd"}> : () -> ()
    %cst_86 = arith.constant dense<0.000000e+00> : vector<2x8x64xf32>
    %202 = tpu.matmul %201, %185, %cst_86 {dimension_numbers = #tpu.dot_dimension_numbers<[2], [1], [1], [2], [0, 0, 0, 1, 1, 2], [0], [0]>} : vector<2x8x8xf32>, vector<2x8x64xf32>, vector<2x8x64xf32> -> vector<2x8x64xf32>
    "tpu.trace_stop"() : () -> ()
    %203 = vector.extract_strided_slice %178 {offsets = [0, 0, 64], sizes = [2, 8, 64], strides = [1, 1, 1]} : vector<2x8x128xf32> to vector<2x8x64xf32>
    %204 = vector.extract_strided_slice %180 {offsets = [0, 0, 64], sizes = [2, 8, 64], strides = [1, 1, 1]} : vector<2x8x128xf32> to vector<2x8x64xf32>
    %205 = vector.extract_strided_slice %182 {offsets = [0, 0, 64], sizes = [2, 8, 64], strides = [1, 1, 1]} : vector<2x8x128xf32> to vector<2x8x64xf32>
    "tpu.trace_start"() <{level = 10 : i32, message = "bqd,bkd->bqk"}> : () -> ()
    %cst_87 = arith.constant dense<0.000000e+00> : vector<2x8x8xf32>
    %206 = tpu.matmul %203, %204, %cst_87 {dimension_numbers = #tpu.dot_dimension_numbers<[2], [2], [1], [1], [0, 0, 0, 1, 1, 1], [0], [0]>} : vector<2x8x64xf32>, vector<2x8x64xf32>, vector<2x8x8xf32> -> vector<2x8x8xf32>
    "tpu.trace_stop"() : () -> ()
    %cst_88 = arith.constant 1.250000e-01 : f32
    %207 = vector.broadcast %cst_88 : f32 to vector<2x8x8xf32>
    %208 = arith.mulf %206, %207 : vector<2x8x8xf32>
    %209 = vector.shape_cast %0 : vector<2x8xf32> to vector<2x1x8xf32>
    %210 = vector.broadcast %209 : vector<2x1x8xf32> to vector<2x8x8xf32>
    %211 = arith.addf %208, %210 : vector<2x8x8xf32>
    %cst_89 = arith.constant dense<0xFF800000> : vector<2x8xf32>
    %212 = vector.multi_reduction <maximumf>, %211, %cst_89 [2] : vector<2x8x8xf32> to vector<2x8xf32>
    %213 = vector.shape_cast %212 : vector<2x8xf32> to vector<2x8x1xf32>
    %214 = vector.broadcast %213 : vector<2x8x1xf32> to vector<2x8x8xf32>
    %215 = arith.subf %211, %214 : vector<2x8x8xf32>
    %216 = math.exp %215 : vector<2x8x8xf32>
    %cst_90 = arith.constant dense<0.000000e+00> : vector<2x8xf32>
    %217 = vector.multi_reduction <add>, %216, %cst_90 [2] : vector<2x8x8xf32> to vector<2x8xf32>
    %218 = vector.shape_cast %217 : vector<2x8xf32> to vector<2x8x1xf32>
    %219 = tpu.reciprocal %218 {approx = true} : vector<2x8x1xf32> -> vector<2x8x1xf32>
    %220 = vector.broadcast %219 : vector<2x8x1xf32> to vector<2x8x8xf32>
    %221 = arith.mulf %216, %220 : vector<2x8x8xf32>
    "tpu.trace_start"() <{level = 10 : i32, message = "bqk,bkd->bqd"}> : () -> ()
    %cst_91 = arith.constant dense<0.000000e+00> : vector<2x8x64xf32>
    %222 = tpu.matmul %221, %205, %cst_91 {dimension_numbers = #tpu.dot_dimension_numbers<[2], [1], [1], [2], [0, 0, 0, 1, 1, 2], [0], [0]>} : vector<2x8x8xf32>, vector<2x8x64xf32>, vector<2x8x64xf32> -> vector<2x8x64xf32>
    "tpu.trace_stop"() : () -> ()
    %223 = tpu.concatenate %202, %222 in 2 : vector<2x8x64xf32>, vector<2x8x64xf32> -> vector<2x8x128xf32>
    %224 = vector.shape_cast %223 : vector<2x8x128xf32> to vector<16x128xf32>
    %c1_92 = arith.constant 1 : index
    %c0_93 = arith.constant 0 : index
    %c0_94 = arith.constant 0 : index
    %225 = vector.load %arg7[%c1_92, %c0_93, %c0_94] : memref<2x128x128xf32, #tpu.memory_space<vmem>>, vector<1x128x128xf32>
    %226 = vector.shape_cast %225 : vector<1x128x128xf32> to vector<128x128xf32>
    %cst_95 = arith.constant dense<0.000000e+00> : vector<16x128xf32>
    %227 = tpu.matmul %224, %226, %cst_95 {dimension_numbers = #tpu.dot_dimension_numbers<[1], [0], [0], [1], [0, 0, 1, 1], [], []>} : vector<16x128xf32>, vector<128x128xf32>, vector<16x128xf32> -> vector<16x128xf32>
    %c1_96 = arith.constant 1 : index
    %c0_97 = arith.constant 0 : index
    %c0_98 = arith.constant 0 : index
    %228 = vector.load %arg8[%c1_96, %c0_97, %c0_98] : memref<2x1x128xf32, #tpu.memory_space<vmem>>, vector<1x1x128xf32>
    %229 = vector.shape_cast %228 : vector<1x1x128xf32> to vector<1x128xf32>
    %230 = vector.broadcast %229 : vector<1x128xf32> to vector<16x128xf32>
    %231 = arith.addf %227, %230 : vector<16x128xf32>
    %232 = arith.addf %231, %169 : vector<16x128xf32>
    %c1_99 = arith.constant 1 : index
    %c0_100 = arith.constant 0 : index
    %c0_101 = arith.constant 0 : index
    %233 = vector.load %arg9[%c1_99, %c0_100, %c0_101] : memref<2x1x128xf32, #tpu.memory_space<vmem>>, vector<1x1x128xf32>
    %234 = vector.shape_cast %233 : vector<1x1x128xf32> to vector<1x128xf32>
    %c1_102 = arith.constant 1 : index
    %c0_103 = arith.constant 0 : index
    %c0_104 = arith.constant 0 : index
    %235 = vector.load %arg10[%c1_102, %c0_103, %c0_104] : memref<2x1x128xf32, #tpu.memory_space<vmem>>, vector<1x1x128xf32>
    %236 = vector.shape_cast %235 : vector<1x1x128xf32> to vector<1x128xf32>
    %cst_105 = arith.constant dense<0.000000e+00> : vector<16xf32>
    %237 = vector.multi_reduction <add>, %232, %cst_105 [1] : vector<16x128xf32> to vector<16xf32>
    %238 = vector.shape_cast %237 : vector<16xf32> to vector<16x1xf32>
    %cst_106 = arith.constant 1.280000e+02 : f32
    %239 = vector.broadcast %cst_106 : f32 to vector<16x1xf32>
    %240 = arith.divf %238, %239 : vector<16x1xf32>
    %241 = vector.broadcast %240 : vector<16x1xf32> to vector<16x128xf32>
    %242 = arith.subf %232, %241 : vector<16x128xf32>
    %243 = arith.mulf %242, %242 : vector<16x128xf32>
    %cst_107 = arith.constant dense<0.000000e+00> : vector<16xf32>
    %244 = vector.multi_reduction <add>, %243, %cst_107 [1] : vector<16x128xf32> to vector<16xf32>
    %245 = vector.shape_cast %244 : vector<16xf32> to vector<16x1xf32>
    %cst_108 = arith.constant 1.280000e+02 : f32
    %246 = vector.broadcast %cst_108 : f32 to vector<16x1xf32>
    %247 = arith.divf %245, %246 : vector<16x1xf32>
    %248 = vector.broadcast %240 : vector<16x1xf32> to vector<16x128xf32>
    %249 = arith.subf %232, %248 : vector<16x128xf32>
    %cst_109 = arith.constant 9.99999996E-13 : f32
    %250 = vector.broadcast %cst_109 : f32 to vector<16x1xf32>
    %251 = arith.addf %247, %250 : vector<16x1xf32>
    %252 = math.rsqrt %251 : vector<16x1xf32>
    %253 = vector.broadcast %252 : vector<16x1xf32> to vector<16x128xf32>
    %254 = arith.mulf %249, %253 : vector<16x128xf32>
    %255 = vector.broadcast %234 : vector<1x128xf32> to vector<16x128xf32>
    %256 = arith.mulf %254, %255 : vector<16x128xf32>
    %257 = vector.broadcast %236 : vector<1x128xf32> to vector<16x128xf32>
    %258 = arith.addf %256, %257 : vector<16x128xf32>
    %c1_110 = arith.constant 1 : index
    %c0_111 = arith.constant 0 : index
    %c0_112 = arith.constant 0 : index
    %259 = vector.load %arg11[%c1_110, %c0_111, %c0_112] : memref<2x128x256xf32, #tpu.memory_space<vmem>>, vector<1x128x256xf32>
    %260 = vector.shape_cast %259 : vector<1x128x256xf32> to vector<128x256xf32>
    %cst_113 = arith.constant dense<0.000000e+00> : vector<16x256xf32>
    %261 = tpu.matmul %258, %260, %cst_113 {dimension_numbers = #tpu.dot_dimension_numbers<[1], [0], [0], [1], [0, 0, 1, 1], [], []>} : vector<16x128xf32>, vector<128x256xf32>, vector<16x256xf32> -> vector<16x256xf32>
    %c1_114 = arith.constant 1 : index
    %c0_115 = arith.constant 0 : index
    %c0_116 = arith.constant 0 : index
    %262 = vector.load %arg12[%c1_114, %c0_115, %c0_116] : memref<2x1x256xf32, #tpu.memory_space<vmem>>, vector<1x1x256xf32>
    %263 = vector.shape_cast %262 : vector<1x1x256xf32> to vector<1x256xf32>
    %264 = vector.broadcast %263 : vector<1x256xf32> to vector<16x256xf32>
    %265 = arith.addf %261, %264 : vector<16x256xf32>
    %266 = arith.mulf %265, %265 : vector<16x256xf32>
    %267 = arith.mulf %265, %266 : vector<16x256xf32>
    %cst_117 = arith.constant 4.471500e-02 : f32
    %268 = vector.broadcast %cst_117 : f32 to vector<16x256xf32>
    %269 = arith.mulf %268, %267 : vector<16x256xf32>
    %270 = arith.addf %265, %269 : vector<16x256xf32>
    %cst_118 = arith.constant 0.797884583 : f32
    %271 = vector.broadcast %cst_118 : f32 to vector<16x256xf32>
    %272 = arith.mulf %271, %270 : vector<16x256xf32>
    %273 = math.tanh %272 : vector<16x256xf32>
    %cst_119 = arith.constant 1.000000e+00 : f32
    %274 = vector.broadcast %cst_119 : f32 to vector<16x256xf32>
    %275 = arith.addf %274, %273 : vector<16x256xf32>
    %cst_120 = arith.constant 5.000000e-01 : f32
    %276 = vector.broadcast %cst_120 : f32 to vector<16x256xf32>
    %277 = arith.mulf %276, %275 : vector<16x256xf32>
    %278 = arith.mulf %265, %277 : vector<16x256xf32>
    %c1_121 = arith.constant 1 : index
    %c0_122 = arith.constant 0 : index
    %c0_123 = arith.constant 0 : index
    %279 = vector.load %arg13[%c1_121, %c0_122, %c0_123] : memref<2x256x128xf32, #tpu.memory_space<vmem>>, vector<1x256x128xf32>
    %280 = vector.shape_cast %279 : vector<1x256x128xf32> to vector<256x128xf32>
    %cst_124 = arith.constant dense<0.000000e+00> : vector<16x128xf32>
    %281 = tpu.matmul %278, %280, %cst_124 {dimension_numbers = #tpu.dot_dimension_numbers<[1], [0], [0], [1], [0, 0, 1, 1], [], []>} : vector<16x256xf32>, vector<256x128xf32>, vector<16x128xf32> -> vector<16x128xf32>
    %c1_125 = arith.constant 1 : index
    %c0_126 = arith.constant 0 : index
    %c0_127 = arith.constant 0 : index
    %282 = vector.load %arg14[%c1_125, %c0_126, %c0_127] : memref<2x1x128xf32, #tpu.memory_space<vmem>>, vector<1x1x128xf32>
    %283 = vector.shape_cast %282 : vector<1x1x128xf32> to vector<1x128xf32>
    %284 = vector.broadcast %283 : vector<1x128xf32> to vector<16x128xf32>
    %285 = arith.addf %281, %284 : vector<16x128xf32>
    %286 = arith.addf %285, %258 : vector<16x128xf32>
    %c1_128 = arith.constant 1 : index
    %c0_129 = arith.constant 0 : index
    %c0_130 = arith.constant 0 : index
    %287 = vector.load %arg15[%c1_128, %c0_129, %c0_130] : memref<2x1x128xf32, #tpu.memory_space<vmem>>, vector<1x1x128xf32>
    %288 = vector.shape_cast %287 : vector<1x1x128xf32> to vector<1x128xf32>
    %c1_131 = arith.constant 1 : index
    %c0_132 = arith.constant 0 : index
    %c0_133 = arith.constant 0 : index
    %289 = vector.load %arg16[%c1_131, %c0_132, %c0_133] : memref<2x1x128xf32, #tpu.memory_space<vmem>>, vector<1x1x128xf32>
    %290 = vector.shape_cast %289 : vector<1x1x128xf32> to vector<1x128xf32>
    %cst_134 = arith.constant dense<0.000000e+00> : vector<16xf32>
    %291 = vector.multi_reduction <add>, %286, %cst_134 [1] : vector<16x128xf32> to vector<16xf32>
    %292 = vector.shape_cast %291 : vector<16xf32> to vector<16x1xf32>
    %cst_135 = arith.constant 1.280000e+02 : f32
    %293 = vector.broadcast %cst_135 : f32 to vector<16x1xf32>
    %294 = arith.divf %292, %293 : vector<16x1xf32>
    %295 = vector.broadcast %294 : vector<16x1xf32> to vector<16x128xf32>
    %296 = arith.subf %286, %295 : vector<16x128xf32>
    %297 = arith.mulf %296, %296 : vector<16x128xf32>
    %cst_136 = arith.constant dense<0.000000e+00> : vector<16xf32>
    %298 = vector.multi_reduction <add>, %297, %cst_136 [1] : vector<16x128xf32> to vector<16xf32>
    %299 = vector.shape_cast %298 : vector<16xf32> to vector<16x1xf32>
    %cst_137 = arith.constant 1.280000e+02 : f32
    %300 = vector.broadcast %cst_137 : f32 to vector<16x1xf32>
    %301 = arith.divf %299, %300 : vector<16x1xf32>
    %302 = vector.broadcast %294 : vector<16x1xf32> to vector<16x128xf32>
    %303 = arith.subf %286, %302 : vector<16x128xf32>
    %cst_138 = arith.constant 9.99999996E-13 : f32
    %304 = vector.broadcast %cst_138 : f32 to vector<16x1xf32>
    %305 = arith.addf %301, %304 : vector<16x1xf32>
    %306 = math.rsqrt %305 : vector<16x1xf32>
    %307 = vector.broadcast %306 : vector<16x1xf32> to vector<16x128xf32>
    %308 = arith.mulf %303, %307 : vector<16x128xf32>
    %309 = vector.broadcast %288 : vector<1x128xf32> to vector<16x128xf32>
    %310 = arith.mulf %308, %309 : vector<16x128xf32>
    %311 = vector.broadcast %290 : vector<1x128xf32> to vector<16x128xf32>
    %312 = arith.addf %310, %311 : vector<16x128xf32>
    %313 = vector.shape_cast %312 : vector<16x128xf32> to vector<2x8x128xf32>
    %314 = vector.extract_strided_slice %313 {offsets = [0, 0, 0], sizes = [2, 1, 128], strides = [1, 1, 1]} : vector<2x8x128xf32> to vector<2x1x128xf32>
    %315 = vector.shape_cast %314 : vector<2x1x128xf32> to vector<2x128xf32>
    %c0_139 = arith.constant 0 : index
    %c0_140 = arith.constant 0 : index
    %316 = vector.load %arg17[%c0_139, %c0_140] : memref<128x128xf32, #tpu.memory_space<vmem>>, vector<128x128xf32>
    %cst_141 = arith.constant dense<0.000000e+00> : vector<2x128xf32>
    %317 = tpu.matmul %315, %316, %cst_141 {dimension_numbers = #tpu.dot_dimension_numbers<[1], [0], [0], [1], [0, 0, 1, 1], [], []>} : vector<2x128xf32>, vector<128x128xf32>, vector<2x128xf32> -> vector<2x128xf32>
    %c0_142 = arith.constant 0 : index
    %c0_143 = arith.constant 0 : index
    %318 = vector.load %arg18[%c0_142, %c0_143] : memref<1x128xf32, #tpu.memory_space<vmem>>, vector<1x128xf32>
    %319 = vector.broadcast %318 : vector<1x128xf32> to vector<2x128xf32>
    %320 = arith.addf %317, %319 : vector<2x128xf32>
    %321 = math.tanh %320 : vector<2x128xf32>
    %c0_144 = arith.constant 0 : index
    %c0_145 = arith.constant 0 : index
    %322 = vector.load %arg19[%c0_144, %c0_145] : memref<128x128xf32, #tpu.memory_space<vmem>>, vector<128x128xf32>
    %cst_146 = arith.constant dense<0.000000e+00> : vector<2x128xf32>
    %323 = tpu.matmul %321, %322, %cst_146 {dimension_numbers = #tpu.dot_dimension_numbers<[1], [0], [0], [1], [0, 0, 1, 1], [], []>} : vector<2x128xf32>, vector<128x128xf32>, vector<2x128xf32> -> vector<2x128xf32>
    %c0_147 = arith.constant 0 : index
    %c0_148 = arith.constant 0 : index
    %324 = vector.load %arg20[%c0_147, %c0_148] : memref<1x128xf32, #tpu.memory_space<vmem>>, vector<1x128xf32>
    %325 = vector.broadcast %324 : vector<1x128xf32> to vector<2x128xf32>
    %326 = arith.addf %323, %325 : vector<2x128xf32>
    %c0_149 = arith.constant 0 : index
    %c0_150 = arith.constant 0 : index
    %327 = vector.load %arg25[%c0_149, %c0_150] : memref<2x128xf32, #tpu.memory_space<vmem>>, vector<2x128xf32>
    tpu.vector_store %arg25[%c0_149, %c0_150], %326 {strides = array<i32>} : memref<2x128xf32, #tpu.memory_space<vmem>>, vector<2x128xf32>,
    %c0_151 = arith.constant 0 : index
    %c0_152 = arith.constant 0 : index
    %328 = vector.load %arg21[%c0_151, %c0_152] : memref<128x128xf32, #tpu.memory_space<vmem>>, vector<128x128xf32>
    %cst_153 = arith.constant dense<0.000000e+00> : vector<16x128xf32>
    %329 = tpu.matmul %312, %328, %cst_153 {dimension_numbers = #tpu.dot_dimension_numbers<[1], [0], [0], [1], [0, 0, 1, 1], [], []>} : vector<16x128xf32>, vector<128x128xf32>, vector<16x128xf32> -> vector<16x128xf32>
    %c0_154 = arith.constant 0 : index
    %c0_155 = arith.constant 0 : index
    %330 = vector.load %arg22[%c0_154, %c0_155] : memref<1x128xf32, #tpu.memory_space<vmem>>, vector<1x128xf32>
    %331 = vector.broadcast %330 : vector<1x128xf32> to vector<16x128xf32>
    %332 = arith.addf %329, %331 : vector<16x128xf32>
    %c0_156 = arith.constant 0 : index
    %c0_157 = arith.constant 0 : index
    %333 = vector.load %arg2[%c0_156, %c0_157] : memref<16x1xf32, #tpu.memory_space<vmem>>, vector<16x1xf32>
    %334 = vector.broadcast %333 : vector<16x1xf32> to vector<16x128xf32>
    %335 = arith.mulf %332, %334 : vector<16x128xf32>
    %c0_158 = arith.constant 0 : index
    %c0_159 = arith.constant 0 : index
    %336 = vector.load %arg26[%c0_158, %c0_159] : memref<16x128xf32, #tpu.memory_space<vmem>>, vector<16x128xf32>
    tpu.vector_store %arg26[%c0_158, %c0_159], %335 {strides = array<i32>} : memref<16x128xf32, #tpu.memory_space<vmem>>, vector<16x128xf32>,
    %c0_160 = arith.constant 0 : index
    %c0_161 = arith.constant 0 : index
    %337 = vector.load %arg23[%c0_160, %c0_161] : memref<2x128xf32, #tpu.memory_space<vmem>>, vector<2x128xf32>
    %338 = tpu.iota {dimensions = array<i32: 1>} : vector<2x128xi32>
    %c8_i32 = arith.constant 8 : i32
    %339 = vector.broadcast %c8_i32 : i32 to vector<2x128xi32>
    %340 = arith.cmpi slt, %338, %339 : vector<2x128xi32>
    %cst_162 = arith.constant -1.000000e+30 : f32
    %341 = vector.broadcast %cst_162 : f32 to vector<2x128xf32>
    %342 = arith.select %340, %326, %341 : vector<2x128xi1>, vector<2x128xf32>
    %cst_163 = arith.constant dense<0xFF800000> : vector<2xf32>
    %343 = vector.multi_reduction <maximumf>, %342, %cst_163 [1] : vector<2x128xf32> to vector<2xf32>
    %344 = vector.shape_cast %343 : vector<2xf32> to vector<2x1xf32>
    %345 = vector.broadcast %344 : vector<2x1xf32> to vector<2x128xf32>
    %346 = arith.subf %342, %345 : vector<2x128xf32>
    %347 = math.exp %346 : vector<2x128xf32>
    %cst_164 = arith.constant dense<0.000000e+00> : vector<2xf32>
    %348 = vector.multi_reduction <add>, %347, %cst_164 [1] : vector<2x128xf32> to vector<2xf32>
    %349 = vector.shape_cast %348 : vector<2xf32> to vector<2x1xf32>
    %350 = math.log %349 : vector<2x1xf32>
    %351 = arith.addf %344, %350 : vector<2x1xf32>
    %352 = arith.mulf %337, %326 : vector<2x128xf32>
    %cst_165 = arith.constant dense<0.000000e+00> : vector<2xf32>
    %353 = vector.multi_reduction <add>, %352, %cst_165 [1] : vector<2x128xf32> to vector<2xf32>
    %354 = vector.shape_cast %353 : vector<2xf32> to vector<2x1xf32>
    %355 = arith.subf %351, %354 : vector<2x1xf32>
    %356 = vector.shape_cast %355 : vector<2x1xf32> to vector<1x2x1xf32>
    %cst_166 = arith.constant dense<0.000000e+00> : vector<1xf32>
    %357 = vector.multi_reduction <add>, %356, %cst_166 [1, 2] : vector<1x2x1xf32> to vector<1xf32>
    %358 = vector.shape_cast %357 : vector<1xf32> to vector<1x1x1xf32>
    %359 = vector.extract %358[0, 0, 0] : f32 from vector<1x1x1xf32>
    %cst_167 = arith.constant 2.000000e+00 : f32
    %360 = arith.divf %359, %cst_167 : f32
    %c0_168 = arith.constant 0 : index
    %c0_169 = arith.constant 0 : index
    %361 = vector.load %arg24[%c0_168, %c0_169] : memref<16x128xf32, #tpu.memory_space<vmem>>, vector<16x128xf32>
    %362 = tpu.iota {dimensions = array<i32: 1>} : vector<16x128xi32>
    %c16_i32 = arith.constant 16 : i32
    %363 = vector.broadcast %c16_i32 : i32 to vector<16x128xi32>
    %364 = arith.cmpi slt, %362, %363 : vector<16x128xi32>
    %cst_170 = arith.constant -1.000000e+30 : f32
    %365 = vector.broadcast %cst_170 : f32 to vector<16x128xf32>
    %366 = arith.select %364, %335, %365 : vector<16x128xi1>, vector<16x128xf32>
    %cst_171 = arith.constant dense<0xFF800000> : vector<16xf32>
    %367 = vector.multi_reduction <maximumf>, %366, %cst_171 [1] : vector<16x128xf32> to vector<16xf32>
    %368 = vector.shape_cast %367 : vector<16xf32> to vector<16x1xf32>
    %369 = vector.broadcast %368 : vector<16x1xf32> to vector<16x128xf32>
    %370 = arith.subf %366, %369 : vector<16x128xf32>
    %371 = math.exp %370 : vector<16x128xf32>
    %cst_172 = arith.constant dense<0.000000e+00> : vector<16xf32>
    %372 = vector.multi_reduction <add>, %371, %cst_172 [1] : vector<16x128xf32> to vector<16xf32>
    %373 = vector.shape_cast %372 : vector<16xf32> to vector<16x1xf32>
    %374 = math.log %373 : vector<16x1xf32>
    %375 = arith.addf %368, %374 : vector<16x1xf32>
    %376 = arith.mulf %361, %335 : vector<16x128xf32>
    %cst_173 = arith.constant dense<0.000000e+00> : vector<16xf32>
    %377 = vector.multi_reduction <add>, %376, %cst_173 [1] : vector<16x128xf32> to vector<16xf32>
    %378 = vector.shape_cast %377 : vector<16xf32> to vector<16x1xf32>
    %379 = arith.subf %375, %378 : vector<16x1xf32>
    %380 = vector.shape_cast %379 : vector<16x1xf32> to vector<1x16x1xf32>
    %cst_174 = arith.constant dense<0.000000e+00> : vector<1xf32>
    %381 = vector.multi_reduction <add>, %380, %cst_174 [1, 2] : vector<1x16x1xf32> to vector<1xf32>
    %382 = vector.shape_cast %381 : vector<1xf32> to vector<1x1x1xf32>
    %383 = vector.extract %382[0, 0, 0] : f32 from vector<1x1x1xf32>
    %cst_175 = arith.constant 1.600000e+01 : f32
    %384 = arith.divf %383, %cst_175 : f32
    %385 = tpu.iota {dimensions = array<i32: 0>} : vector<8x128xi32>
    %c0_i32 = arith.constant 0 : i32
    %386 = vector.broadcast %c0_i32 : i32 to vector<8x128xi32>
    %387 = arith.cmpi eq, %385, %386 : vector<8x128xi32>
    %cst_176 = arith.constant 0.000000e+00 : f32
    %388 = vector.broadcast %360 : f32 to vector<8x128xf32>
    %389 = vector.broadcast %cst_176 : f32 to vector<8x128xf32>
    %390 = arith.select %387, %388, %389 : vector<8x128xi1>, vector<8x128xf32>
    %c1_i32 = arith.constant 1 : i32
    %391 = vector.broadcast %c1_i32 : i32 to vector<8x128xi32>
    %392 = arith.cmpi eq, %385, %391 : vector<8x128xi32>
    %cst_177 = arith.constant 0.000000e+00 : f32
    %393 = vector.broadcast %384 : f32 to vector<8x128xf32>
    %394 = vector.broadcast %cst_177 : f32 to vector<8x128xf32>
    %395 = arith.select %392, %393, %394 : vector<8x128xi1>, vector<8x128xf32>
    %396 = arith.addf %390, %395 : vector<8x128xf32>
    %c0_178 = arith.constant 0 : index
    %c0_179 = arith.constant 0 : index
    %397 = vector.load %arg27[%c0_178, %c0_179] : memref<8x128xf32, #tpu.memory_space<vmem>>, vector<8x128xf32>
    tpu.vector_store %arg27[%c0_178, %c0_179], %396 {strides = array<i32>} : memref<8x128xf32, #tpu.memory_space<vmem>>, vector<8x128xf32>,
    return
  }
}

</mosaic_0001>

<llo_original>
// kernel: classifier_forward.1
$region0: #{classifier_forward.1}
  #allocation0 [shape = 'u32[]', space=smem, size = 0x4, offset = 0x4, fixed_abs, tag = 'smem constant byte address 0x4 - core index']
  #allocation1 [shape = 'u32[144,128]{1,0:T(1,128)}', space=vmem, size = 0x12000, scoped, tag = 'internal scratch']
  %s0 = inlined_call_operand.vmem [shape: f32[2,8,128], index: 0, kind: input, shape index: {}]
  %s1 = inlined_call_operand.vmem [shape: f32[2,8], index: 1, kind: input, shape index: {}]
  %s2 = inlined_call_operand.vmem [shape: f32[16,1], index: 2, kind: input, shape index: {}]
  %s3 = inlined_call_operand.vmem [shape: f32[1,128], index: 3, kind: input, shape index: {}]
  %s4 = inlined_call_operand.vmem [shape: f32[1,128], index: 4, kind: input, shape index: {}]
  %s5 = inlined_call_operand.vmem [shape: f32[2,128,384], index: 5, kind: input, shape index: {}]
  %s6 = inlined_call_operand.vmem [shape: f32[2,1,384], index: 6, kind: input, shape index: {}]
  %s7 = inlined_call_operand.vmem [shape: f32[2,128,128], index: 7, kind: input, shape index: {}]
  %s8 = inlined_call_operand.vmem [shape: f32[2,1,128], index: 8, kind: input, shape index: {}]
  %s9 = inlined_call_operand.vmem [shape: f32[2,1,128], index: 9, kind: input, shape index: {}]
  %s10 = inlined_call_operand.vmem [shape: f32[2,1,128], index: 10, kind: input, shape index: {}]
  %s11 = inlined_call_operand.hbm [shape: f32[2,128,256], index: 11, kind: input, shape index: {}]
  %s12 = inlined_call_operand.vmem [shape: f32[2,1,256], index: 12, kind: input, shape index: {}]
  %s13 = inlined_call_operand.hbm [shape: f32[2,256,128], index: 13, kind: input, shape index: {}]
  %s14 = inlined_call_operand.vmem [shape: f32[2,1,128], index: 14, kind: input, shape index: {}]
  %s15 = inlined_call_operand.vmem [shape: f32[2,1,128], index: 15, kind: input, shape index: {}]
  %s16 = inlined_call_operand.vmem [shape: f32[2,1,128], index: 16, kind: input, shape index: {}]
  %s17 = inlined_call_operand.vmem [shape: f32[128,128], index: 17, kind: input, shape index: {}]
  %s18 = inlined_call_operand.vmem [shape: f32[1,128], index: 18, kind: input, shape index: {}]
  %s19 = inlined_call_operand.vmem [shape: f32[128,128], index: 19, kind: input, shape index: {}]
  %s20 = inlined_call_operand.vmem [shape: f32[1,128], index: 20, kind: input, shape index: {}]
  %s21 = inlined_call_operand.vmem [shape: f32[128,128], index: 21, kind: input, shape index: {}]
  %s22 = inlined_call_operand.vmem [shape: f32[1,128], index: 22, kind: input, shape index: {}]
  %s23 = inlined_call_operand.vmem [shape: f32[2,128], index: 23, kind: input, shape index: {}]
  %s24 = inlined_call_operand.vmem [shape: f32[16,128], index: 24, kind: input, shape index: {}]
  %s25 = inlined_call_operand.hbm [shape: f32[2,128], index: 25, kind: output, shape index: {0}]
  %s26 = inlined_call_operand.hbm [shape: f32[16,128], index: 26, kind: output, shape index: {1}]
  %s27 = inlined_call_operand.vmem [shape: f32[8,128], index: 27, kind: output, shape index: {2}]
  %28 = xla_tuple %s25, %s26, %s27
  %s29 = sld [smem:[#allocation0]]
  $region134: #{classifier_forward.1} parent=0
    _
  %s31 = ssub.s32 1, %s29
  %s32 = scalar_select 0, %s31, %s29
  $region1: #{classifier_forward.1} parent=0
    #allocation2 [shape = 'u8[262144]{0}', space=vmem, size = 0x40000, scoped, tag = 'input window, operand 11, single buffered']
    #allocation3 [shape = 's32[1]{0}', space=sflag, size = 0x4, scoped, tag = 'scoped memory for classifier_forward.1']
    #allocation4 [shape = 's32[1]{0}', space=sflag, size = 0x4, scoped, tag = 'scoped memory for classifier_forward.1']
    #allocation5 [shape = 'u8[262144]{0}', space=vmem, size = 0x40000, scoped, tag = 'input window, operand 13, single buffered']
    #allocation6 [shape = 's32[1]{0}', space=sflag, size = 0x4, scoped, tag = 'scoped memory for classifier_forward.1']
    #allocation7 [shape = 'u8[1024]{0}', space=vmem, size = 0x400, scoped, tag = 'output window, operand 0, single buffered']
    #allocation8 [shape = 'u8[8192]{0}', space=vmem, size = 0x2000, scoped, tag = 'output window, operand 1, single buffered']
    #allocation9 [shape = 's32[1]{0}', space=sflag, size = 0x4, scoped, tag = 'scoped memory for classifier_forward.1']
    %33 = vsyncpa [#allocation3], 0
    %34 = vsyncpa [#allocation6], 0
    %35 = vsyncpa [#allocation4], 0
    %36 = vsyncpa [#allocation9], 0
    // Predicated region
    $region2: #{classifier_forward.1} parent=1 // pred_check
      _
    $region3: #{classifier_forward.1} parent=1 // pred_check_branch
      %38 = sbr.rel (0) target = $region5
    $region4: #{classifier_forward.1} parent=1 // pred_region
      _
    $region5: #{classifier_forward.1} parent=1 // pred_fallthru
      _
    // Predicated region
    $region6: #{classifier_forward.1} parent=1 // pred_check
      _
    $region7: #{classifier_forward.1} parent=1 // pred_check_branch
      %40 = sbr.rel (0) target = $region9
    $region8: #{classifier_forward.1} parent=1 // pred_region
      _
    $region9: #{classifier_forward.1} parent=1 // pred_fallthru
      _
    // Predicated region
    $region10: #{classifier_forward.1} parent=1 // pred_check
      _
    $region11: #{classifier_forward.1} parent=1 // pred_check_branch
      %42 = sbr.rel (0) target = $region13
    $region12: #{classifier_forward.1} parent=1 // pred_region
      _
    $region13: #{classifier_forward.1} parent=1 // pred_fallthru
      _
    // Predicated region
    $region14: #{classifier_forward.1} parent=1 // pred_check
      _
    $region15: #{classifier_forward.1} parent=1 // pred_check_branch
      %44 = sbr.rel (0) target = $region17
    $region16: #{classifier_forward.1} parent=1 // pred_region
      _
    $region17: #{classifier_forward.1} parent=1 // pred_fallthru
      _
    // Predicated region
    $region18: #{classifier_forward.1} parent=1 // pred_check
      _
    $region19: #{classifier_forward.1} parent=1 // pred_check_branch
      %46 = sbr.rel (0) target = $region21
    $region20: #{classifier_forward.1} parent=1 // pred_region
      _
    $region21: #{classifier_forward.1} parent=1 // pred_fallthru
      _
    // Predicated region
    $region22: #{classifier_forward.1} parent=1 // pred_check
      _
    $region23: #{classifier_forward.1} parent=1 // pred_check_branch
      %48 = sbr.rel (0) target = $region25
    $region24: #{classifier_forward.1} parent=1 // pred_region
      _
    $region25: #{classifier_forward.1} parent=1 // pred_fallthru
      _
    // Predicated region
    $region26: #{classifier_forward.1} parent=1 // pred_check
      _
    $region27: #{classifier_forward.1} parent=1 // pred_check_branch
      %50 = sbr.rel (0) target = $region29
    $region28: #{classifier_forward.1} parent=1 // pred_region
      _
    $region29: #{classifier_forward.1} parent=1 // pred_fallthru
      _
    // Predicated region
    $region30: #{classifier_forward.1} parent=1 // pred_check
      _
    $region31: #{classifier_forward.1} parent=1 // pred_check_branch
      %52 = sbr.rel (0) target = $region33
    $region32: #{classifier_forward.1} parent=1 // pred_region
      _
    $region33: #{classifier_forward.1} parent=1 // pred_fallthru
      _
    // Predicated region
    $region34: #{classifier_forward.1} parent=1 // pred_check
      _
    $region35: #{classifier_forward.1} parent=1 // pred_check_branch
      %54 = sbr.rel (0) target = $region37
    $region36: #{classifier_forward.1} parent=1 // pred_region
      _
    $region37: #{classifier_forward.1} parent=1 // pred_fallthru
      _
    // Predicated region
    $region38: #{classifier_forward.1} parent=1 // pred_check
      _
    $region39: #{classifier_forward.1} parent=1 // pred_check_branch
      %56 = sbr.rel (0) target = $region41
    $region40: #{classifier_forward.1} parent=1 // pred_region
      _
    $region41: #{classifier_forward.1} parent=1 // pred_fallthru
      _
    // Predicated region
    $region42: #{classifier_forward.1} parent=1 // pred_check
      _
    $region43: #{classifier_forward.1} parent=1 // pred_check_branch
      %58 = sbr.rel (0) target = $region45
    $region44: #{classifier_forward.1} parent=1 // pred_region
      _
    $region45: #{classifier_forward.1} parent=1 // pred_fallthru
      _
    // Predicated region
    $region46: #{classifier_forward.1} parent=1 // pred_check
      _
    $region47: #{classifier_forward.1} parent=1 // pred_check_branch
      %60 = sbr.rel (0) target = $region49
    $region48: #{classifier_forward.1} parent=1 // pred_region
      %s62 = ssub.s32 8192, 8192
      %63 = vsyncadd [#allocation3], %s62
      %s64 = sshll.u32 [#allocation2], 4
      %s65 = int_to_ptr.vmem [resolvable:$true] %s64
      %70 = dma.hbm_to_vmem [thread:$0]  %s11, 8192, %s65, [#allocation3], 256, 256, 16
    $region49: #{classifier_forward.1} parent=1 // pred_fallthru
      _
    // Predicated region
    $region50: #{classifier_forward.1} parent=1 // pred_check
      _
    $region51: #{classifier_forward.1} parent=1 // pred_check_branch
      %72 = sbr.rel (0) target = $region53
    $region52: #{classifier_forward.1} parent=1 // pred_region
      _
    $region53: #{classifier_forward.1} parent=1 // pred_fallthru
      _
    // Predicated region
    $region54: #{classifier_forward.1} parent=1 // pred_check
      _
    $region55: #{classifier_forward.1} parent=1 // pred_check_branch
      %74 = sbr.rel (0) target = $region57
    $region56: #{classifier_forward.1} parent=1 // pred_region
      %s76 = ssub.s32 8192, 8192
      %77 = vsyncadd [#allocation6], %s76
      %s78 = sshll.u32 [#allocation5], 4
      %s79 = int_to_ptr.vmem [resolvable:$true] %s78
      %84 = dma.hbm_to_vmem [thread:$0]  %s13, 8192, %s79, [#allocation6], 128, 128, 8
    $region57: #{classifier_forward.1} parent=1 // pred_fallthru
      _
    // Predicated region
    $region58: #{classifier_forward.1} parent=1 // pred_check
      _
    $region59: #{classifier_forward.1} parent=1 // pred_check_branch
      %86 = sbr.rel (0) target = $region61
    $region60: #{classifier_forward.1} parent=1 // pred_region
      _
    $region61: #{classifier_forward.1} parent=1 // pred_fallthru
      _
    // Predicated region
    $region62: #{classifier_forward.1} parent=1 // pred_check
      _
    $region63: #{classifier_forward.1} parent=1 // pred_check_branch
      %88 = sbr.rel (0) target = $region65
    $region64: #{classifier_forward.1} parent=1 // pred_region
      _
    $region65: #{classifier_forward.1} parent=1 // pred_fallthru
      _
    // Predicated region
    $region66: #{classifier_forward.1} parent=1 // pred_check
      _
    $region67: #{classifier_forward.1} parent=1 // pred_check_branch
      %90 = sbr.rel (0) target = $region69
    $region68: #{classifier_forward.1} parent=1 // pred_region
      _
    $region69: #{classifier_forward.1} parent=1 // pred_fallthru
      _
    // Predicated region
    $region70: #{classifier_forward.1} parent=1 // pred_check
      _
    $region71: #{classifier_forward.1} parent=1 // pred_check_branch
      %92 = sbr.rel (0) target = $region73
    $region72: #{classifier_forward.1} parent=1 // pred_region
      _
    $region73: #{classifier_forward.1} parent=1 // pred_fallthru
      _
    // Predicated region
    $region74: #{classifier_forward.1} parent=1 // pred_check
      _
    $region75: #{classifier_forward.1} parent=1 // pred_check_branch
      %94 = sbr.rel (0) target = $region77
    $region76: #{classifier_forward.1} parent=1 // pred_region
      _
    $region77: #{classifier_forward.1} parent=1 // pred_fallthru
      _
    // Predicated region
    $region78: #{classifier_forward.1} parent=1 // pred_check
      _
    $region79: #{classifier_forward.1} parent=1 // pred_check_branch
      %96 = sbr.rel (0) target = $region81
    $region80: #{classifier_forward.1} parent=1 // pred_region
      _
    $region81: #{classifier_forward.1} parent=1 // pred_fallthru
      _
    // Predicated region
    $region82: #{classifier_forward.1} parent=1 // pred_check
      _
    $region83: #{classifier_forward.1} parent=1 // pred_check_branch
      %98 = sbr.rel (0) target = $region85
    $region84: #{classifier_forward.1} parent=1 // pred_region
      _
    $region85: #{classifier_forward.1} parent=1 // pred_fallthru
      _
    // Predicated region
    $region86: #{classifier_forward.1} parent=1 // pred_check
      _
    $region87: #{classifier_forward.1} parent=1 // pred_check_branch
      %100 = sbr.rel (0) target = $region89
    $region88: #{classifier_forward.1} parent=1 // pred_region
      _
    $region89: #{classifier_forward.1} parent=1 // pred_fallthru
      _
    // Predicated region
    $region90: #{classifier_forward.1} parent=1 // pred_check
      _
    $region91: #{classifier_forward.1} parent=1 // pred_check_branch
      %102 = sbr.rel (0) target = $region93
    $region92: #{classifier_forward.1} parent=1 // pred_region
      _
    $region93: #{classifier_forward.1} parent=1 // pred_fallthru
      _
    // Predicated region
    $region94: #{classifier_forward.1} parent=1 // pred_check
      _
    $region95: #{classifier_forward.1} parent=1 // pred_check_branch
      %104 = sbr.rel (0) target = $region97
    $region96: #{classifier_forward.1} parent=1 // pred_region
      _
    $region97: #{classifier_forward.1} parent=1 // pred_fallthru
      _
    // Predicated region
    $region98: #{classifier_forward.1} parent=1 // pred_check
      _
    $region99: #{classifier_forward.1} parent=1 // pred_check_branch
      %106 = sbr.rel (0) target = $region101
    $region100: #{classifier_forward.1} parent=1 // pred_region
      _
    $region101: #{classifier_forward.1} parent=1 // pred_fallthru
      _
    // Predicated region
    $region102: #{classifier_forward.1} parent=1 // pred_check
      _
    $region103: #{classifier_forward.1} parent=1 // pred_check_branch
      %108 = sbr.rel (0) target = $region105
    $region104: #{classifier_forward.1} parent=1 // pred_region
      %109 = dma.done [#allocation3], 8192
    $region105: #{classifier_forward.1} parent=1 // pred_fallthru
      _
    // Predicated region
    $region106: #{classifier_forward.1} parent=1 // pred_check
      _
    $region107: #{classifier_forward.1} parent=1 // pred_check_branch
      %111 = sbr.rel (0) target = $region109
    $region108: #{classifier_forward.1} parent=1 // pred_region
      %112 = dma.done [#allocation6], 8192
    $region109: #{classifier_forward.1} parent=1 // pred_fallthru
      _
    %v113 = vld [vmem:[%s1] sm:$0x3]
    %v114 = vld [vmem:[%s0] sm:$0xff]
    %v115 = vld [vmem:[%s0 + $0x8] sm:$0xff]
    %v116 = vld [vmem:[%s3] sm:$0x1]
    %v117 = vld [vmem:[%s4] sm:$0x1]
    %118 = vadd.xlane.f32.xlu0 %v114
    %v119 = vpop.xlane.xlu0 %118
    %120 = vadd.xlane.f32.xlu0 %v115
    %v121 = vpop.xlane.xlu0 %120
    %v122 = vrcp.pop 128.0
    %v123 = vmul.f32 %v119, %v122
    %v124 = vmul.f32 %v121, %v122
    %v125 = vsub.f32 %v114, %v123
    %v126 = vsub.f32 %v115, %v124
    %v127 = vmul.f32 %v125, %v125
    %v128 = vmul.f32 %v126, %v126
    %129 = vadd.xlane.f32.xlu0 %v127
    %v130 = vpop.xlane.xlu0 %129
    %131 = vadd.xlane.f32.xlu0 %v128
    %v132 = vpop.xlane.xlu0 %131
    %v133 = vmul.f32 %v130, %v122
    %v134 = vmul.f32 %v132, %v122
    %v135 = vadd.f32 %v133, 1e-12
    %v136 = vadd.f32 %v134, 1e-12
    %v137 = vrsqrt.pop %v135
    %v138 = vrsqrt.pop %v136
    %v139 = vmul.f32 %v125, %v137
    %v140 = vmul.f32 %v126, %v138
    %v142 = vlaneseq
    %v143 = vshrl.u32 %v142, 7
    %v144 = vsub.s32 0, %v143
    %v145 = vrot.slane %v116, %v144
    %v147 = vmul.f32 %v139, %v145
    %v148 = vmul.f32 %v140, %v145
    %v150 = vlaneseq
    %v151 = vshrl.u32 %v150, 7
    %v152 = vsub.s32 0, %v151
    %v153 = vrot.slane %v117, %v152
    %v155 = vadd.f32 %v147, %v153
    %v156 = vadd.f32 %v148, %v153
    %v157 = vld [vmem:[%s5] sm:$0xff]
    %v158 = vld [vmem:[%s5 + $0x8] sm:$0xff]
    %v159 = vld [vmem:[%s5 + $0x10] sm:$0xff]
    %v160 = vld [vmem:[%s5 + $0x18] sm:$0xff]
    %v161 = vld [vmem:[%s5 + $0x20] sm:$0xff]
    %v162 = vld [vmem:[%s5 + $0x28] sm:$0xff]
    %v163 = vld [vmem:[%s5 + $0x30] sm:$0xff]
    %v164 = vld [vmem:[%s5 + $0x38] sm:$0xff]
    %v165 = vld [vmem:[%s5 + $0x40] sm:$0xff]
    %v166 = vld [vmem:[%s5 + $0x48] sm:$0xff]
    %v167 = vld [vmem:[%s5 + $0x50] sm:$0xff]
    %v168 = vld [vmem:[%s5 + $0x58] sm:$0xff]
    %v169 = vld [vmem:[%s5 + $0x60] sm:$0xff]
    %v170 = vld [vmem:[%s5 + $0x68] sm:$0xff]
    %v171 = vld [vmem:[%s5 + $0x70] sm:$0xff]
    %v172 = vld [vmem:[%s5 + $0x78] sm:$0xff]
    %v173 = vld [vmem:[%s5 + $0x80] sm:$0xff]
    %v174 = vld [vmem:[%s5 + $0x88] sm:$0xff]
    %v175 = vld [vmem:[%s5 + $0x90] sm:$0xff]
    %v176 = vld [vmem:[%s5 + $0x98] sm:$0xff]
    %v177 = vld [vmem:[%s5 + $0xa0] sm:$0xff]
    %v178 = vld [vmem:[%s5 + $0xa8] sm:$0xff]
    %v179 = vld [vmem:[%s5 + $0xb0] sm:$0xff]
    %v180 = vld [vmem:[%s5 + $0xb8] sm:$0xff]
    %v181 = vld [vmem:[%s5 + $0xc0] sm:$0xff]
    %v182 = vld [vmem:[%s5 + $0xc8] sm:$0xff]
    %v183 = vld [vmem:[%s5 + $0xd0] sm:$0xff]
    %v184 = vld [vmem:[%s5 + $0xd8] sm:$0xff]
    %v185 = vld [vmem:[%s5 + $0xe0] sm:$0xff]
    %v186 = vld [vmem:[%s5 + $0xe8] sm:$0xff]
    %v187 = vld [vmem:[%s5 + $0xf0] sm:$0xff]
    %v188 = vld [vmem:[%s5 + $0xf8] sm:$0xff]
    %v189 = vld [vmem:[%s5 + $0x100] sm:$0xff]
    %v190 = vld [vmem:[%s5 + $0x108] sm:$0xff]
    %v191 = vld [vmem:[%s5 + $0x110] sm:$0xff]
    %v192 = vld [vmem:[%s5 + $0x118] sm:$0xff]
    %v193 = vld [vmem:[%s5 + $0x120] sm:$0xff]
    %v194 = vld [vmem:[%s5 + $0x128] sm:$0xff]
    %v195 = vld [vmem:[%s5 + $0x130] sm:$0xff]
    %v196 = vld [vmem:[%s5 + $0x138] sm:$0xff]
    %v197 = vld [vmem:[%s5 + $0x140] sm:$0xff]
    %v198 = vld [vmem:[%s5 + $0x148] sm:$0xff]
    %v199 = vld [vmem:[%s5 + $0x150] sm:$0xff]
    %v200 = vld [vmem:[%s5 + $0x158] sm:$0xff]
    %v201 = vld [vmem:[%s5 + $0x160] sm:$0xff]
    %v202 = vld [vmem:[%s5 + $0x168] sm:$0xff]
    %v203 = vld [vmem:[%s5 + $0x170] sm:$0xff]
    %v204 = vld [vmem:[%s5 + $0x178] sm:$0xff]
    %v205 = vld [vmem:[%s6] sm:$0x7]
    %v207 = vlaneseq
    %v208 = vshrl.u32 %v207, 7
    %v209 = vsub.s32 0, %v208
    %v210 = vrot.slane %v205, %v209
    %v211 = vlaneseq
    %v212 = vshrl.u32 %v211, 7
    %v213 = vsub.s32 1, %v212
    %v214 = vrot.slane %v205, %v213
    %v215 = vlaneseq
    %v216 = vshrl.u32 %v215, 7
    %v217 = vsub.s32 2, %v216
    %v218 = vrot.slane %v205, %v217
    %222 = vmatprep.subr.mxu0 %v158
    %223 = vmatpush1.msra.mxu0 %v157
    %224 = vmatprep.subr.mxu0 %v161
    %225 = vmatpush1.msra.mxu0 %v160
    %226 = vmatprep.subr.mxu0 %v164
    %227 = vmatpush1.msra.mxu0 %v163
    %228 = vmatprep.subr.mxu0 %v167
    %229 = vmatpush1.msra.mxu0 %v166
    %230 = vmatprep.subr.mxu0 %v170
    %231 = vmatpush1.msra.mxu0 %v169
    %232 = vmatprep.subr.mxu0 %v173
    %233 = vmatpush1.msra.mxu0 %v172
    %234 = vmatprep.subr.mxu0 %v176
    %235 = vmatpush1.msra.mxu0 %v175
    %236 = vmatprep.subr.mxu0 %v179
    %237 = vmatpush1.msra.mxu0 %v178
    %238 = vmatprep.subr.mxu0 %v182
    %239 = vmatpush1.msra.mxu0 %v181
    %240 = vmatprep.subr.mxu0 %v185
    %241 = vmatpush1.msra.mxu0 %v184
    %242 = vmatprep.subr.mxu0 %v188
    %243 = vmatpush1.msra.mxu0 %v187
    %244 = vmatprep.subr.mxu0 %v191
    %245 = vmatpush1.msra.mxu0 %v190
    %246 = vmatprep.subr.mxu0 %v194
    %247 = vmatpush1.msra.mxu0 %v193
    %248 = vmatprep.subr.mxu0 %v197
    %249 = vmatpush1.msra.mxu0 %v196
    %250 = vmatprep.subr.mxu0 %v200
    %251 = vmatpush1.msra.mxu0 %v199
    %252 = vmatprep.subr.mxu0 %v203
    %253 = vmatpush1.msra.mxu0 %v202
    %254 = vmatprep.subr.mxu0 0.0
    %255 = vmatpush1.msra.mxu0 0.0
    %256 = vmatprep.subr.mxu0 0.0
    %257 = vmatpush1.msra.mxu0 0.0
    %258 = vmatprep.subr.mxu0 0.0
    %259 = vmatpush1.msra.mxu0 0.0
    %260 = vmatprep.subr.mxu0 0.0
    %261 = vmatpush1.msra.mxu0 0.0
    %262 = vmatprep.subr.mxu0 0.0
    %263 = vmatpush1.msra.mxu0 0.0
    %264 = vmatprep.subr.mxu0 0.0
    %265 = vmatpush1.msra.mxu0 0.0
    %266 = vmatprep.subr.mxu0 0.0
    %267 = vmatpush1.msra.mxu0 0.0
    %268 = vmatprep.subr.mxu0 0.0
    %269 = vmatpush1.msra.mxu0 0.0
    %270 = vmatprep.subr.mxu0 0.0
    %271 = vmatpush1.msra.mxu0 0.0
    %272 = vmatprep.subr.mxu0 0.0
    %273 = vmatpush1.msra.mxu0 0.0
    %274 = vmatprep.subr.mxu0 0.0
    %275 = vmatpush1.msra.mxu0 0.0
    %276 = vmatprep.subr.mxu0 0.0
    %277 = vmatpush1.msra.mxu0 0.0
    %278 = vmatprep.subr.mxu0 0.0
    %279 = vmatpush1.msra.mxu0 0.0
    %280 = vmatprep.subr.mxu0 0.0
    %281 = vmatpush1.msra.mxu0 0.0
    %282 = vmatprep.subr.mxu0 0.0
    %283 = vmatpush1.msra.mxu0 0.0
    %284 = vmatprep.subr.mxu0 0.0
    %285 = vmatpush1.msra.mxu0 0.0
    %286 = vmatprep.mubr.f32.mxu0 0.0
    %287 = vmatmul.mubr.f32.gmra.mrb[0].mxu0 %v155
    %v288 = vpop.f32.mrb[0].mxu0
    %v289 = vadd.f32 %v210, %v288
    %v290 = vpop.f32.mrb[0].mxu0
    %v291 = vadd.f32 %v214, %v290
    %292 = vmatprep.mubr.f32.mxu0 0.0
    %293 = vmatmul.mubr.f32.gmra.mrb[0].mxu0 %v156
    %v294 = vpop.f32.mrb[0].mxu0
    %v295 = vadd.f32 %v210, %v294
    %v296 = vpop.f32.mrb[0].mxu0
    %v297 = vadd.f32 %v214, %v296
    %298 = vdwg.mxu0
    %299 = vmatprep.subr.mxu0 0.0
    %300 = vmatpush1.msra.mxu0 %v159
    %301 = vmatprep.subr.mxu0 0.0
    %302 = vmatpush1.msra.mxu0 %v162
    %303 = vmatprep.subr.mxu0 0.0
    %304 = vmatpush1.msra.mxu0 %v165
    %305 = vmatprep.subr.mxu0 0.0
    %306 = vmatpush1.msra.mxu0 %v168
    %307 = vmatprep.subr.mxu0 0.0
    %308 = vmatpush1.msra.mxu0 %v171
    %309 = vmatprep.subr.mxu0 0.0
    %310 = vmatpush1.msra.mxu0 %v174
    %311 = vmatprep.subr.mxu0 0.0
    %312 = vmatpush1.msra.mxu0 %v177
    %313 = vmatprep.subr.mxu0 0.0
    %314 = vmatpush1.msra.mxu0 %v180
    %315 = vmatprep.subr.mxu0 0.0
    %316 = vmatpush1.msra.mxu0 %v183
    %317 = vmatprep.subr.mxu0 0.0
    %318 = vmatpush1.msra.mxu0 %v186
    %319 = vmatprep.subr.mxu0 0.0
    %320 = vmatpush1.msra.mxu0 %v189
    %321 = vmatprep.subr.mxu0 0.0
    %322 = vmatpush1.msra.mxu0 %v192
    %323 = vmatprep.subr.mxu0 0.0
    %324 = vmatpush1.msra.mxu0 %v195
    %325 = vmatprep.subr.mxu0 0.0
    %326 = vmatpush1.msra.mxu0 %v198
    %327 = vmatprep.subr.mxu0 0.0
    %328 = vmatpush1.msra.mxu0 %v201
    %329 = vmatprep.subr.mxu0 0.0
    %330 = vmatpush1.msra.mxu0 %v204
    %331 = vmatprep.subr.mxu0 0.0
    %332 = vmatpush1.msra.mxu0 0.0
    %333 = vmatprep.subr.mxu0 0.0
    %334 = vmatpush1.msra.mxu0 0.0
    %335 = vmatprep.subr.mxu0 0.0
    %336 = vmatpush1.msra.mxu0 0.0
    %337 = vmatprep.subr.mxu0 0.0
    %338 = vmatpush1.msra.mxu0 0.0
    %339 = vmatprep.subr.mxu0 0.0
    %340 = vmatpush1.msra.mxu0 0.0
    %341 = vmatprep.subr.mxu0 0.0
    %342 = vmatpush1.msra.mxu0 0.0
    %343 = vmatprep.subr.mxu0 0.0
    %344 = vmatpush1.msra.mxu0 0.0
    %345 = vmatprep.subr.mxu0 0.0
    %346 = vmatpush1.msra.mxu0 0.0
    %347 = vmatprep.subr.mxu0 0.0
    %348 = vmatpush1.msra.mxu0 0.0
    %349 = vmatprep.subr.mxu0 0.0
    %350 = vmatpush1.msra.mxu0 0.0
    %351 = vmatprep.subr.mxu0 0.0
    %352 = vmatpush1.msra.mxu0 0.0
    %353 = vmatprep.subr.mxu0 0.0
    %354 = vmatpush1.msra.mxu0 0.0
    %355 = vmatprep.subr.mxu0 0.0
    %356 = vmatpush1.msra.mxu0 0.0
    %357 = vmatprep.subr.mxu0 0.0
    %358 = vmatpush1.msra.mxu0 0.0
    %359 = vmatprep.subr.mxu0 0.0
    %360 = vmatpush1.msra.mxu0 0.0
    %361 = vmatprep.subr.mxu0 0.0
    %362 = vmatpush1.msra.mxu0 0.0
    %363 = vmatprep.mubr.f32.mxu0 0.0
    %364 = vmatmul.mubr.f32.gmra.mrb[0].mxu0 %v155
    %v365 = vpop.f32.mrb[0].mxu0
    %v366 = vadd.f32 %v218, %v365
    %v367 = vpop.f32.mrb[0].mxu0
    %368 = vmatprep.mubr.f32.mxu0 0.0
    %369 = vmatmul.mubr.f32.gmra.mrb[0].mxu0 %v156
    %v370 = vpop.f32.mrb[0].mxu0
    %v371 = vadd.f32 %v218, %v370
    %v372 = vpop.f32.mrb[0].mxu0
    %373 = vdwg.mxu0
    %vm374 = vcmask 523264
    %v376 = vsel %vm374, %v289, 0
    %v379 = vsel %vm374, %v291, 0
    %381 = vmatprep.subr.mxu0 0.0
    %382 = vmatpush1.xpose.msra.mxu0 %v379
    %383 = vmatprep.subr.mxu0 0.0
    %384 = vmatpush1.xpose.msra.mxu0 0.0
    %385 = vmatprep.subr.mxu0 0.0
    %386 = vmatpush1.xpose.msra.mxu0 0.0
    %387 = vmatprep.subr.mxu0 0.0
    %388 = vmatpush1.xpose.msra.mxu0 0.0
    %389 = vmatprep.subr.mxu0 0.0
    %390 = vmatpush1.xpose.msra.mxu0 0.0
    %391 = vmatprep.subr.mxu0 0.0
    %392 = vmatpush1.xpose.msra.mxu0 0.0
    %393 = vmatprep.subr.mxu0 0.0
    %394 = vmatpush1.xpose.msra.mxu0 0.0
    %395 = vmatprep.subr.mxu0 0.0
    %396 = vmatpush1.xpose.msra.mxu0 0.0
    %397 = vmatprep.subr.mxu0 0.0
    %398 = vmatpush1.xpose.msra.mxu0 0.0
    %399 = vmatprep.subr.mxu0 0.0
    %400 = vmatpush1.xpose.msra.mxu0 0.0
    %401 = vmatprep.subr.mxu0 0.0
    %402 = vmatpush1.xpose.msra.mxu0 0.0
    %403 = vmatprep.subr.mxu0 0.0
    %404 = vmatpush1.xpose.msra.mxu0 0.0
    %405 = vmatprep.subr.mxu0 0.0
    %406 = vmatpush1.xpose.msra.mxu0 0.0
    %407 = vmatprep.subr.mxu0 0.0
    %408 = vmatpush1.xpose.msra.mxu0 0.0
    %409 = vmatprep.subr.mxu0 0.0
    %410 = vmatpush1.xpose.msra.mxu0 0.0
    %411 = vmatprep.subr.mxu0 0.0
    %412 = vmatpush1.xpose.msra.mxu0 0.0
    %413 = vmatprep.subr.mxu0 0.0
    %414 = vmatpush1.xpose.msra.mxu0 0.0
    %415 = vmatprep.subr.mxu0 0.0
    %416 = vmatpush1.xpose.msra.mxu0 0.0
    %417 = vmatprep.subr.mxu0 0.0
    %418 = vmatpush1.xpose.msra.mxu0 0.0
    %419 = vmatprep.subr.mxu0 0.0
    %420 = vmatpush1.xpose.msra.mxu0 0.0
    %421 = vmatprep.subr.mxu0 0.0
    %422 = vmatpush1.xpose.msra.mxu0 0.0
    %423 = vmatprep.subr.mxu0 0.0
    %424 = vmatpush1.xpose.msra.mxu0 0.0
    %425 = vmatprep.subr.mxu0 0.0
    %426 = vmatpush1.xpose.msra.mxu0 0.0
    %427 = vmatprep.subr.mxu0 0.0
    %428 = vmatpush1.xpose.msra.mxu0 0.0
    %429 = vmatprep.subr.mxu0 0.0
    %430 = vmatpush1.xpose.msra.mxu0 0.0
    %431 = vmatprep.subr.mxu0 0.0
    %432 = vmatpush1.xpose.msra.mxu0 0.0
    %433 = vmatprep.subr.mxu0 0.0
    %434 = vmatpush1.xpose.msra.mxu0 0.0
    %435 = vmatprep.subr.mxu0 0.0
    %436 = vmatpush1.xpose.msra.mxu0 0.0
    %437 = vmatprep.subr.mxu0 0.0
    %438 = vmatpush1.xpose.msra.mxu0 0.0
    %439 = vmatprep.subr.mxu0 0.0
    %440 = vmatpush1.xpose.msra.mxu0 0.0
    %441 = vmatprep.subr.mxu0 0.0
    %442 = vmatpush1.xpose.msra.mxu0 0.0
    %443 = vmatprep.subr.mxu0 0.0
    %444 = vmatpush1.xpose.msra.mxu0 0.0
    %445 = vmatprep.mubr.f32.mxu0 0.0
    %446 = vmatmul.mubr.f32.gmra.mrb[0].mxu0 %v376
    %v447 = vpop.f32.mrb[0].mxu0
    %v448 = vadd.f32 0.0, %v447
    %v449 = vpop.f32.mrb[0].mxu0
    %450 = vdwg.mxu0
    %v452 = vsel %vm374, %v295, 0
    %v455 = vsel %vm374, %v297, 0
    %457 = vmatprep.subr.mxu0 0.0
    %458 = vmatpush1.xpose.msra.mxu0 %v455
    %459 = vmatprep.subr.mxu0 0.0
    %460 = vmatpush1.xpose.msra.mxu0 0.0
    %461 = vmatprep.subr.mxu0 0.0
    %462 = vmatpush1.xpose.msra.mxu0 0.0
    %463 = vmatprep.subr.mxu0 0.0
    %464 = vmatpush1.xpose.msra.mxu0 0.0
    %465 = vmatprep.subr.mxu0 0.0
    %466 = vmatpush1.xpose.msra.mxu0 0.0
    %467 = vmatprep.subr.mxu0 0.0
    %468 = vmatpush1.xpose.msra.mxu0 0.0
    %469 = vmatprep.subr.mxu0 0.0
    %470 = vmatpush1.xpose.msra.mxu0 0.0
    %471 = vmatprep.subr.mxu0 0.0
    %472 = vmatpush1.xpose.msra.mxu0 0.0
    %473 = vmatprep.subr.mxu0 0.0
    %474 = vmatpush1.xpose.msra.mxu0 0.0
    %475 = vmatprep.subr.mxu0 0.0
    %476 = vmatpush1.xpose.msra.mxu0 0.0
    %477 = vmatprep.subr.mxu0 0.0
    %478 = vmatpush1.xpose.msra.mxu0 0.0
    %479 = vmatprep.subr.mxu0 0.0
    %480 = vmatpush1.xpose.msra.mxu0 0.0
    %481 = vmatprep.subr.mxu0 0.0
    %482 = vmatpush1.xpose.msra.mxu0 0.0
    %483 = vmatprep.subr.mxu0 0.0
    %484 = vmatpush1.xpose.msra.mxu0 0.0
    %485 = vmatprep.subr.mxu0 0.0
    %486 = vmatpush1.xpose.msra.mxu0 0.0
    %487 = vmatprep.subr.mxu0 0.0
    %488 = vmatpush1.xpose.msra.mxu0 0.0
    %489 = vmatprep.subr.mxu0 0.0
    %490 = vmatpush1.xpose.msra.mxu0 0.0
    %491 = vmatprep.subr.mxu0 0.0
    %492 = vmatpush1.xpose.msra.mxu0 0.0
    %493 = vmatprep.subr.mxu0 0.0
    %494 = vmatpush1.xpose.msra.mxu0 0.0
    %495 = vmatprep.subr.mxu0 0.0
    %496 = vmatpush1.xpose.msra.mxu0 0.0
    %497 = vmatprep.subr.mxu0 0.0
    %498 = vmatpush1.xpose.msra.mxu0 0.0
    %499 = vmatprep.subr.mxu0 0.0
    %500 = vmatpush1.xpose.msra.mxu0 0.0
    %501 = vmatprep.subr.mxu0 0.0
    %502 = vmatpush1.xpose.msra.mxu0 0.0
    %503 = vmatprep.subr.mxu0 0.0
    %504 = vmatpush1.xpose.msra.mxu0 0.0
    %505 = vmatprep.subr.mxu0 0.0
    %506 = vmatpush1.xpose.msra.mxu0 0.0
    %507 = vmatprep.subr.mxu0 0.0
    %508 = vmatpush1.xpose.msra.mxu0 0.0
    %509 = vmatprep.subr.mxu0 0.0
    %510 = vmatpush1.xpose.msra.mxu0 0.0
    %511 = vmatprep.subr.mxu0 0.0
    %512 = vmatpush1.xpose.msra.mxu0 0.0
    %513 = vmatprep.subr.mxu0 0.0
    %514 = vmatpush1.xpose.msra.mxu0 0.0
    %515 = vmatprep.subr.mxu0 0.0
    %516 = vmatpush1.xpose.msra.mxu0 0.0
    %517 = vmatprep.subr.mxu0 0.0
    %518 = vmatpush1.xpose.msra.mxu0 0.0
    %519 = vmatprep.subr.mxu0 0.0
    %520 = vmatpush1.xpose.msra.mxu0 0.0
    %521 = vmatprep.mubr.f32.mxu0 0.0
    %522 = vmatmul.mubr.f32.gmra.mrb[0].mxu0 %v452
    %v523 = vpop.f32.mrb[0].mxu0
    %v524 = vadd.f32 0.0, %v523
    %v525 = vpop.f32.mrb[0].mxu0
    %526 = vdwg.mxu0
    %v527 = vmul.f32 %v448, 0.125
    %v528 = vmul.f32 %v524, 0.125
    %v531 = vunpack.c.l.s4 1966171168
    %v532 = vunpack.c.0.s8 %v531
    %v533 = vlaneseq
    %v534 = vshrl.u32 %v533, 7
    %v535 = vsub.s32 %v532, %v534
    %v536 = vrot.slane %v113, %v535
    %v537 = vcombine.high %v536, %v536
    %v539 = vunpack.c.l.s4 1966171168
    %v540 = vunpack.c.0.s8 %v539
    %v541 = vlaneseq
    %v542 = vshrl.u32 %v541, 7
    %v543 = vsub.s32 %v540, %v542
    %v544 = vrot.slane %v536, %v543
    %v546 = vunpack.c.l.s4 1966171168
    %v547 = vunpack.c.0.s8 %v546
    %v548 = vlaneseq
    %v549 = vshrl.u32 %v548, 7
    %v550 = vsub.s32 %v547, %v549
    %v551 = vrot.slane %v537, %v550
    %v552 = vlaneseq
    %v553 = vshrl.u32 %v552, 7
    %v554 = vsub.s32 0, %v553
    %v555 = vrot.slane %v544, %v554
    %v556 = vlaneseq
    %v557 = vshrl.u32 %v556, 7
    %v558 = vsub.s32 0, %v557
    %v559 = vrot.slane %v551, %v558
    %v562 = vadd.f32 %v527, %v555
    %v563 = vadd.f32 %v528, %v559
    %vm564 = vcmask 64512
    %v565 = vsel %vm564, %v562, -inf
    %566 = vmax.xlane.f32.xlu0 %v565
    %v567 = vpop.xlane.xlu0 %566
    %v568 = vsel %vm564, %v563, -inf
    %569 = vmax.xlane.f32.xlu0 %v568
    %v570 = vpop.xlane.xlu0 %569
    %v571 = vsub.f32 %v562, %v567
    %v572 = vsub.f32 %v563, %v570
    %v573 = vmul.f32 %v571, 1.442695
    %v574 = vpow.pop %v573
    %v575 = vmul.f32 %v572, 1.442695
    %v576 = vpow.pop %v575
    %v577 = vsel %vm564, %v574, 0.0
    %578 = vadd.xlane.f32.xlu0 %v577
    %v579 = vpop.xlane.xlu0 %578
    %v580 = vsel %vm564, %v576, 0.0
    %581 = vadd.xlane.f32.xlu0 %v580
    %v582 = vpop.xlane.xlu0 %581
    %v583 = vrcp.pop %v579
    %v584 = vrcp.pop %v582
    %v585 = vmul.f32 %v574, %v583
    %v586 = vmul.f32 %v576, %v584
    %v588 = vsel %vm564, %v585, 0
    %590 = vmatprep.subr.mxu0 0.0
    %591 = vmatpush1.msra.mxu0 %v366
    %592 = vmatprep.subr.mxu0 0.0
    %593 = vmatpush1.msra.mxu0 0.0
    %594 = vmatprep.subr.mxu0 0.0
    %595 = vmatpush1.msra.mxu0 0.0
    %596 = vmatprep.subr.mxu0 0.0
    %597 = vmatpush1.msra.mxu0 0.0
    %598 = vmatprep.subr.mxu0 0.0
    %599 = vmatpush1.msra.mxu0 0.0
    %600 = vmatprep.subr.mxu0 0.0
    %601 = vmatpush1.msra.mxu0 0.0
    %602 = vmatprep.subr.mxu0 0.0
    %603 = vmatpush1.msra.mxu0 0.0
    %604 = vmatprep.subr.mxu0 0.0
    %605 = vmatpush1.msra.mxu0 0.0
    %606 = vmatprep.subr.mxu0 0.0
    %607 = vmatpush1.msra.mxu0 0.0
    %608 = vmatprep.subr.mxu0 0.0
    %609 = vmatpush1.msra.mxu0 0.0
    %610 = vmatprep.subr.mxu0 0.0
    %611 = vmatpush1.msra.mxu0 0.0
    %612 = vmatprep.subr.mxu0 0.0
    %613 = vmatpush1.msra.mxu0 0.0
    %614 = vmatprep.subr.mxu0 0.0
    %615 = vmatpush1.msra.mxu0 0.0
    %616 = vmatprep.subr.mxu0 0.0
    %617 = vmatpush1.msra.mxu0 0.0
    %618 = vmatprep.subr.mxu0 0.0
    %619 = vmatpush1.msra.mxu0 0.0
    %620 = vmatprep.subr.mxu0 0.0
    %621 = vmatpush1.msra.mxu0 0.0
    %622 = vmatprep.subr.mxu0 0.0
    %623 = vmatpush1.msra.mxu0 0.0
    %624 = vmatprep.subr.mxu0 0.0
    %625 = vmatpush1.msra.mxu0 0.0
    %626 = vmatprep.subr.mxu0 0.0
    %627 = vmatpush1.msra.mxu0 0.0
    %628 = vmatprep.subr.mxu0 0.0
    %629 = vmatpush1.msra.mxu0 0.0
    %630 = vmatprep.subr.mxu0 0.0
    %631 = vmatpush1.msra.mxu0 0.0
    %632 = vmatprep.subr.mxu0 0.0
    %633 = vmatpush1.msra.mxu0 0.0
    %634 = vmatprep.subr.mxu0 0.0
    %635 = vmatpush1.msra.mxu0 0.0
    %636 = vmatprep.subr.mxu0 0.0
    %637 = vmatpush1.msra.mxu0 0.0
    %638 = vmatprep.subr.mxu0 0.0
    %639 = vmatpush1.msra.mxu0 0.0
    %640 = vmatprep.subr.mxu0 0.0
    %641 = vmatpush1.msra.mxu0 0.0
    %642 = vmatprep.subr.mxu0 0.0
    %643 = vmatpush1.msra.mxu0 0.0
    %644 = vmatprep.subr.mxu0 0.0
    %645 = vmatpush1.msra.mxu0 0.0
    %646 = vmatprep.subr.mxu0 0.0
    %647 = vmatpush1.msra.mxu0 0.0
    %648 = vmatprep.subr.mxu0 0.0
    %649 = vmatpush1.msra.mxu0 0.0
    %650 = vmatprep.subr.mxu0 0.0
    %651 = vmatpush1.msra.mxu0 0.0
    %652 = vmatprep.subr.mxu0 0.0
    %653 = vmatpush1.msra.mxu0 0.0
    %654 = vmatprep.mubr.f32.mxu0 0.0
    %655 = vmatmul.mubr.f32.gmra.mrb[0].mxu0 %v588
    %v656 = vpop.f32.mrb[0].mxu0
    %v657 = vadd.f32 0.0, %v656
    %v658 = vpop.f32.mrb[0].mxu0
    %659 = vdwg.mxu0
    %v661 = vsel %vm564, %v586, 0
    %663 = vmatprep.subr.mxu0 0.0
    %664 = vmatpush1.msra.mxu0 %v371
    %665 = vmatprep.subr.mxu0 0.0
    %666 = vmatpush1.msra.mxu0 0.0
    %667 = vmatprep.subr.mxu0 0.0
    %668 = vmatpush1.msra.mxu0 0.0
    %669 = vmatprep.subr.mxu0 0.0
    %670 = vmatpush1.msra.mxu0 0.0
    %671 = vmatprep.subr.mxu0 0.0
    %672 = vmatpush1.msra.mxu0 0.0
    %673 = vmatprep.subr.mxu0 0.0
    %674 = vmatpush1.msra.mxu0 0.0
    %675 = vmatprep.subr.mxu0 0.0
    %676 = vmatpush1.msra.mxu0 0.0
    %677 = vmatprep.subr.mxu0 0.0
    %678 = vmatpush1.msra.mxu0 0.0
    %679 = vmatprep.subr.mxu0 0.0
    %680 = vmatpush1.msra.mxu0 0.0
    %681 = vmatprep.subr.mxu0 0.0
    %682 = vmatpush1.msra.mxu0 0.0
    %683 = vmatprep.subr.mxu0 0.0
    %684 = vmatpush1.msra.mxu0 0.0
    %685 = vmatprep.subr.mxu0 0.0
    %686 = vmatpush1.msra.mxu0 0.0
    %687 = vmatprep.subr.mxu0 0.0
    %688 = vmatpush1.msra.mxu0 0.0
    %689 = vmatprep.subr.mxu0 0.0
    %690 = vmatpush1.msra.mxu0 0.0
    %691 = vmatprep.subr.mxu0 0.0
    %692 = vmatpush1.msra.mxu0 0.0
    %693 = vmatprep.subr.mxu0 0.0
    %694 = vmatpush1.msra.mxu0 0.0
    %695 = vmatprep.subr.mxu0 0.0
    %696 = vmatpush1.msra.mxu0 0.0
    %697 = vmatprep.subr.mxu0 0.0
    %698 = vmatpush1.msra.mxu0 0.0
    %699 = vmatprep.subr.mxu0 0.0
    %700 = vmatpush1.msra.mxu0 0.0
    %701 = vmatprep.subr.mxu0 0.0
    %702 = vmatpush1.msra.mxu0 0.0
    %703 = vmatprep.subr.mxu0 0.0
    %704 = vmatpush1.msra.mxu0 0.0
    %705 = vmatprep.subr.mxu0 0.0
    %706 = vmatpush1.msra.mxu0 0.0
    %707 = vmatprep.subr.mxu0 0.0
    %708 = vmatpush1.msra.mxu0 0.0
    %709 = vmatprep.subr.mxu0 0.0
    %710 = vmatpush1.msra.mxu0 0.0
    %711 = vmatprep.subr.mxu0 0.0
    %712 = vmatpush1.msra.mxu0 0.0
    %713 = vmatprep.subr.mxu0 0.0
    %714 = vmatpush1.msra.mxu0 0.0
    %715 = vmatprep.subr.mxu0 0.0
    %716 = vmatpush1.msra.mxu0 0.0
    %717 = vmatprep.subr.mxu0 0.0
    %718 = vmatpush1.msra.mxu0 0.0
    %719 = vmatprep.subr.mxu0 0.0
    %720 = vmatpush1.msra.mxu0 0.0
    %721 = vmatprep.subr.mxu0 0.0
    %722 = vmatpush1.msra.mxu0 0.0
    %723 = vmatprep.subr.mxu0 0.0
    %724 = vmatpush1.msra.mxu0 0.0
    %725 = vmatprep.subr.mxu0 0.0
    %726 = vmatpush1.msra.mxu0 0.0
    %727 = vmatprep.mubr.f32.mxu0 0.0
    %728 = vmatmul.mubr.f32.gmra.mrb[0].mxu0 %v661
    %v729 = vpop.f32.mrb[0].mxu0
    %v730 = vadd.f32 0.0, %v729
    %v731 = vpop.f32.mrb[0].mxu0
    %732 = vdwg.mxu0
    %733 = vrot.lane.b32.xlu0 %v289, 64
    %v734 = vpop.permute.xlu0 %733
    %735 = vrot.lane.b32.xlu0 %v291, 64
    %v736 = vpop.permute.xlu0 %735
    %v737 = vsel %vm374, %v734, 0
    %v739 = vsel %vm374, %v736, 0
    %741 = vmatprep.subr.mxu0 0.0
    %742 = vmatpush1.xpose.msra.mxu0 %v739
    %743 = vmatprep.subr.mxu0 0.0
    %744 = vmatpush1.xpose.msra.mxu0 0.0
    %745 = vmatprep.subr.mxu0 0.0
    %746 = vmatpush1.xpose.msra.mxu0 0.0
    %747 = vmatprep.subr.mxu0 0.0
    %748 = vmatpush1.xpose.msra.mxu0 0.0
    %749 = vmatprep.subr.mxu0 0.0
    %750 = vmatpush1.xpose.msra.mxu0 0.0
    %751 = vmatprep.subr.mxu0 0.0
    %752 = vmatpush1.xpose.msra.mxu0 0.0
    %753 = vmatprep.subr.mxu0 0.0
    %754 = vmatpush1.xpose.msra.mxu0 0.0
    %755 = vmatprep.subr.mxu0 0.0
    %756 = vmatpush1.xpose.msra.mxu0 0.0
    %757 = vmatprep.subr.mxu0 0.0
    %758 = vmatpush1.xpose.msra.mxu0 0.0
    %759 = vmatprep.subr.mxu0 0.0
    %760 = vmatpush1.xpose.msra.mxu0 0.0
    %761 = vmatprep.subr.mxu0 0.0
    %762 = vmatpush1.xpose.msra.mxu0 0.0
    %763 = vmatprep.subr.mxu0 0.0
    %764 = vmatpush1.xpose.msra.mxu0 0.0
    %765 = vmatprep.subr.mxu0 0.0
    %766 = vmatpush1.xpose.msra.mxu0 0.0
    %767 = vmatprep.subr.mxu0 0.0
    %768 = vmatpush1.xpose.msra.mxu0 0.0
    %769 = vmatprep.subr.mxu0 0.0
    %770 = vmatpush1.xpose.msra.mxu0 0.0
    %771 = vmatprep.subr.mxu0 0.0
    %772 = vmatpush1.xpose.msra.mxu0 0.0
    %773 = vmatprep.subr.mxu0 0.0
    %774 = vmatpush1.xpose.msra.mxu0 0.0
    %775 = vmatprep.subr.mxu0 0.0
    %776 = vmatpush1.xpose.msra.mxu0 0.0
    %777 = vmatprep.subr.mxu0 0.0
    %778 = vmatpush1.xpose.msra.mxu0 0.0
    %779 = vmatprep.subr.mxu0 0.0
    %780 = vmatpush1.xpose.msra.mxu0 0.0
    %781 = vmatprep.subr.mxu0 0.0
    %782 = vmatpush1.xpose.msra.mxu0 0.0
    %783 = vmatprep.subr.mxu0 0.0
    %784 = vmatpush1.xpose.msra.mxu0 0.0
    %785 = vmatprep.subr.mxu0 0.0
    %786 = vmatpush1.xpose.msra.mxu0 0.0
    %787 = vmatprep.subr.mxu0 0.0
    %788 = vmatpush1.xpose.msra.mxu0 0.0
    %789 = vmatprep.subr.mxu0 0.0
    %790 = vmatpush1.xpose.msra.mxu0 0.0
    %791 = vmatprep.subr.mxu0 0.0
    %792 = vmatpush1.xpose.msra.mxu0 0.0
    %793 = vmatprep.subr.mxu0 0.0
    %794 = vmatpush1.xpose.msra.mxu0 0.0
    %795 = vmatprep.subr.mxu0 0.0
    %796 = vmatpush1.xpose.msra.mxu0 0.0
    %797 = vmatprep.subr.mxu0 0.0
    %798 = vmatpush1.xpose.msra.mxu0 0.0
    %799 = vmatprep.subr.mxu0 0.0
    %800 = vmatpush1.xpose.msra.mxu0 0.0
    %801 = vmatprep.subr.mxu0 0.0
    %802 = vmatpush1.xpose.msra.mxu0 0.0
    %803 = vmatprep.subr.mxu0 0.0
    %804 = vmatpush1.xpose.msra.mxu0 0.0
    %805 = vmatprep.mubr.f32.mxu0 0.0
    %806 = vmatmul.mubr.f32.gmra.mrb[0].mxu0 %v737
    %v807 = vpop.f32.mrb[0].mxu0
    %v808 = vadd.f32 0.0, %v807
    %v809 = vpop.f32.mrb[0].mxu0
    %810 = vdwg.mxu0
    %811 = vrot.lane.b32.xlu0 %v295, 64
    %v812 = vpop.permute.xlu0 %811
    %813 = vrot.lane.b32.xlu0 %v297, 64
    %v814 = vpop.permute.xlu0 %813
    %v815 = vsel %vm374, %v812, 0
    %v817 = vsel %vm374, %v814, 0
    %819 = vmatprep.subr.mxu0 0.0
    %820 = vmatpush1.xpose.msra.mxu0 %v817
    %821 = vmatprep.subr.mxu0 0.0
    %822 = vmatpush1.xpose.msra.mxu0 0.0
    %823 = vmatprep.subr.mxu0 0.0
    %824 = vmatpush1.xpose.msra.mxu0 0.0
    %825 = vmatprep.subr.mxu0 0.0
    %826 = vmatpush1.xpose.msra.mxu0 0.0
    %827 = vmatprep.subr.mxu0 0.0
    %828 = vmatpush1.xpose.msra.mxu0 0.0
    %829 = vmatprep.subr.mxu0 0.0
    %830 = vmatpush1.xpose.msra.mxu0 0.0
    %831 = vmatprep.subr.mxu0 0.0
    %832 = vmatpush1.xpose.msra.mxu0 0.0
    %833 = vmatprep.subr.mxu0 0.0
    %834 = vmatpush1.xpose.msra.mxu0 0.0
    %835 = vmatprep.subr.mxu0 0.0
    %836 = vmatpush1.xpose.msra.mxu0 0.0
    %837 = vmatprep.subr.mxu0 0.0
    %838 = vmatpush1.xpose.msra.mxu0 0.0
    %839 = vmatprep.subr.mxu0 0.0
    %840 = vmatpush1.xpose.msra.mxu0 0.0
    %841 = vmatprep.subr.mxu0 0.0
    %842 = vmatpush1.xpose.msra.mxu0 0.0
    %843 = vmatprep.subr.mxu0 0.0
    %844 = vmatpush1.xpose.msra.mxu0 0.0
    %845 = vmatprep.subr.mxu0 0.0
    %846 = vmatpush1.xpose.msra.mxu0 0.0
    %847 = vmatprep.subr.mxu0 0.0
    %848 = vmatpush1.xpose.msra.mxu0 0.0
    %849 = vmatprep.subr.mxu0 0.0
    %850 = vmatpush1.xpose.msra.mxu0 0.0
    %851 = vmatprep.subr.mxu0 0.0
    %852 = vmatpush1.xpose.msra.mxu0 0.0
    %853 = vmatprep.subr.mxu0 0.0
    %854 = vmatpush1.xpose.msra.mxu0 0.0
    %855 = vmatprep.subr.mxu0 0.0
    %856 = vmatpush1.xpose.msra.mxu0 0.0
    %857 = vmatprep.subr.mxu0 0.0
    %858 = vmatpush1.xpose.msra.mxu0 0.0
    %859 = vmatprep.subr.mxu0 0.0
    %860 = vmatpush1.xpose.msra.mxu0 0.0
    %861 = vmatprep.subr.mxu0 0.0
    %862 = vmatpush1.xpose.msra.mxu0 0.0
    %863 = vmatprep.subr.mxu0 0.0
    %864 = vmatpush1.xpose.msra.mxu0 0.0
    %865 = vmatprep.subr.mxu0 0.0
    %866 = vmatpush1.xpose.msra.mxu0 0.0
    %867 = vmatprep.subr.mxu0 0.0
    %868 = vmatpush1.xpose.msra.mxu0 0.0
    %869 = vmatprep.subr.mxu0 0.0
    %870 = vmatpush1.xpose.msra.mxu0 0.0
    %871 = vmatprep.subr.mxu0 0.0
    %872 = vmatpush1.xpose.msra.mxu0 0.0
    %873 = vmatprep.subr.mxu0 0.0
    %874 = vmatpush1.xpose.msra.mxu0 0.0
    %875 = vmatprep.subr.mxu0 0.0
    %876 = vmatpush1.xpose.msra.mxu0 0.0
    %877 = vmatprep.subr.mxu0 0.0
    %878 = vmatpush1.xpose.msra.mxu0 0.0
    %879 = vmatprep.subr.mxu0 0.0
    %880 = vmatpush1.xpose.msra.mxu0 0.0
    %881 = vmatprep.subr.mxu0 0.0
    %882 = vmatpush1.xpose.msra.mxu0 0.0
    %883 = vmatprep.mubr.f32.mxu0 0.0
    %884 = vmatmul.mubr.f32.gmra.mrb[0].mxu0 %v815
    %v885 = vpop.f32.mrb[0].mxu0
    %v886 = vadd.f32 0.0, %v885
    %v887 = vpop.f32.mrb[0].mxu0
    %888 = vdwg.mxu0
    %v889 = vmul.f32 %v808, 0.125
    %v890 = vmul.f32 %v886, 0.125
    %v891 = vadd.f32 %v889, %v555
    %v892 = vadd.f32 %v890, %v559
    %v893 = vsel %vm564, %v891, -inf
    %894 = vmax.xlane.f32.xlu0 %v893
    %v895 = vpop.xlane.xlu0 %894
    %v896 = vsel %vm564, %v892, -inf
    %897 = vmax.xlane.f32.xlu0 %v896
    %v898 = vpop.xlane.xlu0 %897
    %v899 = vsub.f32 %v891, %v895
    %v900 = vsub.f32 %v892, %v898
    %v901 = vmul.f32 %v899, 1.442695
    %v902 = vpow.pop %v901
    %v903 = vmul.f32 %v900, 1.442695
    %v904 = vpow.pop %v903
    %v905 = vsel %vm564, %v902, 0.0
    %906 = vadd.xlane.f32.xlu0 %v905
    %v907 = vpop.xlane.xlu0 %906
    %v908 = vsel %vm564, %v904, 0.0
    %909 = vadd.xlane.f32.xlu0 %v908
    %v910 = vpop.xlane.xlu0 %909
    %v911 = vrcp.pop %v907
    %v912 = vrcp.pop %v910
    %v913 = vmul.f32 %v902, %v911
    %v914 = vmul.f32 %v904, %v912
    %916 = vrot.lane.b32.xlu0 %v366, 64
    %v917 = vpop.permute.xlu0 %916
    %v920 = vsel %vm564, %v913, 0
    %922 = vmatprep.subr.mxu0 0.0
    %923 = vmatpush1.msra.mxu0 %v917
    %924 = vmatprep.subr.mxu0 0.0
    %925 = vmatpush1.msra.mxu0 0.0
    %926 = vmatprep.subr.mxu0 0.0
    %927 = vmatpush1.msra.mxu0 0.0
    %928 = vmatprep.subr.mxu0 0.0
    %929 = vmatpush1.msra.mxu0 0.0
    %930 = vmatprep.subr.mxu0 0.0
    %931 = vmatpush1.msra.mxu0 0.0
    %932 = vmatprep.subr.mxu0 0.0
    %933 = vmatpush1.msra.mxu0 0.0
    %934 = vmatprep.subr.mxu0 0.0
    %935 = vmatpush1.msra.mxu0 0.0
    %936 = vmatprep.subr.mxu0 0.0
    %937 = vmatpush1.msra.mxu0 0.0
    %938 = vmatprep.subr.mxu0 0.0
    %939 = vmatpush1.msra.mxu0 0.0
    %940 = vmatprep.subr.mxu0 0.0
    %941 = vmatpush1.msra.mxu0 0.0
    %942 = vmatprep.subr.mxu0 0.0
    %943 = vmatpush1.msra.mxu0 0.0
    %944 = vmatprep.subr.mxu0 0.0
    %945 = vmatpush1.msra.mxu0 0.0
    %946 = vmatprep.subr.mxu0 0.0
    %947 = vmatpush1.msra.mxu0 0.0
    %948 = vmatprep.subr.mxu0 0.0
    %949 = vmatpush1.msra.mxu0 0.0
    %950 = vmatprep.subr.mxu0 0.0
    %951 = vmatpush1.msra.mxu0 0.0
    %952 = vmatprep.subr.mxu0 0.0
    %953 = vmatpush1.msra.mxu0 0.0
    %954 = vmatprep.subr.mxu0 0.0
    %955 = vmatpush1.msra.mxu0 0.0
    %956 = vmatprep.subr.mxu0 0.0
    %957 = vmatpush1.msra.mxu0 0.0
    %958 = vmatprep.subr.mxu0 0.0
    %959 = vmatpush1.msra.mxu0 0.0
    %960 = vmatprep.subr.mxu0 0.0
    %961 = vmatpush1.msra.mxu0 0.0
    %962 = vmatprep.subr.mxu0 0.0
    %963 = vmatpush1.msra.mxu0 0.0
    %964 = vmatprep.subr.mxu0 0.0
    %965 = vmatpush1.msra.mxu0 0.0
    %966 = vmatprep.subr.mxu0 0.0
    %967 = vmatpush1.msra.mxu0 0.0
    %968 = vmatprep.subr.mxu0 0.0
    %969 = vmatpush1.msra.mxu0 0.0
    %970 = vmatprep.subr.mxu0 0.0
    %971 = vmatpush1.msra.mxu0 0.0
    %972 = vmatprep.subr.mxu0 0.0
    %973 = vmatpush1.msra.mxu0 0.0
    %974 = vmatprep.subr.mxu0 0.0
    %975 = vmatpush1.msra.mxu0 0.0
    %976 = vmatprep.subr.mxu0 0.0
    %977 = vmatpush1.msra.mxu0 0.0
    %978 = vmatprep.subr.mxu0 0.0
    %979 = vmatpush1.msra.mxu0 0.0
    %980 = vmatprep.subr.mxu0 0.0
    %981 = vmatpush1.msra.mxu0 0.0
    %982 = vmatprep.subr.mxu0 0.0
    %983 = vmatpush1.msra.mxu0 0.0
    %984 = vmatprep.subr.mxu0 0.0
    %985 = vmatpush1.msra.mxu0 0.0
    %986 = vmatprep.mubr.f32.mxu0 0.0
    %987 = vmatmul.mubr.f32.gmra.mrb[0].mxu0 %v920
    %v988 = vpop.f32.mrb[0].mxu0
    %v989 = vadd.f32 0.0, %v988
    %v990 = vpop.f32.mrb[0].mxu0
    %991 = vdwg.mxu0
    %993 = vrot.lane.b32.xlu0 %v371, 64
    %v994 = vpop.permute.xlu0 %993
    %v997 = vsel %vm564, %v914, 0
    %999 = vmatprep.subr.mxu0 0.0
    %1000 = vmatpush1.msra.mxu0 %v994
    %1001 = vmatprep.subr.mxu0 0.0
    %1002 = vmatpush1.msra.mxu0 0.0
    %1003 = vmatprep.subr.mxu0 0.0
    %1004 = vmatpush1.msra.mxu0 0.0
    %1005 = vmatprep.subr.mxu0 0.0
    %1006 = vmatpush1.msra.mxu0 0.0
    %1007 = vmatprep.subr.mxu0 0.0
    %1008 = vmatpush1.msra.mxu0 0.0
    %1009 = vmatprep.subr.mxu0 0.0
    %1010 = vmatpush1.msra.mxu0 0.0
    %1011 = vmatprep.subr.mxu0 0.0
    %1012 = vmatpush1.msra.mxu0 0.0
    %1013 = vmatprep.subr.mxu0 0.0
    %1014 = vmatpush1.msra.mxu0 0.0
    %1015 = vmatprep.subr.mxu0 0.0
    %1016 = vmatpush1.msra.mxu0 0.0
    %1017 = vmatprep.subr.mxu0 0.0
    %1018 = vmatpush1.msra.mxu0 0.0
    %1019 = vmatprep.subr.mxu0 0.0
    %1020 = vmatpush1.msra.mxu0 0.0
    %1021 = vmatprep.subr.mxu0 0.0
    %1022 = vmatpush1.msra.mxu0 0.0
    %1023 = vmatprep.subr.mxu0 0.0
    %1024 = vmatpush1.msra.mxu0 0.0
    %1025 = vmatprep.subr.mxu0 0.0
    %1026 = vmatpush1.msra.mxu0 0.0
    %1027 = vmatprep.subr.mxu0 0.0
    %1028 = vmatpush1.msra.mxu0 0.0
    %1029 = vmatprep.subr.mxu0 0.0
    %1030 = vmatpush1.msra.mxu0 0.0
    %1031 = vmatprep.subr.mxu0 0.0
    %1032 = vmatpush1.msra.mxu0 0.0
    %1033 = vmatprep.subr.mxu0 0.0
    %1034 = vmatpush1.msra.mxu0 0.0
    %1035 = vmatprep.subr.mxu0 0.0
    %1036 = vmatpush1.msra.mxu0 0.0
    %1037 = vmatprep.subr.mxu0 0.0
    %1038 = vmatpush1.msra.mxu0 0.0
    %1039 = vmatprep.subr.mxu0 0.0
    %1040 = vmatpush1.msra.mxu0 0.0
    %1041 = vmatprep.subr.mxu0 0.0
    %1042 = vmatpush1.msra.mxu0 0.0
    %1043 = vmatprep.subr.mxu0 0.0
    %1044 = vmatpush1.msra.mxu0 0.0
    %1045 = vmatprep.subr.mxu0 0.0
    %1046 = vmatpush1.msra.mxu0 0.0
    %1047 = vmatprep.subr.mxu0 0.0
    %1048 = vmatpush1.msra.mxu0 0.0
    %1049 = vmatprep.subr.mxu0 0.0
    %1050 = vmatpush1.msra.mxu0 0.0
    %1051 = vmatprep.subr.mxu0 0.0
    %1052 = vmatpush1.msra.mxu0 0.0
    %1053 = vmatprep.subr.mxu0 0.0
    %1054 = vmatpush1.msra.mxu0 0.0
    %1055 = vmatprep.subr.mxu0 0.0
    %1056 = vmatpush1.msra.mxu0 0.0
    %1057 = vmatprep.subr.mxu0 0.0
    %1058 = vmatpush1.msra.mxu0 0.0
    %1059 = vmatprep.subr.mxu0 0.0
    %1060 = vmatpush1.msra.mxu0 0.0
    %1061 = vmatprep.subr.mxu0 0.0
    %1062 = vmatpush1.msra.mxu0 0.0
    %1063 = vmatprep.mubr.f32.mxu0 0.0
    %1064 = vmatmul.mubr.f32.gmra.mrb[0].mxu0 %v997
    %v1065 = vpop.f32.mrb[0].mxu0
    %v1066 = vadd.f32 0.0, %v1065
    %v1067 = vpop.f32.mrb[0].mxu0
    %1068 = vdwg.mxu0
    %1071 = vrot.lane.b32.xlu0 %v989, 64
    %v1072 = vpop.permute.xlu0 %1071
    %1073 = vrot.lane.b32.xlu0 %v1066, 64
    %v1074 = vpop.permute.xlu0 %1073
    %v1077 = vsel %vm374, %v657, %v1072
    %v1078 = vsel %vm374, %v730, %v1074
    %v1079 = vld [vmem:[%s7] sm:$0xff]
    %v1080 = vld [vmem:[%s7 + $0x8] sm:$0xff]
    %v1081 = vld [vmem:[%s7 + $0x10] sm:$0xff]
    %v1082 = vld [vmem:[%s7 + $0x18] sm:$0xff]
    %v1083 = vld [vmem:[%s7 + $0x20] sm:$0xff]
    %v1084 = vld [vmem:[%s7 + $0x28] sm:$0xff]
    %v1085 = vld [vmem:[%s7 + $0x30] sm:$0xff]
    %v1086 = vld [vmem:[%s7 + $0x38] sm:$0xff]
    %v1087 = vld [vmem:[%s7 + $0x40] sm:$0xff]
    %v1088 = vld [vmem:[%s7 + $0x48] sm:$0xff]
    %v1089 = vld [vmem:[%s7 + $0x50] sm:$0xff]
    %v1090 = vld [vmem:[%s7 + $0x58] sm:$0xff]
    %v1091 = vld [vmem:[%s7 + $0x60] sm:$0xff]
    %v1092 = vld [vmem:[%s7 + $0x68] sm:$0xff]
    %v1093 = vld [vmem:[%s7 + $0x70] sm:$0xff]
    %v1094 = vld [vmem:[%s7 + $0x78] sm:$0xff]
    %v1095 = vld [vmem:[%s8] sm:$0x1]
    %v1097 = vlaneseq
    %v1098 = vshrl.u32 %v1097, 7
    %v1099 = vsub.s32 0, %v1098
    %v1100 = vrot.slane %v1095, %v1099
    %1102 = vmatprep.subr.mxu0 0.0
    %1103 = vmatpush1.msra.mxu0 %v1079
    %1104 = vmatprep.subr.mxu0 0.0
    %1105 = vmatpush1.msra.mxu0 %v1080
    %1106 = vmatprep.subr.mxu0 0.0
    %1107 = vmatpush1.msra.mxu0 %v1081
    %1108 = vmatprep.subr.mxu0 0.0
    %1109 = vmatpush1.msra.mxu0 %v1082
    %1110 = vmatprep.subr.mxu0 0.0
    %1111 = vmatpush1.msra.mxu0 %v1083
    %1112 = vmatprep.subr.mxu0 0.0
    %1113 = vmatpush1.msra.mxu0 %v1084
    %1114 = vmatprep.subr.mxu0 0.0
    %1115 = vmatpush1.msra.mxu0 %v1085
    %1116 = vmatprep.subr.mxu0 0.0
    %1117 = vmatpush1.msra.mxu0 %v1086
    %1118 = vmatprep.subr.mxu0 0.0
    %1119 = vmatpush1.msra.mxu0 %v1087
    %1120 = vmatprep.subr.mxu0 0.0
    %1121 = vmatpush1.msra.mxu0 %v1088
    %1122 = vmatprep.subr.mxu0 0.0
    %1123 = vmatpush1.msra.mxu0 %v1089
    %1124 = vmatprep.subr.mxu0 0.0
    %1125 = vmatpush1.msra.mxu0 %v1090
    %1126 = vmatprep.subr.mxu0 0.0
    %1127 = vmatpush1.msra.mxu0 %v1091
    %1128 = vmatprep.subr.mxu0 0.0
    %1129 = vmatpush1.msra.mxu0 %v1092
    %1130 = vmatprep.subr.mxu0 0.0
    %1131 = vmatpush1.msra.mxu0 %v1093
    %1132 = vmatprep.subr.mxu0 0.0
    %1133 = vmatpush1.msra.mxu0 %v1094
    %1134 = vmatprep.subr.mxu0 0.0
    %1135 = vmatpush1.msra.mxu0 0.0
    %1136 = vmatprep.subr.mxu0 0.0
    %1137 = vmatpush1.msra.mxu0 0.0
    %1138 = vmatprep.subr.mxu0 0.0
    %1139 = vmatpush1.msra.mxu0 0.0
    %1140 = vmatprep.subr.mxu0 0.0
    %1141 = vmatpush1.msra.mxu0 0.0
    %1142 = vmatprep.subr.mxu0 0.0
    %1143 = vmatpush1.msra.mxu0 0.0
    %1144 = vmatprep.subr.mxu0 0.0
    %1145 = vmatpush1.msra.mxu0 0.0
    %1146 = vmatprep.subr.mxu0 0.0
    %1147 = vmatpush1.msra.mxu0 0.0
    %1148 = vmatprep.subr.mxu0 0.0
    %1149 = vmatpush1.msra.mxu0 0.0
    %1150 = vmatprep.subr.mxu0 0.0
    %1151 = vmatpush1.msra.mxu0 0.0
    %1152 = vmatprep.subr.mxu0 0.0
    %1153 = vmatpush1.msra.mxu0 0.0
    %1154 = vmatprep.subr.mxu0 0.0
    %1155 = vmatpush1.msra.mxu0 0.0
    %1156 = vmatprep.subr.mxu0 0.0
    %1157 = vmatpush1.msra.mxu0 0.0
    %1158 = vmatprep.subr.mxu0 0.0
    %1159 = vmatpush1.msra.mxu0 0.0
    %1160 = vmatprep.subr.mxu0 0.0
    %1161 = vmatpush1.msra.mxu0 0.0
    %1162 = vmatprep.subr.mxu0 0.0
    %1163 = vmatpush1.msra.mxu0 0.0
    %1164 = vmatprep.subr.mxu0 0.0
    %1165 = vmatpush1.msra.mxu0 0.0
    %1166 = vmatprep.mubr.f32.mxu0 0.0
    %1167 = vmatmul.mubr.f32.gmra.mrb[0].mxu0 %v1077
    %v1168 = vpop.f32.mrb[0].mxu0
    %v1169 = vadd.f32 %v1100, %v1168
    %v1170 = vpop.f32.mrb[0].mxu0
    %1171 = vmatprep.mubr.f32.mxu0 0.0
    %1172 = vmatmul.mubr.f32.gmra.mrb[0].mxu0 %v1078
    %v1173 = vpop.f32.mrb[0].mxu0
    %v1174 = vadd.f32 %v1100, %v1173
    %v1175 = vpop.f32.mrb[0].mxu0
    %1176 = vdwg.mxu0
    %v1177 = vadd.f32 %v1169, %v155
    %v1178 = vadd.f32 %v1174, %v156
    %v1179 = vld [vmem:[%s9] sm:$0x1]
    %v1180 = vld [vmem:[%s10] sm:$0x1]
    %1181 = vadd.xlane.f32.xlu0 %v1177
    %v1182 = vpop.xlane.xlu0 %1181
    %1183 = vadd.xlane.f32.xlu0 %v1178
    %v1184 = vpop.xlane.xlu0 %1183
    %v1185 = vmul.f32 %v1182, %v122
    %v1186 = vmul.f32 %v1184, %v122
    %v1187 = vsub.f32 %v1177, %v1185
    %v1188 = vsub.f32 %v1178, %v1186
    %v1189 = vmul.f32 %v1187, %v1187
    %v1190 = vmul.f32 %v1188, %v1188
    %1191 = vadd.xlane.f32.xlu0 %v1189
    %v1192 = vpop.xlane.xlu0 %1191
    %1193 = vadd.xlane.f32.xlu0 %v1190
    %v1194 = vpop.xlane.xlu0 %1193
    %v1195 = vmul.f32 %v1192, %v122
    %v1196 = vmul.f32 %v1194, %v122
    %v1197 = vadd.f32 %v1195, 1e-12
    %v1198 = vadd.f32 %v1196, 1e-12
    %v1199 = vrsqrt.pop %v1197
    %v1200 = vrsqrt.pop %v1198
    %v1201 = vmul.f32 %v1187, %v1199
    %v1202 = vmul.f32 %v1188, %v1200
    %v1204 = vlaneseq
    %v1205 = vshrl.u32 %v1204, 7
    %v1206 = vsub.s32 0, %v1205
    %v1207 = vrot.slane %v1179, %v1206
    %v1209 = vmul.f32 %v1201, %v1207
    %v1210 = vmul.f32 %v1202, %v1207
    %v1212 = vlaneseq
    %v1213 = vshrl.u32 %v1212, 7
    %v1214 = vsub.s32 0, %v1213
    %v1215 = vrot.slane %v1180, %v1214
    %v1217 = vadd.f32 %v1209, %v1215
    %v1218 = vadd.f32 %v1210, %v1215
    %v1219 = vld [vmem:[#allocation2] sm:$0xff]
    %v1220 = vld [vmem:[#allocation2 + $0x8] sm:$0xff]
    %v1221 = vld [vmem:[#allocation2 + $0x10] sm:$0xff]
    %v1222 = vld [vmem:[#allocation2 + $0x18] sm:$0xff]
    %v1223 = vld [vmem:[#allocation2 + $0x20] sm:$0xff]
    %v1224 = vld [vmem:[#allocation2 + $0x28] sm:$0xff]
    %v1225 = vld [vmem:[#allocation2 + $0x30] sm:$0xff]
    %v1226 = vld [vmem:[#allocation2 + $0x38] sm:$0xff]
    %v1227 = vld [vmem:[#allocation2 + $0x40] sm:$0xff]
    %v1228 = vld [vmem:[#allocation2 + $0x48] sm:$0xff]
    %v1229 = vld [vmem:[#allocation2 + $0x50] sm:$0xff]
    %v1230 = vld [vmem:[#allocation2 + $0x58] sm:$0xff]
    %v1231 = vld [vmem:[#allocation2 + $0x60] sm:$0xff]
    %v1232 = vld [vmem:[#allocation2 + $0x68] sm:$0xff]
    %v1233 = vld [vmem:[#allocation2 + $0x70] sm:$0xff]
    %v1234 = vld [vmem:[#allocation2 + $0x78] sm:$0xff]
    %v1235 = vld [vmem:[#allocation2 + $0x80] sm:$0xff]
    %v1236 = vld [vmem:[#allocation2 + $0x88] sm:$0xff]
    %v1237 = vld [vmem:[#allocation2 + $0x90] sm:$0xff]
    %v1238 = vld [vmem:[#allocation2 + $0x98] sm:$0xff]
    %v1239 = vld [vmem:[#allocation2 + $0xa0] sm:$0xff]
    %v1240 = vld [vmem:[#allocation2 + $0xa8] sm:$0xff]
    %v1241 = vld [vmem:[#allocation2 + $0xb0] sm:$0xff]
    %v1242 = vld [vmem:[#allocation2 + $0xb8] sm:$0xff]
    %v1243 = vld [vmem:[#allocation2 + $0xc0] sm:$0xff]
    %v1244 = vld [vmem:[#allocation2 + $0xc8] sm:$0xff]
    %v1245 = vld [vmem:[#allocation2 + $0xd0] sm:$0xff]
    %v1246 = vld [vmem:[#allocation2 + $0xd8] sm:$0xff]
    %v1247 = vld [vmem:[#allocation2 + $0xe0] sm:$0xff]
    %v1248 = vld [vmem:[#allocation2 + $0xe8] sm:$0xff]
    %v1249 = vld [vmem:[#allocation2 + $0xf0] sm:$0xff]
    %v1250 = vld [vmem:[#allocation2 + $0xf8] sm:$0xff]
    %v1251 = vld [vmem:[%s12] sm:$0x3]
    %v1253 = vlaneseq
    %v1254 = vshrl.u32 %v1253, 7
    %v1255 = vsub.s32 0, %v1254
    %v1256 = vrot.slane %v1251, %v1255
    %v1257 = vlaneseq
    %v1258 = vshrl.u32 %v1257, 7
    %v1259 = vsub.s32 1, %v1258
    %v1260 = vrot.slane %v1251, %v1259
    %1263 = vmatprep.subr.mxu0 %v1220
    %1264 = vmatpush1.msra.mxu0 %v1219
    %1265 = vmatprep.subr.mxu0 %v1222
    %1266 = vmatpush1.msra.mxu0 %v1221
    %1267 = vmatprep.subr.mxu0 %v1224
    %1268 = vmatpush1.msra.mxu0 %v1223
    %1269 = vmatprep.subr.mxu0 %v1226
    %1270 = vmatpush1.msra.mxu0 %v1225
    %1271 = vmatprep.subr.mxu0 %v1228
    %1272 = vmatpush1.msra.mxu0 %v1227
    %1273 = vmatprep.subr.mxu0 %v1230
    %1274 = vmatpush1.msra.mxu0 %v1229
    %1275 = vmatprep.subr.mxu0 %v1232
    %1276 = vmatpush1.msra.mxu0 %v1231
    %1277 = vmatprep.subr.mxu0 %v1234
    %1278 = vmatpush1.msra.mxu0 %v1233
    %1279 = vmatprep.subr.mxu0 %v1236
    %1280 = vmatpush1.msra.mxu0 %v1235
    %1281 = vmatprep.subr.mxu0 %v1238
    %1282 = vmatpush1.msra.mxu0 %v1237
    %1283 = vmatprep.subr.mxu0 %v1240
    %1284 = vmatpush1.msra.mxu0 %v1239
    %1285 = vmatprep.subr.mxu0 %v1242
    %1286 = vmatpush1.msra.mxu0 %v1241
    %1287 = vmatprep.subr.mxu0 %v1244
    %1288 = vmatpush1.msra.mxu0 %v1243
    %1289 = vmatprep.subr.mxu0 %v1246
    %1290 = vmatpush1.msra.mxu0 %v1245
    %1291 = vmatprep.subr.mxu0 %v1248
    %1292 = vmatpush1.msra.mxu0 %v1247
    %1293 = vmatprep.subr.mxu0 %v1250
    %1294 = vmatpush1.msra.mxu0 %v1249
    %1295 = vmatprep.subr.mxu0 0.0
    %1296 = vmatpush1.msra.mxu0 0.0
    %1297 = vmatprep.subr.mxu0 0.0
    %1298 = vmatpush1.msra.mxu0 0.0
    %1299 = vmatprep.subr.mxu0 0.0
    %1300 = vmatpush1.msra.mxu0 0.0
    %1301 = vmatprep.subr.mxu0 0.0
    %1302 = vmatpush1.msra.mxu0 0.0
    %1303 = vmatprep.subr.mxu0 0.0
    %1304 = vmatpush1.msra.mxu0 0.0
    %1305 = vmatprep.subr.mxu0 0.0
    %1306 = vmatpush1.msra.mxu0 0.0
    %1307 = vmatprep.subr.mxu0 0.0
    %1308 = vmatpush1.msra.mxu0 0.0
    %1309 = vmatprep.subr.mxu0 0.0
    %1310 = vmatpush1.msra.mxu0 0.0
    %1311 = vmatprep.subr.mxu0 0.0
    %1312 = vmatpush1.msra.mxu0 0.0
    %1313 = vmatprep.subr.mxu0 0.0
    %1314 = vmatpush1.msra.mxu0 0.0
    %1315 = vmatprep.subr.mxu0 0.0
    %1316 = vmatpush1.msra.mxu0 0.0
    %1317 = vmatprep.subr.mxu0 0.0
    %1318 = vmatpush1.msra.mxu0 0.0
    %1319 = vmatprep.subr.mxu0 0.0
    %1320 = vmatpush1.msra.mxu0 0.0
    %1321 = vmatprep.subr.mxu0 0.0
    %1322 = vmatpush1.msra.mxu0 0.0
    %1323 = vmatprep.subr.mxu0 0.0
    %1324 = vmatpush1.msra.mxu0 0.0
    %1325 = vmatprep.subr.mxu0 0.0
    %1326 = vmatpush1.msra.mxu0 0.0
    %1327 = vmatprep.mubr.f32.mxu0 0.0
    %1328 = vmatmul.mubr.f32.gmra.mrb[0].mxu0 %v1217
    %v1329 = vpop.f32.mrb[0].mxu0
    %v1330 = vadd.f32 %v1256, %v1329
    %v1331 = vpop.f32.mrb[0].mxu0
    %v1332 = vadd.f32 %v1260, %v1331
    %1333 = vmatprep.mubr.f32.mxu0 0.0
    %1334 = vmatmul.mubr.f32.gmra.mrb[0].mxu0 %v1218
    %v1335 = vpop.f32.mrb[0].mxu0
    %v1336 = vadd.f32 %v1256, %v1335
    %v1337 = vpop.f32.mrb[0].mxu0
    %v1338 = vadd.f32 %v1260, %v1337
    %1339 = vdwg.mxu0
    %v1340 = vmul.f32 %v1330, %v1330
    %v1341 = vmul.f32 %v1332, %v1332
    %v1342 = vmul.f32 %v1336, %v1336
    %v1343 = vmul.f32 %v1338, %v1338
    %v1344 = vmul.f32 %v1330, %v1340
    %v1345 = vmul.f32 %v1332, %v1341
    %v1346 = vmul.f32 %v1336, %v1342
    %v1347 = vmul.f32 %v1338, %v1343
    %v1348 = vmul.f32 %v1344, 0.044715
    %v1349 = vmul.f32 %v1345, 0.044715
    %v1350 = vmul.f32 %v1346, 0.044715
    %v1351 = vmul.f32 %v1347, 0.044715
    %v1352 = vadd.f32 %v1330, %v1348
    %v1353 = vadd.f32 %v1332, %v1349
    %v1354 = vadd.f32 %v1336, %v1350
    %v1355 = vadd.f32 %v1338, %v1351
    %v1356 = vmul.f32 %v1352, 0.7978846
    %v1357 = vmul.f32 %v1353, 0.7978846
    %v1358 = vmul.f32 %v1354, 0.7978846
    %v1359 = vmul.f32 %v1355, 0.7978846
    %v1360 = vtanh.pop %v1356
    %v1361 = vtanh.pop %v1357
    %v1362 = vtanh.pop %v1358
    %v1363 = vtanh.pop %v1359
    %v1364 = vadd.f32 %v1360, 1.0
    %v1365 = vadd.f32 %v1361, 1.0
    %v1366 = vadd.f32 %v1362, 1.0
    %v1367 = vadd.f32 %v1363, 1.0
    %v1368 = vmul.f32 %v1364, 0.5
    %v1369 = vmul.f32 %v1365, 0.5
    %v1370 = vmul.f32 %v1366, 0.5
    %v1371 = vmul.f32 %v1367, 0.5
    %v1372 = vmul.f32 %v1330, %v1368
    %v1373 = vmul.f32 %v1332, %v1369
    %v1374 = vmul.f32 %v1336, %v1370
    %v1375 = vmul.f32 %v1338, %v1371
    %v1376 = vld [vmem:[#allocation5] sm:$0xff]
    %v1377 = vld [vmem:[#allocation5 + $0x8] sm:$0xff]
    %v1378 = vld [vmem:[#allocation5 + $0x10] sm:$0xff]
    %v1379 = vld [vmem:[#allocation5 + $0x18] sm:$0xff]
    %v1380 = vld [vmem:[#allocation5 + $0x20] sm:$0xff]
    %v1381 = vld [vmem:[#allocation5 + $0x28] sm:$0xff]
    %v1382 = vld [vmem:[#allocation5 + $0x30] sm:$0xff]
    %v1383 = vld [vmem:[#allocation5 + $0x38] sm:$0xff]
    %v1384 = vld [vmem:[#allocation5 + $0x40] sm:$0xff]
    %v1385 = vld [vmem:[#allocation5 + $0x48] sm:$0xff]
    %v1386 = vld [vmem:[#allocation5 + $0x50] sm:$0xff]
    %v1387 = vld [vmem:[#allocation5 + $0x58] sm:$0xff]
    %v1388 = vld [vmem:[#allocation5 + $0x60] sm:$0xff]
    %v1389 = vld [vmem:[#allocation5 + $0x68] sm:$0xff]
    %v1390 = vld [vmem:[#allocation5 + $0x70] sm:$0xff]
    %v1391 = vld [vmem:[#allocation5 + $0x78] sm:$0xff]
    %v1392 = vld [vmem:[#allocation5 + $0x80] sm:$0xff]
    %v1393 = vld [vmem:[#allocation5 + $0x88] sm:$0xff]
    %v1394 = vld [vmem:[#allocation5 + $0x90] sm:$0xff]
    %v1395 = vld [vmem:[#allocation5 + $0x98] sm:$0xff]
    %v1396 = vld [vmem:[#allocation5 + $0xa0] sm:$0xff]
    %v1397 = vld [vmem:[#allocation5 + $0xa8] sm:$0xff]
    %v1398 = vld [vmem:[#allocation5 + $0xb0] sm:$0xff]
    %v1399 = vld [vmem:[#allocation5 + $0xb8] sm:$0xff]
    %v1400 = vld [vmem:[#allocation5 + $0xc0] sm:$0xff]
    %v1401 = vld [vmem:[#allocation5 + $0xc8] sm:$0xff]
    %v1402 = vld [vmem:[#allocation5 + $0xd0] sm:$0xff]
    %v1403 = vld [vmem:[#allocation5 + $0xd8] sm:$0xff]
    %v1404 = vld [vmem:[#allocation5 + $0xe0] sm:$0xff]
    %v1405 = vld [vmem:[#allocation5 + $0xe8] sm:$0xff]
    %v1406 = vld [vmem:[#allocation5 + $0xf0] sm:$0xff]
    %v1407 = vld [vmem:[#allocation5 + $0xf8] sm:$0xff]
    %v1408 = vld [vmem:[%s14] sm:$0x1]
    %v1410 = vlaneseq
    %v1411 = vshrl.u32 %v1410, 7
    %v1412 = vsub.s32 0, %v1411
    %v1413 = vrot.slane %v1408, %v1412
    %1415 = vmatprep.subr.mxu0 0.0
    %1416 = vmatpush1.msra.mxu0 %v1376
    %1417 = vmatprep.subr.mxu0 0.0
    %1418 = vmatpush1.msra.mxu0 %v1377
    %1419 = vmatprep.subr.mxu0 0.0
    %1420 = vmatpush1.msra.mxu0 %v1378
    %1421 = vmatprep.subr.mxu0 0.0
    %1422 = vmatpush1.msra.mxu0 %v1379
    %1423 = vmatprep.subr.mxu0 0.0
    %1424 = vmatpush1.msra.mxu0 %v1380
    %1425 = vmatprep.subr.mxu0 0.0
    %1426 = vmatpush1.msra.mxu0 %v1381
    %1427 = vmatprep.subr.mxu0 0.0
    %1428 = vmatpush1.msra.mxu0 %v1382
    %1429 = vmatprep.subr.mxu0 0.0
    %1430 = vmatpush1.msra.mxu0 %v1383
    %1431 = vmatprep.subr.mxu0 0.0
    %1432 = vmatpush1.msra.mxu0 %v1384
    %1433 = vmatprep.subr.mxu0 0.0
    %1434 = vmatpush1.msra.mxu0 %v1385
    %1435 = vmatprep.subr.mxu0 0.0
    %1436 = vmatpush1.msra.mxu0 %v1386
    %1437 = vmatprep.subr.mxu0 0.0
    %1438 = vmatpush1.msra.mxu0 %v1387
    %1439 = vmatprep.subr.mxu0 0.0
    %1440 = vmatpush1.msra.mxu0 %v1388
    %1441 = vmatprep.subr.mxu0 0.0
    %1442 = vmatpush1.msra.mxu0 %v1389
    %1443 = vmatprep.subr.mxu0 0.0
    %1444 = vmatpush1.msra.mxu0 %v1390
    %1445 = vmatprep.subr.mxu0 0.0
    %1446 = vmatpush1.msra.mxu0 %v1391
    %1447 = vmatprep.subr.mxu0 0.0
    %1448 = vmatpush1.msra.mxu0 %v1392
    %1449 = vmatprep.subr.mxu0 0.0
    %1450 = vmatpush1.msra.mxu0 %v1393
    %1451 = vmatprep.subr.mxu0 0.0
    %1452 = vmatpush1.msra.mxu0 %v1394
    %1453 = vmatprep.subr.mxu0 0.0
    %1454 = vmatpush1.msra.mxu0 %v1395
    %1455 = vmatprep.subr.mxu0 0.0
    %1456 = vmatpush1.msra.mxu0 %v1396
    %1457 = vmatprep.subr.mxu0 0.0
    %1458 = vmatpush1.msra.mxu0 %v1397
    %1459 = vmatprep.subr.mxu0 0.0
    %1460 = vmatpush1.msra.mxu0 %v1398
    %1461 = vmatprep.subr.mxu0 0.0
    %1462 = vmatpush1.msra.mxu0 %v1399
    %1463 = vmatprep.subr.mxu0 0.0
    %1464 = vmatpush1.msra.mxu0 %v1400
    %1465 = vmatprep.subr.mxu0 0.0
    %1466 = vmatpush1.msra.mxu0 %v1401
    %1467 = vmatprep.subr.mxu0 0.0
    %1468 = vmatpush1.msra.mxu0 %v1402
    %1469 = vmatprep.subr.mxu0 0.0
    %1470 = vmatpush1.msra.mxu0 %v1403
    %1471 = vmatprep.subr.mxu0 0.0
    %1472 = vmatpush1.msra.mxu0 %v1404
    %1473 = vmatprep.subr.mxu0 0.0
    %1474 = vmatpush1.msra.mxu0 %v1405
    %1475 = vmatprep.subr.mxu0 0.0
    %1476 = vmatpush1.msra.mxu0 %v1406
    %1477 = vmatprep.subr.mxu0 0.0
    %1478 = vmatpush1.msra.mxu0 %v1407
    %1479 = vmatprep.mubr.f32.mxu0 %v1373
    %1480 = vmatmul.mubr.f32.gmra.mrb[0].mxu0 %v1372
    %v1481 = vpop.f32.mrb[0].mxu0
    %v1482 = vadd.f32 %v1413, %v1481
    %v1483 = vpop.f32.mrb[0].mxu0
    %1484 = vmatprep.mubr.f32.mxu0 %v1375
    %1485 = vmatmul.mubr.f32.gmra.mrb[0].mxu0 %v1374
    %v1486 = vpop.f32.mrb[0].mxu0
    %v1487 = vadd.f32 %v1413, %v1486
    %v1488 = vpop.f32.mrb[0].mxu0
    %1489 = vdwg.mxu0
    %v1490 = vadd.f32 %v1482, %v1217
    %v1491 = vadd.f32 %v1487, %v1218
    %v1492 = vld [vmem:[%s15] sm:$0x1]
    %v1493 = vld [vmem:[%s16] sm:$0x1]
    %1494 = vadd.xlane.f32.xlu0 %v1490
    %v1495 = vpop.xlane.xlu0 %1494
    %1496 = vadd.xlane.f32.xlu0 %v1491
    %v1497 = vpop.xlane.xlu0 %1496
    %v1498 = vmul.f32 %v1495, %v122
    %v1499 = vmul.f32 %v1497, %v122
    %v1500 = vsub.f32 %v1490, %v1498
    %v1501 = vsub.f32 %v1491, %v1499
    %v1502 = vmul.f32 %v1500, %v1500
    %v1503 = vmul.f32 %v1501, %v1501
    %1504 = vadd.xlane.f32.xlu0 %v1502
    %v1505 = vpop.xlane.xlu0 %1504
    %1506 = vadd.xlane.f32.xlu0 %v1503
    %v1507 = vpop.xlane.xlu0 %1506
    %v1508 = vmul.f32 %v1505, %v122
    %v1509 = vmul.f32 %v1507, %v122
    %v1510 = vadd.f32 %v1508, 1e-12
    %v1511 = vadd.f32 %v1509, 1e-12
    %v1512 = vrsqrt.pop %v1510
    %v1513 = vrsqrt.pop %v1511
    %v1514 = vmul.f32 %v1500, %v1512
    %v1515 = vmul.f32 %v1501, %v1513
    %v1517 = vlaneseq
    %v1518 = vshrl.u32 %v1517, 7
    %v1519 = vsub.s32 0, %v1518
    %v1520 = vrot.slane %v1492, %v1519
    %v1522 = vmul.f32 %v1514, %v1520
    %v1523 = vmul.f32 %v1515, %v1520
    %v1525 = vlaneseq
    %v1526 = vshrl.u32 %v1525, 7
    %v1527 = vsub.s32 0, %v1526
    %v1528 = vrot.slane %v1493, %v1527
    %v1530 = vadd.f32 %v1522, %v1528
    %v1531 = vadd.f32 %v1523, %v1528
    %s1532 = scalar_lea.vmem %s5, 384
    %v1533 = vld [vmem:[%s1532] sm:$0xff]
    %v1534 = vld [vmem:[%s1532 + $0x8] sm:$0xff]
    %v1535 = vld [vmem:[%s1532 + $0x10] sm:$0xff]
    %v1536 = vld [vmem:[%s1532 + $0x18] sm:$0xff]
    %v1537 = vld [vmem:[%s1532 + $0x20] sm:$0xff]
    %v1538 = vld [vmem:[%s1532 + $0x28] sm:$0xff]
    %v1539 = vld [vmem:[%s1532 + $0x30] sm:$0xff]
    %v1540 = vld [vmem:[%s1532 + $0x38] sm:$0xff]
    %v1541 = vld [vmem:[%s1532 + $0x40] sm:$0xff]
    %v1542 = vld [vmem:[%s1532 + $0x48] sm:$0xff]
    %v1543 = vld [vmem:[%s1532 + $0x50] sm:$0xff]
    %v1544 = vld [vmem:[%s1532 + $0x58] sm:$0xff]
    %v1545 = vld [vmem:[%s1532 + $0x60] sm:$0xff]
    %v1546 = vld [vmem:[%s1532 + $0x68] sm:$0xff]
    %v1547 = vld [vmem:[%s1532 + $0x70] sm:$0xff]
    %v1548 = vld [vmem:[%s1532 + $0x78] sm:$0xff]
    %v1549 = vld [vmem:[%s1532 + $0x80] sm:$0xff]
    %v1550 = vld [vmem:[%s1532 + $0x88] sm:$0xff]
    %v1551 = vld [vmem:[%s1532 + $0x90] sm:$0xff]
    %v1552 = vld [vmem:[%s1532 + $0x98] sm:$0xff]
    %v1553 = vld [vmem:[%s1532 + $0xa0] sm:$0xff]
    %v1554 = vld [vmem:[%s1532 + $0xa8] sm:$0xff]
    %v1555 = vld [vmem:[%s1532 + $0xb0] sm:$0xff]
    %v1556 = vld [vmem:[%s1532 + $0xb8] sm:$0xff]
    %v1557 = vld [vmem:[%s1532 + $0xc0] sm:$0xff]
    %v1558 = vld [vmem:[%s1532 + $0xc8] sm:$0xff]
    %v1559 = vld [vmem:[%s1532 + $0xd0] sm:$0xff]
    %v1560 = vld [vmem:[%s1532 + $0xd8] sm:$0xff]
    %v1561 = vld [vmem:[%s1532 + $0xe0] sm:$0xff]
    %v1562 = vld [vmem:[%s1532 + $0xe8] sm:$0xff]
    %v1563 = vld [vmem:[%s1532 + $0xf0] sm:$0xff]
    %v1564 = vld [vmem:[%s1532 + $0xf8] sm:$0xff]
    %v1565 = vld [vmem:[%s1532 + $0x100] sm:$0xff]
    %v1566 = vld [vmem:[%s1532 + $0x108] sm:$0xff]
    %v1567 = vld [vmem:[%s1532 + $0x110] sm:$0xff]
    %v1568 = vld [vmem:[%s1532 + $0x118] sm:$0xff]
    %v1569 = vld [vmem:[%s1532 + $0x120] sm:$0xff]
    %v1570 = vld [vmem:[%s1532 + $0x128] sm:$0xff]
    %v1571 = vld [vmem:[%s1532 + $0x130] sm:$0xff]
    %v1572 = vld [vmem:[%s1532 + $0x138] sm:$0xff]
    %v1573 = vld [vmem:[%s1532 + $0x140] sm:$0xff]
    %v1574 = vld [vmem:[%s1532 + $0x148] sm:$0xff]
    %v1575 = vld [vmem:[%s1532 + $0x150] sm:$0xff]
    %v1576 = vld [vmem:[%s1532 + $0x158] sm:$0xff]
    %v1577 = vld [vmem:[%s1532 + $0x160] sm:$0xff]
    %v1578 = vld [vmem:[%s1532 + $0x168] sm:$0xff]
    %v1579 = vld [vmem:[%s1532 + $0x170] sm:$0xff]
    %v1580 = vld [vmem:[%s1532 + $0x178] sm:$0xff]
    %s1581 = scalar_lea.vmem %s6, 3
    %v1582 = vld [vmem:[%s1581] sm:$0x7]
    %v1584 = vlaneseq
    %v1585 = vshrl.u32 %v1584, 7
    %v1586 = vsub.s32 0, %v1585
    %v1587 = vrot.slane %v1582, %v1586
    %v1588 = vlaneseq
    %v1589 = vshrl.u32 %v1588, 7
    %v1590 = vsub.s32 1, %v1589
    %v1591 = vrot.slane %v1582, %v1590
    %v1592 = vlaneseq
    %v1593 = vshrl.u32 %v1592, 7
    %v1594 = vsub.s32 2, %v1593
    %v1595 = vrot.slane %v1582, %v1594
    %1599 = vmatprep.subr.mxu0 %v1534
    %1600 = vmatpush1.msra.mxu0 %v1533
    %1601 = vmatprep.subr.mxu0 %v1537
    %1602 = vmatpush1.msra.mxu0 %v1536
    %1603 = vmatprep.subr.mxu0 %v1540
    %1604 = vmatpush1.msra.mxu0 %v1539
    %1605 = vmatprep.subr.mxu0 %v1543
    %1606 = vmatpush1.msra.mxu0 %v1542
    %1607 = vmatprep.subr.mxu0 %v1546
    %1608 = vmatpush1.msra.mxu0 %v1545
    %1609 = vmatprep.subr.mxu0 %v1549
    %1610 = vmatpush1.msra.mxu0 %v1548
    %1611 = vmatprep.subr.mxu0 %v1552
    %1612 = vmatpush1.msra.mxu0 %v1551
    %1613 = vmatprep.subr.mxu0 %v1555
    %1614 = vmatpush1.msra.mxu0 %v1554
    %1615 = vmatprep.subr.mxu0 %v1558
    %1616 = vmatpush1.msra.mxu0 %v1557
    %1617 = vmatprep.subr.mxu0 %v1561
    %1618 = vmatpush1.msra.mxu0 %v1560
    %1619 = vmatprep.subr.mxu0 %v1564
    %1620 = vmatpush1.msra.mxu0 %v1563
    %1621 = vmatprep.subr.mxu0 %v1567
    %1622 = vmatpush1.msra.mxu0 %v1566
    %1623 = vmatprep.subr.mxu0 %v1570
    %1624 = vmatpush1.msra.mxu0 %v1569
    %1625 = vmatprep.subr.mxu0 %v1573
    %1626 = vmatpush1.msra.mxu0 %v1572
    %1627 = vmatprep.subr.mxu0 %v1576
    %1628 = vmatpush1.msra.mxu0 %v1575
    %1629 = vmatprep.subr.mxu0 %v1579
    %1630 = vmatpush1.msra.mxu0 %v1578
    %1631 = vmatprep.subr.mxu0 0.0
    %1632 = vmatpush1.msra.mxu0 0.0
    %1633 = vmatprep.subr.mxu0 0.0
    %1634 = vmatpush1.msra.mxu0 0.0
    %1635 = vmatprep.subr.mxu0 0.0
    %1636 = vmatpush1.msra.mxu0 0.0
    %1637 = vmatprep.subr.mxu0 0.0
    %1638 = vmatpush1.msra.mxu0 0.0
    %1639 = vmatprep.subr.mxu0 0.0
    %1640 = vmatpush1.msra.mxu0 0.0
    %1641 = vmatprep.subr.mxu0 0.0
    %1642 = vmatpush1.msra.mxu0 0.0
    %1643 = vmatprep.subr.mxu0 0.0
    %1644 = vmatpush1.msra.mxu0 0.0
    %1645 = vmatprep.subr.mxu0 0.0
    %1646 = vmatpush1.msra.mxu0 0.0
    %1647 = vmatprep.subr.mxu0 0.0
    %1648 = vmatpush1.msra.mxu0 0.0
    %1649 = vmatprep.subr.mxu0 0.0
    %1650 = vmatpush1.msra.mxu0 0.0
    %1651 = vmatprep.subr.mxu0 0.0
    %1652 = vmatpush1.msra.mxu0 0.0
    %1653 = vmatprep.subr.mxu0 0.0
    %1654 = vmatpush1.msra.mxu0 0.0
    %1655 = vmatprep.subr.mxu0 0.0
    %1656 = vmatpush1.msra.mxu0 0.0
    %1657 = vmatprep.subr.mxu0 0.0
    %1658 = vmatpush1.msra.mxu0 0.0
    %1659 = vmatprep.subr.mxu0 0.0
    %1660 = vmatpush1.msra.mxu0 0.0
    %1661 = vmatprep.subr.mxu0 0.0
    %1662 = vmatpush1.msra.mxu0 0.0
    %1663 = vmatprep.mubr.f32.mxu0 0.0
    %1664 = vmatmul.mubr.f32.gmra.mrb[0].mxu0 %v1530
    %v1665 = vpop.f32.mrb[0].mxu0
    %v1666 = vadd.f32 %v1587, %v1665
    %v1667 = vpop.f32.mrb[0].mxu0
    %v1668 = vadd.f32 %v1591, %v1667
    %1669 = vmatprep.mubr.f32.mxu0 0.0
    %1670 = vmatmul.mubr.f32.gmra.mrb[0].mxu0 %v1531
    %v1671 = vpop.f32.mrb[0].mxu0
    %v1672 = vadd.f32 %v1587, %v1671
    %v1673 = vpop.f32.mrb[0].mxu0
    %v1674 = vadd.f32 %v1591, %v1673
    %1675 = vdwg.mxu0
    %1676 = vmatprep.subr.mxu0 0.0
    %1677 = vmatpush1.msra.mxu0 %v1535
    %1678 = vmatprep.subr.mxu0 0.0
    %1679 = vmatpush1.msra.mxu0 %v1538
    %1680 = vmatprep.subr.mxu0 0.0
    %1681 = vmatpush1.msra.mxu0 %v1541
    %1682 = vmatprep.subr.mxu0 0.0
    %1683 = vmatpush1.msra.mxu0 %v1544
    %1684 = vmatprep.subr.mxu0 0.0
    %1685 = vmatpush1.msra.mxu0 %v1547
    %1686 = vmatprep.subr.mxu0 0.0
    %1687 = vmatpush1.msra.mxu0 %v1550
    %1688 = vmatprep.subr.mxu0 0.0
    %1689 = vmatpush1.msra.mxu0 %v1553
    %1690 = vmatprep.subr.mxu0 0.0
    %1691 = vmatpush1.msra.mxu0 %v1556
    %1692 = vmatprep.subr.mxu0 0.0
    %1693 = vmatpush1.msra.mxu0 %v1559
    %1694 = vmatprep.subr.mxu0 0.0
    %1695 = vmatpush1.msra.mxu0 %v1562
    %1696 = vmatprep.subr.mxu0 0.0
    %1697 = vmatpush1.msra.mxu0 %v1565
    %1698 = vmatprep.subr.mxu0 0.0
    %1699 = vmatpush1.msra.mxu0 %v1568
    %1700 = vmatprep.subr.mxu0 0.0
    %1701 = vmatpush1.msra.mxu0 %v1571
    %1702 = vmatprep.subr.mxu0 0.0
    %1703 = vmatpush1.msra.mxu0 %v1574
    %1704 = vmatprep.subr.mxu0 0.0
    %1705 = vmatpush1.msra.mxu0 %v1577
    %1706 = vmatprep.subr.mxu0 0.0
    %1707 = vmatpush1.msra.mxu0 %v1580
    %1708 = vmatprep.subr.mxu0 0.0
    %1709 = vmatpush1.msra.mxu0 0.0
    %1710 = vmatprep.subr.mxu0 0.0
    %1711 = vmatpush1.msra.mxu0 0.0
    %1712 = vmatprep.subr.mxu0 0.0
    %1713 = vmatpush1.msra.mxu0 0.0
    %1714 = vmatprep.subr.mxu0 0.0
    %1715 = vmatpush1.msra.mxu0 0.0
    %1716 = vmatprep.subr.mxu0 0.0
    %1717 = vmatpush1.msra.mxu0 0.0
    %1718 = vmatprep.subr.mxu0 0.0
    %1719 = vmatpush1.msra.mxu0 0.0
    %1720 = vmatprep.subr.mxu0 0.0
    %1721 = vmatpush1.msra.mxu0 0.0
    %1722 = vmatprep.subr.mxu0 0.0
    %1723 = vmatpush1.msra.mxu0 0.0
    %1724 = vmatprep.subr.mxu0 0.0
    %1725 = vmatpush1.msra.mxu0 0.0
    %1726 = vmatprep.subr.mxu0 0.0
    %1727 = vmatpush1.msra.mxu0 0.0
    %1728 = vmatprep.subr.mxu0 0.0
    %1729 = vmatpush1.msra.mxu0 0.0
    %1730 = vmatprep.subr.mxu0 0.0
    %1731 = vmatpush1.msra.mxu0 0.0
    %1732 = vmatprep.subr.mxu0 0.0
    %1733 = vmatpush1.msra.mxu0 0.0
    %1734 = vmatprep.subr.mxu0 0.0
    %1735 = vmatpush1.msra.mxu0 0.0
    %1736 = vmatprep.subr.mxu0 0.0
    %1737 = vmatpush1.msra.mxu0 0.0
    %1738 = vmatprep.subr.mxu0 0.0
    %1739 = vmatpush1.msra.mxu0 0.0
    %1740 = vmatprep.mubr.f32.mxu0 0.0
    %1741 = vmatmul.mubr.f32.gmra.mrb[0].mxu0 %v1530
    %v1742 = vpop.f32.mrb[0].mxu0
    %v1743 = vadd.f32 %v1595, %v1742
    %v1744 = vpop.f32.mrb[0].mxu0
    %1745 = vmatprep.mubr.f32.mxu0 0.0
    %1746 = vmatmul.mubr.f32.gmra.mrb[0].mxu0 %v1531
    %v1747 = vpop.f32.mrb[0].mxu0
    %v1748 = vadd.f32 %v1595, %v1747
    %v1749 = vpop.f32.mrb[0].mxu0
    %1750 = vdwg.mxu0
    %v1752 = vsel %vm374, %v1666, 0
    %v1755 = vsel %vm374, %v1668, 0
    %1757 = vmatprep.subr.mxu0 0.0
    %1758 = vmatpush1.xpose.msra.mxu0 %v1755
    %1759 = vmatprep.subr.mxu0 0.0
    %1760 = vmatpush1.xpose.msra.mxu0 0.0
    %1761 = vmatprep.subr.mxu0 0.0
    %1762 = vmatpush1.xpose.msra.mxu0 0.0
    %1763 = vmatprep.subr.mxu0 0.0
    %1764 = vmatpush1.xpose.msra.mxu0 0.0
    %1765 = vmatprep.subr.mxu0 0.0
    %1766 = vmatpush1.xpose.msra.mxu0 0.0
    %1767 = vmatprep.subr.mxu0 0.0
    %1768 = vmatpush1.xpose.msra.mxu0 0.0
    %1769 = vmatprep.subr.mxu0 0.0
    %1770 = vmatpush1.xpose.msra.mxu0 0.0
    %1771 = vmatprep.subr.mxu0 0.0
    %1772 = vmatpush1.xpose.msra.mxu0 0.0
    %1773 = vmatprep.subr.mxu0 0.0
    %1774 = vmatpush1.xpose.msra.mxu0 0.0
    %1775 = vmatprep.subr.mxu0 0.0
    %1776 = vmatpush1.xpose.msra.mxu0 0.0
    %1777 = vmatprep.subr.mxu0 0.0
    %1778 = vmatpush1.xpose.msra.mxu0 0.0
    %1779 = vmatprep.subr.mxu0 0.0
    %1780 = vmatpush1.xpose.msra.mxu0 0.0
    %1781 = vmatprep.subr.mxu0 0.0
    %1782 = vmatpush1.xpose.msra.mxu0 0.0
    %1783 = vmatprep.subr.mxu0 0.0
    %1784 = vmatpush1.xpose.msra.mxu0 0.0
    %1785 = vmatprep.subr.mxu0 0.0
    %1786 = vmatpush1.xpose.msra.mxu0 0.0
    %1787 = vmatprep.subr.mxu0 0.0
    %1788 = vmatpush1.xpose.msra.mxu0 0.0
    %1789 = vmatprep.subr.mxu0 0.0
    %1790 = vmatpush1.xpose.msra.mxu0 0.0
    %1791 = vmatprep.subr.mxu0 0.0
    %1792 = vmatpush1.xpose.msra.mxu0 0.0
    %1793 = vmatprep.subr.mxu0 0.0
    %1794 = vmatpush1.xpose.msra.mxu0 0.0
    %1795 = vmatprep.subr.mxu0 0.0
    %1796 = vmatpush1.xpose.msra.mxu0 0.0
    %1797 = vmatprep.subr.mxu0 0.0
    %1798 = vmatpush1.xpose.msra.mxu0 0.0
    %1799 = vmatprep.subr.mxu0 0.0
    %1800 = vmatpush1.xpose.msra.mxu0 0.0
    %1801 = vmatprep.subr.mxu0 0.0
    %1802 = vmatpush1.xpose.msra.mxu0 0.0
    %1803 = vmatprep.subr.mxu0 0.0
    %1804 = vmatpush1.xpose.msra.mxu0 0.0
    %1805 = vmatprep.subr.mxu0 0.0
    %1806 = vmatpush1.xpose.msra.mxu0 0.0
    %1807 = vmatprep.subr.mxu0 0.0
    %1808 = vmatpush1.xpose.msra.mxu0 0.0
    %1809 = vmatprep.subr.mxu0 0.0
    %1810 = vmatpush1.xpose.msra.mxu0 0.0
    %1811 = vmatprep.subr.mxu0 0.0
    %1812 = vmatpush1.xpose.msra.mxu0 0.0
    %1813 = vmatprep.subr.mxu0 0.0
    %1814 = vmatpush1.xpose.msra.mxu0 0.0
    %1815 = vmatprep.subr.mxu0 0.0
    %1816 = vmatpush1.xpose.msra.mxu0 0.0
    %1817 = vmatprep.subr.mxu0 0.0
    %1818 = vmatpush1.xpose.msra.mxu0 0.0
    %1819 = vmatprep.subr.mxu0 0.0
    %1820 = vmatpush1.xpose.msra.mxu0 0.0
    %1821 = vmatprep.mubr.f32.mxu0 0.0
    %1822 = vmatmul.mubr.f32.gmra.mrb[0].mxu0 %v1752
    %v1823 = vpop.f32.mrb[0].mxu0
    %v1824 = vadd.f32 0.0, %v1823
    %v1825 = vpop.f32.mrb[0].mxu0
    %1826 = vdwg.mxu0
    %v1828 = vsel %vm374, %v1672, 0
    %v1831 = vsel %vm374, %v1674, 0
    %1833 = vmatprep.subr.mxu0 0.0
    %1834 = vmatpush1.xpose.msra.mxu0 %v1831
    %1835 = vmatprep.subr.mxu0 0.0
    %1836 = vmatpush1.xpose.msra.mxu0 0.0
    %1837 = vmatprep.subr.mxu0 0.0
    %1838 = vmatpush1.xpose.msra.mxu0 0.0
    %1839 = vmatprep.subr.mxu0 0.0
    %1840 = vmatpush1.xpose.msra.mxu0 0.0
    %1841 = vmatprep.subr.mxu0 0.0
    %1842 = vmatpush1.xpose.msra.mxu0 0.0
    %1843 = vmatprep.subr.mxu0 0.0
    %1844 = vmatpush1.xpose.msra.mxu0 0.0
    %1845 = vmatprep.subr.mxu0 0.0
    %1846 = vmatpush1.xpose.msra.mxu0 0.0
    %1847 = vmatprep.subr.mxu0 0.0
    %1848 = vmatpush1.xpose.msra.mxu0 0.0
    %1849 = vmatprep.subr.mxu0 0.0
    %1850 = vmatpush1.xpose.msra.mxu0 0.0
    %1851 = vmatprep.subr.mxu0 0.0
    %1852 = vmatpush1.xpose.msra.mxu0 0.0
    %1853 = vmatprep.subr.mxu0 0.0
    %1854 = vmatpush1.xpose.msra.mxu0 0.0
    %1855 = vmatprep.subr.mxu0 0.0
    %1856 = vmatpush1.xpose.msra.mxu0 0.0
    %1857 = vmatprep.subr.mxu0 0.0
    %1858 = vmatpush1.xpose.msra.mxu0 0.0
    %1859 = vmatprep.subr.mxu0 0.0
    %1860 = vmatpush1.xpose.msra.mxu0 0.0
    %1861 = vmatprep.subr.mxu0 0.0
    %1862 = vmatpush1.xpose.msra.mxu0 0.0
    %1863 = vmatprep.subr.mxu0 0.0
    %1864 = vmatpush1.xpose.msra.mxu0 0.0
    %1865 = vmatprep.subr.mxu0 0.0
    %1866 = vmatpush1.xpose.msra.mxu0 0.0
    %1867 = vmatprep.subr.mxu0 0.0
    %1868 = vmatpush1.xpose.msra.mxu0 0.0
    %1869 = vmatprep.subr.mxu0 0.0
    %1870 = vmatpush1.xpose.msra.mxu0 0.0
    %1871 = vmatprep.subr.mxu0 0.0
    %1872 = vmatpush1.xpose.msra.mxu0 0.0
    %1873 = vmatprep.subr.mxu0 0.0
    %1874 = vmatpush1.xpose.msra.mxu0 0.0
    %1875 = vmatprep.subr.mxu0 0.0
    %1876 = vmatpush1.xpose.msra.mxu0 0.0
    %1877 = vmatprep.subr.mxu0 0.0
    %1878 = vmatpush1.xpose.msra.mxu0 0.0
    %1879 = vmatprep.subr.mxu0 0.0
    %1880 = vmatpush1.xpose.msra.mxu0 0.0
    %1881 = vmatprep.subr.mxu0 0.0
    %1882 = vmatpush1.xpose.msra.mxu0 0.0
    %1883 = vmatprep.subr.mxu0 0.0
    %1884 = vmatpush1.xpose.msra.mxu0 0.0
    %1885 = vmatprep.subr.mxu0 0.0
    %1886 = vmatpush1.xpose.msra.mxu0 0.0
    %1887 = vmatprep.subr.mxu0 0.0
    %1888 = vmatpush1.xpose.msra.mxu0 0.0
    %1889 = vmatprep.subr.mxu0 0.0
    %1890 = vmatpush1.xpose.msra.mxu0 0.0
    %1891 = vmatprep.subr.mxu0 0.0
    %1892 = vmatpush1.xpose.msra.mxu0 0.0
    %1893 = vmatprep.subr.mxu0 0.0
    %1894 = vmatpush1.xpose.msra.mxu0 0.0
    %1895 = vmatprep.subr.mxu0 0.0
    %1896 = vmatpush1.xpose.msra.mxu0 0.0
    %1897 = vmatprep.mubr.f32.mxu0 0.0
    %1898 = vmatmul.mubr.f32.gmra.mrb[0].mxu0 %v1828
    %v1899 = vpop.f32.mrb[0].mxu0
    %v1900 = vadd.f32 0.0, %v1899
    %v1901 = vpop.f32.mrb[0].mxu0
    %1902 = vdwg.mxu0
    %v1903 = vmul.f32 %v1824, 0.125
    %v1904 = vmul.f32 %v1900, 0.125
    %v1905 = vadd.f32 %v1903, %v555
    %v1906 = vadd.f32 %v1904, %v559
    %v1907 = vsel %vm564, %v1905, -inf
    %1908 = vmax.xlane.f32.xlu0 %v1907
    %v1909 = vpop.xlane.xlu0 %1908
    %v1910 = vsel %vm564, %v1906, -inf
    %1911 = vmax.xlane.f32.xlu0 %v1910
    %v1912 = vpop.xlane.xlu0 %1911
    %v1913 = vsub.f32 %v1905, %v1909
    %v1914 = vsub.f32 %v1906, %v1912
    %v1915 = vmul.f32 %v1913, 1.442695
    %v1916 = vpow.pop %v1915
    %v1917 = vmul.f32 %v1914, 1.442695
    %v1918 = vpow.pop %v1917
    %v1919 = vsel %vm564, %v1916, 0.0
    %1920 = vadd.xlane.f32.xlu0 %v1919
    %v1921 = vpop.xlane.xlu0 %1920
    %v1922 = vsel %vm564, %v1918, 0.0
    %1923 = vadd.xlane.f32.xlu0 %v1922
    %v1924 = vpop.xlane.xlu0 %1923
    %v1925 = vrcp.pop %v1921
    %v1926 = vrcp.pop %v1924
    %v1927 = vmul.f32 %v1916, %v1925
    %v1928 = vmul.f32 %v1918, %v1926
    %v1930 = vsel %vm564, %v1927, 0
    %1932 = vmatprep.subr.mxu0 0.0
    %1933 = vmatpush1.msra.mxu0 %v1743
    %1934 = vmatprep.subr.mxu0 0.0
    %1935 = vmatpush1.msra.mxu0 0.0
    %1936 = vmatprep.subr.mxu0 0.0
    %1937 = vmatpush1.msra.mxu0 0.0
    %1938 = vmatprep.subr.mxu0 0.0
    %1939 = vmatpush1.msra.mxu0 0.0
    %1940 = vmatprep.subr.mxu0 0.0
    %1941 = vmatpush1.msra.mxu0 0.0
    %1942 = vmatprep.subr.mxu0 0.0
    %1943 = vmatpush1.msra.mxu0 0.0
    %1944 = vmatprep.subr.mxu0 0.0
    %1945 = vmatpush1.msra.mxu0 0.0
    %1946 = vmatprep.subr.mxu0 0.0
    %1947 = vmatpush1.msra.mxu0 0.0
    %1948 = vmatprep.subr.mxu0 0.0
    %1949 = vmatpush1.msra.mxu0 0.0
    %1950 = vmatprep.subr.mxu0 0.0
    %1951 = vmatpush1.msra.mxu0 0.0
    %1952 = vmatprep.subr.mxu0 0.0
    %1953 = vmatpush1.msra.mxu0 0.0
    %1954 = vmatprep.subr.mxu0 0.0
    %1955 = vmatpush1.msra.mxu0 0.0
    %1956 = vmatprep.subr.mxu0 0.0
    %1957 = vmatpush1.msra.mxu0 0.0
    %1958 = vmatprep.subr.mxu0 0.0
    %1959 = vmatpush1.msra.mxu0 0.0
    %1960 = vmatprep.subr.mxu0 0.0
    %1961 = vmatpush1.msra.mxu0 0.0
    %1962 = vmatprep.subr.mxu0 0.0
    %1963 = vmatpush1.msra.mxu0 0.0
    %1964 = vmatprep.subr.mxu0 0.0
    %1965 = vmatpush1.msra.mxu0 0.0
    %1966 = vmatprep.subr.mxu0 0.0
    %1967 = vmatpush1.msra.mxu0 0.0
    %1968 = vmatprep.subr.mxu0 0.0
    %1969 = vmatpush1.msra.mxu0 0.0
    %1970 = vmatprep.subr.mxu0 0.0
    %1971 = vmatpush1.msra.mxu0 0.0
    %1972 = vmatprep.subr.mxu0 0.0
    %1973 = vmatpush1.msra.mxu0 0.0
    %1974 = vmatprep.subr.mxu0 0.0
    %1975 = vmatpush1.msra.mxu0 0.0
    %1976 = vmatprep.subr.mxu0 0.0
    %1977 = vmatpush1.msra.mxu0 0.0
    %1978 = vmatprep.subr.mxu0 0.0
    %1979 = vmatpush1.msra.mxu0 0.0
    %1980 = vmatprep.subr.mxu0 0.0
    %1981 = vmatpush1.msra.mxu0 0.0
    %1982 = vmatprep.subr.mxu0 0.0
    %1983 = vmatpush1.msra.mxu0 0.0
    %1984 = vmatprep.subr.mxu0 0.0
    %1985 = vmatpush1.msra.mxu0 0.0
    %1986 = vmatprep.subr.mxu0 0.0
    %1987 = vmatpush1.msra.mxu0 0.0
    %1988 = vmatprep.subr.mxu0 0.0
    %1989 = vmatpush1.msra.mxu0 0.0
    %1990 = vmatprep.subr.mxu0 0.0
    %1991 = vmatpush1.msra.mxu0 0.0
    %1992 = vmatprep.subr.mxu0 0.0
    %1993 = vmatpush1.msra.mxu0 0.0
    %1994 = vmatprep.subr.mxu0 0.0
    %1995 = vmatpush1.msra.mxu0 0.0
    %1996 = vmatprep.mubr.f32.mxu0 0.0
    %1997 = vmatmul.mubr.f32.gmra.mrb[0].mxu0 %v1930
    %v1998 = vpop.f32.mrb[0].mxu0
    %v1999 = vadd.f32 0.0, %v1998
    %v2000 = vpop.f32.mrb[0].mxu0
    %2001 = vdwg.mxu0
    %v2003 = vsel %vm564, %v1928, 0
    %2005 = vmatprep.subr.mxu0 0.0
    %2006 = vmatpush1.msra.mxu0 %v1748
    %2007 = vmatprep.subr.mxu0 0.0
    %2008 = vmatpush1.msra.mxu0 0.0
    %2009 = vmatprep.subr.mxu0 0.0
    %2010 = vmatpush1.msra.mxu0 0.0
    %2011 = vmatprep.subr.mxu0 0.0
    %2012 = vmatpush1.msra.mxu0 0.0
    %2013 = vmatprep.subr.mxu0 0.0
    %2014 = vmatpush1.msra.mxu0 0.0
    %2015 = vmatprep.subr.mxu0 0.0
    %2016 = vmatpush1.msra.mxu0 0.0
    %2017 = vmatprep.subr.mxu0 0.0
    %2018 = vmatpush1.msra.mxu0 0.0
    %2019 = vmatprep.subr.mxu0 0.0
    %2020 = vmatpush1.msra.mxu0 0.0
    %2021 = vmatprep.subr.mxu0 0.0
    %2022 = vmatpush1.msra.mxu0 0.0
    %2023 = vmatprep.subr.mxu0 0.0
    %2024 = vmatpush1.msra.mxu0 0.0
    %2025 = vmatprep.subr.mxu0 0.0
    %2026 = vmatpush1.msra.mxu0 0.0
    %2027 = vmatprep.subr.mxu0 0.0
    %2028 = vmatpush1.msra.mxu0 0.0
    %2029 = vmatprep.subr.mxu0 0.0
    %2030 = vmatpush1.msra.mxu0 0.0
    %2031 = vmatprep.subr.mxu0 0.0
    %2032 = vmatpush1.msra.mxu0 0.0
    %2033 = vmatprep.subr.mxu0 0.0
    %2034 = vmatpush1.msra.mxu0 0.0
    %2035 = vmatprep.subr.mxu0 0.0
    %2036 = vmatpush1.msra.mxu0 0.0
    %2037 = vmatprep.subr.mxu0 0.0
    %2038 = vmatpush1.msra.mxu0 0.0
    %2039 = vmatprep.subr.mxu0 0.0
    %2040 = vmatpush1.msra.mxu0 0.0
    %2041 = vmatprep.subr.mxu0 0.0
    %2042 = vmatpush1.msra.mxu0 0.0
    %2043 = vmatprep.subr.mxu0 0.0
    %2044 = vmatpush1.msra.mxu0 0.0
    %2045 = vmatprep.subr.mxu0 0.0
    %2046 = vmatpush1.msra.mxu0 0.0
    %2047 = vmatprep.subr.mxu0 0.0
    %2048 = vmatpush1.msra.mxu0 0.0
    %2049 = vmatprep.subr.mxu0 0.0
    %2050 = vmatpush1.msra.mxu0 0.0
    %2051 = vmatprep.subr.mxu0 0.0
    %2052 = vmatpush1.msra.mxu0 0.0
    %2053 = vmatprep.subr.mxu0 0.0
    %2054 = vmatpush1.msra.mxu0 0.0
    %2055 = vmatprep.subr.mxu0 0.0
    %2056 = vmatpush1.msra.mxu0 0.0
    %2057 = vmatprep.subr.mxu0 0.0
    %2058 = vmatpush1.msra.mxu0 0.0
    %2059 = vmatprep.subr.mxu0 0.0
    %2060 = vmatpush1.msra.mxu0 0.0
    %2061 = vmatprep.subr.mxu0 0.0
    %2062 = vmatpush1.msra.mxu0 0.0
    %2063 = vmatprep.subr.mxu0 0.0
    %2064 = vmatpush1.msra.mxu0 0.0
    %2065 = vmatprep.subr.mxu0 0.0
    %2066 = vmatpush1.msra.mxu0 0.0
    %2067 = vmatprep.subr.mxu0 0.0
    %2068 = vmatpush1.msra.mxu0 0.0
    %2069 = vmatprep.mubr.f32.mxu0 0.0
    %2070 = vmatmul.mubr.f32.gmra.mrb[0].mxu0 %v2003
    %v2071 = vpop.f32.mrb[0].mxu0
    %v2072 = vadd.f32 0.0, %v2071
    %v2073 = vpop.f32.mrb[0].mxu0
    %2074 = vdwg.mxu0
    %2075 = vrot.lane.b32.xlu0 %v1666, 64
    %v2076 = vpop.permute.xlu0 %2075
    %2077 = vrot.lane.b32.xlu0 %v1668, 64
    %v2078 = vpop.permute.xlu0 %2077
    %v2079 = vsel %vm374, %v2076, 0
    %v2081 = vsel %vm374, %v2078, 0
    %2083 = vmatprep.subr.mxu0 0.0
    %2084 = vmatpush1.xpose.msra.mxu0 %v2081
    %2085 = vmatprep.subr.mxu0 0.0
    %2086 = vmatpush1.xpose.msra.mxu0 0.0
    %2087 = vmatprep.subr.mxu0 0.0
    %2088 = vmatpush1.xpose.msra.mxu0 0.0
    %2089 = vmatprep.subr.mxu0 0.0
    %2090 = vmatpush1.xpose.msra.mxu0 0.0
    %2091 = vmatprep.subr.mxu0 0.0
    %2092 = vmatpush1.xpose.msra.mxu0 0.0
    %2093 = vmatprep.subr.mxu0 0.0
    %2094 = vmatpush1.xpose.msra.mxu0 0.0
    %2095 = vmatprep.subr.mxu0 0.0
    %2096 = vmatpush1.xpose.msra.mxu0 0.0
    %2097 = vmatprep.subr.mxu0 0.0
    %2098 = vmatpush1.xpose.msra.mxu0 0.0
    %2099 = vmatprep.subr.mxu0 0.0
    %2100 = vmatpush1.xpose.msra.mxu0 0.0
    %2101 = vmatprep.subr.mxu0 0.0
    %2102 = vmatpush1.xpose.msra.mxu0 0.0
    %2103 = vmatprep.subr.mxu0 0.0
    %2104 = vmatpush1.xpose.msra.mxu0 0.0
    %2105 = vmatprep.subr.mxu0 0.0
    %2106 = vmatpush1.xpose.msra.mxu0 0.0
    %2107 = vmatprep.subr.mxu0 0.0
    %2108 = vmatpush1.xpose.msra.mxu0 0.0
    %2109 = vmatprep.subr.mxu0 0.0
    %2110 = vmatpush1.xpose.msra.mxu0 0.0
    %2111 = vmatprep.subr.mxu0 0.0
    %2112 = vmatpush1.xpose.msra.mxu0 0.0
    %2113 = vmatprep.subr.mxu0 0.0
    %2114 = vmatpush1.xpose.msra.mxu0 0.0
    %2115 = vmatprep.subr.mxu0 0.0
    %2116 = vmatpush1.xpose.msra.mxu0 0.0
    %2117 = vmatprep.subr.mxu0 0.0
    %2118 = vmatpush1.xpose.msra.mxu0 0.0
    %2119 = vmatprep.subr.mxu0 0.0
    %2120 = vmatpush1.xpose.msra.mxu0 0.0
    %2121 = vmatprep.subr.mxu0 0.0
    %2122 = vmatpush1.xpose.msra.mxu0 0.0
    %2123 = vmatprep.subr.mxu0 0.0
    %2124 = vmatpush1.xpose.msra.mxu0 0.0
    %2125 = vmatprep.subr.mxu0 0.0
    %2126 = vmatpush1.xpose.msra.mxu0 0.0
    %2127 = vmatprep.subr.mxu0 0.0
    %2128 = vmatpush1.xpose.msra.mxu0 0.0
    %2129 = vmatprep.subr.mxu0 0.0
    %2130 = vmatpush1.xpose.msra.mxu0 0.0
    %2131 = vmatprep.subr.mxu0 0.0
    %2132 = vmatpush1.xpose.msra.mxu0 0.0
    %2133 = vmatprep.subr.mxu0 0.0
    %2134 = vmatpush1.xpose.msra.mxu0 0.0
    %2135 = vmatprep.subr.mxu0 0.0
    %2136 = vmatpush1.xpose.msra.mxu0 0.0
    %2137 = vmatprep.subr.mxu0 0.0
    %2138 = vmatpush1.xpose.msra.mxu0 0.0
    %2139 = vmatprep.subr.mxu0 0.0
    %2140 = vmatpush1.xpose.msra.mxu0 0.0
    %2141 = vmatprep.subr.mxu0 0.0
    %2142 = vmatpush1.xpose.msra.mxu0 0.0
    %2143 = vmatprep.subr.mxu0 0.0
    %2144 = vmatpush1.xpose.msra.mxu0 0.0
    %2145 = vmatprep.subr.mxu0 0.0
    %2146 = vmatpush1.xpose.msra.mxu0 0.0
    %2147 = vmatprep.mubr.f32.mxu0 0.0
    %2148 = vmatmul.mubr.f32.gmra.mrb[0].mxu0 %v2079
    %v2149 = vpop.f32.mrb[0].mxu0
    %v2150 = vadd.f32 0.0, %v2149
    %v2151 = vpop.f32.mrb[0].mxu0
    %2152 = vdwg.mxu0
    %2153 = vrot.lane.b32.xlu0 %v1672, 64
    %v2154 = vpop.permute.xlu0 %2153
    %2155 = vrot.lane.b32.xlu0 %v1674, 64
    %v2156 = vpop.permute.xlu0 %2155
    %v2157 = vsel %vm374, %v2154, 0
    %v2159 = vsel %vm374, %v2156, 0
    %2161 = vmatprep.subr.mxu0 0.0
    %2162 = vmatpush1.xpose.msra.mxu0 %v2159
    %2163 = vmatprep.subr.mxu0 0.0
    %2164 = vmatpush1.xpose.msra.mxu0 0.0
    %2165 = vmatprep.subr.mxu0 0.0
    %2166 = vmatpush1.xpose.msra.mxu0 0.0
    %2167 = vmatprep.subr.mxu0 0.0
    %2168 = vmatpush1.xpose.msra.mxu0 0.0
    %2169 = vmatprep.subr.mxu0 0.0
    %2170 = vmatpush1.xpose.msra.mxu0 0.0
    %2171 = vmatprep.subr.mxu0 0.0
    %2172 = vmatpush1.xpose.msra.mxu0 0.0
    %2173 = vmatprep.subr.mxu0 0.0
    %2174 = vmatpush1.xpose.msra.mxu0 0.0
    %2175 = vmatprep.subr.mxu0 0.0
    %2176 = vmatpush1.xpose.msra.mxu0 0.0
    %2177 = vmatprep.subr.mxu0 0.0
    %2178 = vmatpush1.xpose.msra.mxu0 0.0
    %2179 = vmatprep.subr.mxu0 0.0
    %2180 = vmatpush1.xpose.msra.mxu0 0.0
    %2181 = vmatprep.subr.mxu0 0.0
    %2182 = vmatpush1.xpose.msra.mxu0 0.0
    %2183 = vmatprep.subr.mxu0 0.0
    %2184 = vmatpush1.xpose.msra.mxu0 0.0
    %2185 = vmatprep.subr.mxu0 0.0
    %2186 = vmatpush1.xpose.msra.mxu0 0.0
    %2187 = vmatprep.subr.mxu0 0.0
    %2188 = vmatpush1.xpose.msra.mxu0 0.0
    %2189 = vmatprep.subr.mxu0 0.0
    %2190 = vmatpush1.xpose.msra.mxu0 0.0
    %2191 = vmatprep.subr.mxu0 0.0
    %2192 = vmatpush1.xpose.msra.mxu0 0.0
    %2193 = vmatprep.subr.mxu0 0.0
    %2194 = vmatpush1.xpose.msra.mxu0 0.0
    %2195 = vmatprep.subr.mxu0 0.0
    %2196 = vmatpush1.xpose.msra.mxu0 0.0
    %2197 = vmatprep.subr.mxu0 0.0
    %2198 = vmatpush1.xpose.msra.mxu0 0.0
    %2199 = vmatprep.subr.mxu0 0.0
    %2200 = vmatpush1.xpose.msra.mxu0 0.0
    %2201 = vmatprep.subr.mxu0 0.0
    %2202 = vmatpush1.xpose.msra.mxu0 0.0
    %2203 = vmatprep.subr.mxu0 0.0
    %2204 = vmatpush1.xpose.msra.mxu0 0.0
    %2205 = vmatprep.subr.mxu0 0.0
    %2206 = vmatpush1.xpose.msra.mxu0 0.0
    %2207 = vmatprep.subr.mxu0 0.0
    %2208 = vmatpush1.xpose.msra.mxu0 0.0
    %2209 = vmatprep.subr.mxu0 0.0
    %2210 = vmatpush1.xpose.msra.mxu0 0.0
    %2211 = vmatprep.subr.mxu0 0.0
    %2212 = vmatpush1.xpose.msra.mxu0 0.0
    %2213 = vmatprep.subr.mxu0 0.0
    %2214 = vmatpush1.xpose.msra.mxu0 0.0
    %2215 = vmatprep.subr.mxu0 0.0
    %2216 = vmatpush1.xpose.msra.mxu0 0.0
    %2217 = vmatprep.subr.mxu0 0.0
    %2218 = vmatpush1.xpose.msra.mxu0 0.0
    %2219 = vmatprep.subr.mxu0 0.0
    %2220 = vmatpush1.xpose.msra.mxu0 0.0
    %2221 = vmatprep.subr.mxu0 0.0
    %2222 = vmatpush1.xpose.msra.mxu0 0.0
    %2223 = vmatprep.subr.mxu0 0.0
    %2224 = vmatpush1.xpose.msra.mxu0 0.0
    %2225 = vmatprep.mubr.f32.mxu0 0.0
    %2226 = vmatmul.mubr.f32.gmra.mrb[0].mxu0 %v2157
    %v2227 = vpop.f32.mrb[0].mxu0
    %v2228 = vadd.f32 0.0, %v2227
    %v2229 = vpop.f32.mrb[0].mxu0
    %2230 = vdwg.mxu0
    %v2231 = vmul.f32 %v2150, 0.125
    %v2232 = vmul.f32 %v2228, 0.125
    %v2233 = vadd.f32 %v2231, %v555
    %v2234 = vadd.f32 %v2232, %v559
    %v2235 = vsel %vm564, %v2233, -inf
    %2236 = vmax.xlane.f32.xlu0 %v2235
    %v2237 = vpop.xlane.xlu0 %2236
    %v2238 = vsel %vm564, %v2234, -inf
    %2239 = vmax.xlane.f32.xlu0 %v2238
    %v2240 = vpop.xlane.xlu0 %2239
    %v2241 = vsub.f32 %v2233, %v2237
    %v2242 = vsub.f32 %v2234, %v2240
    %v2243 = vmul.f32 %v2241, 1.442695
    %v2244 = vpow.pop %v2243
    %v2245 = vmul.f32 %v2242, 1.442695
    %v2246 = vpow.pop %v2245
    %v2247 = vsel %vm564, %v2244, 0.0
    %2248 = vadd.xlane.f32.xlu0 %v2247
    %v2249 = vpop.xlane.xlu0 %2248
    %v2250 = vsel %vm564, %v2246, 0.0
    %2251 = vadd.xlane.f32.xlu0 %v2250
    %v2252 = vpop.xlane.xlu0 %2251
    %v2253 = vrcp.pop %v2249
    %v2254 = vrcp.pop %v2252
    %v2255 = vmul.f32 %v2244, %v2253
    %v2256 = vmul.f32 %v2246, %v2254
    %2258 = vrot.lane.b32.xlu0 %v1743, 64
    %v2259 = vpop.permute.xlu0 %2258
    %v2262 = vsel %vm564, %v2255, 0
    %2264 = vmatprep.subr.mxu0 0.0
    %2265 = vmatpush1.msra.mxu0 %v2259
    %2266 = vmatprep.subr.mxu0 0.0
    %2267 = vmatpush1.msra.mxu0 0.0
    %2268 = vmatprep.subr.mxu0 0.0
    %2269 = vmatpush1.msra.mxu0 0.0
    %2270 = vmatprep.subr.mxu0 0.0
    %2271 = vmatpush1.msra.mxu0 0.0
    %2272 = vmatprep.subr.mxu0 0.0
    %2273 = vmatpush1.msra.mxu0 0.0
    %2274 = vmatprep.subr.mxu0 0.0
    %2275 = vmatpush1.msra.mxu0 0.0
    %2276 = vmatprep.subr.mxu0 0.0
    %2277 = vmatpush1.msra.mxu0 0.0
    %2278 = vmatprep.subr.mxu0 0.0
    %2279 = vmatpush1.msra.mxu0 0.0
    %2280 = vmatprep.subr.mxu0 0.0
    %2281 = vmatpush1.msra.mxu0 0.0
    %2282 = vmatprep.subr.mxu0 0.0
    %2283 = vmatpush1.msra.mxu0 0.0
    %2284 = vmatprep.subr.mxu0 0.0
    %2285 = vmatpush1.msra.mxu0 0.0
    %2286 = vmatprep.subr.mxu0 0.0
    %2287 = vmatpush1.msra.mxu0 0.0
    %2288 = vmatprep.subr.mxu0 0.0
    %2289 = vmatpush1.msra.mxu0 0.0
    %2290 = vmatprep.subr.mxu0 0.0
    %2291 = vmatpush1.msra.mxu0 0.0
    %2292 = vmatprep.subr.mxu0 0.0
    %2293 = vmatpush1.msra.mxu0 0.0
    %2294 = vmatprep.subr.mxu0 0.0
    %2295 = vmatpush1.msra.mxu0 0.0
    %2296 = vmatprep.subr.mxu0 0.0
    %2297 = vmatpush1.msra.mxu0 0.0
    %2298 = vmatprep.subr.mxu0 0.0
    %2299 = vmatpush1.msra.mxu0 0.0
    %2300 = vmatprep.subr.mxu0 0.0
    %2301 = vmatpush1.msra.mxu0 0.0
    %2302 = vmatprep.subr.mxu0 0.0
    %2303 = vmatpush1.msra.mxu0 0.0
    %2304 = vmatprep.subr.mxu0 0.0
    %2305 = vmatpush1.msra.mxu0 0.0
    %2306 = vmatprep.subr.mxu0 0.0
    %2307 = vmatpush1.msra.mxu0 0.0
    %2308 = vmatprep.subr.mxu0 0.0
    %2309 = vmatpush1.msra.mxu0 0.0
    %2310 = vmatprep.subr.mxu0 0.0
    %2311 = vmatpush1.msra.mxu0 0.0
    %2312 = vmatprep.subr.mxu0 0.0
    %2313 = vmatpush1.msra.mxu0 0.0
    %2314 = vmatprep.subr.mxu0 0.0
    %2315 = vmatpush1.msra.mxu0 0.0
    %2316 = vmatprep.subr.mxu0 0.0
    %2317 = vmatpush1.msra.mxu0 0.0
    %2318 = vmatprep.subr.mxu0 0.0
    %2319 = vmatpush1.msra.mxu0 0.0
    %2320 = vmatprep.subr.mxu0 0.0
    %2321 = vmatpush1.msra.mxu0 0.0
    %2322 = vmatprep.subr.mxu0 0.0
    %2323 = vmatpush1.msra.mxu0 0.0
    %2324 = vmatprep.subr.mxu0 0.0
    %2325 = vmatpush1.msra.mxu0 0.0
    %2326 = vmatprep.subr.mxu0 0.0
    %2327 = vmatpush1.msra.mxu0 0.0
    %2328 = vmatprep.mubr.f32.mxu0 0.0
    %2329 = vmatmul.mubr.f32.gmra.mrb[0].mxu0 %v2262
    %v2330 = vpop.f32.mrb[0].mxu0
    %v2331 = vadd.f32 0.0, %v2330
    %v2332 = vpop.f32.mrb[0].mxu0
    %2333 = vdwg.mxu0
    %2335 = vrot.lane.b32.xlu0 %v1748, 64
    %v2336 = vpop.permute.xlu0 %2335
    %v2339 = vsel %vm564, %v2256, 0
    %2341 = vmatprep.subr.mxu0 0.0
    %2342 = vmatpush1.msra.mxu0 %v2336
    %2343 = vmatprep.subr.mxu0 0.0
    %2344 = vmatpush1.msra.mxu0 0.0
    %2345 = vmatprep.subr.mxu0 0.0
    %2346 = vmatpush1.msra.mxu0 0.0
    %2347 = vmatprep.subr.mxu0 0.0
    %2348 = vmatpush1.msra.mxu0 0.0
    %2349 = vmatprep.subr.mxu0 0.0
    %2350 = vmatpush1.msra.mxu0 0.0
    %2351 = vmatprep.subr.mxu0 0.0
    %2352 = vmatpush1.msra.mxu0 0.0
    %2353 = vmatprep.subr.mxu0 0.0
    %2354 = vmatpush1.msra.mxu0 0.0
    %2355 = vmatprep.subr.mxu0 0.0
    %2356 = vmatpush1.msra.mxu0 0.0
    %2357 = vmatprep.subr.mxu0 0.0
    %2358 = vmatpush1.msra.mxu0 0.0
    %2359 = vmatprep.subr.mxu0 0.0
    %2360 = vmatpush1.msra.mxu0 0.0
    %2361 = vmatprep.subr.mxu0 0.0
    %2362 = vmatpush1.msra.mxu0 0.0
    %2363 = vmatprep.subr.mxu0 0.0
    %2364 = vmatpush1.msra.mxu0 0.0
    %2365 = vmatprep.subr.mxu0 0.0
    %2366 = vmatpush1.msra.mxu0 0.0
    %2367 = vmatprep.subr.mxu0 0.0
    %2368 = vmatpush1.msra.mxu0 0.0
    %2369 = vmatprep.subr.mxu0 0.0
    %2370 = vmatpush1.msra.mxu0 0.0
    %2371 = vmatprep.subr.mxu0 0.0
    %2372 = vmatpush1.msra.mxu0 0.0
    %2373 = vmatprep.subr.mxu0 0.0
    %2374 = vmatpush1.msra.mxu0 0.0
    %2375 = vmatprep.subr.mxu0 0.0
    %2376 = vmatpush1.msra.mxu0 0.0
    %2377 = vmatprep.subr.mxu0 0.0
    %2378 = vmatpush1.msra.mxu0 0.0
    %2379 = vmatprep.subr.mxu0 0.0
    %2380 = vmatpush1.msra.mxu0 0.0
    %2381 = vmatprep.subr.mxu0 0.0
    %2382 = vmatpush1.msra.mxu0 0.0
    %2383 = vmatprep.subr.mxu0 0.0
    %2384 = vmatpush1.msra.mxu0 0.0
    %2385 = vmatprep.subr.mxu0 0.0
    %2386 = vmatpush1.msra.mxu0 0.0
    %2387 = vmatprep.subr.mxu0 0.0
    %2388 = vmatpush1.msra.mxu0 0.0
    %2389 = vmatprep.subr.mxu0 0.0
    %2390 = vmatpush1.msra.mxu0 0.0
    %2391 = vmatprep.subr.mxu0 0.0
    %2392 = vmatpush1.msra.mxu0 0.0
    %2393 = vmatprep.subr.mxu0 0.0
    %2394 = vmatpush1.msra.mxu0 0.0
    %2395 = vmatprep.subr.mxu0 0.0
    %2396 = vmatpush1.msra.mxu0 0.0
    %2397 = vmatprep.subr.mxu0 0.0
    %2398 = vmatpush1.msra.mxu0 0.0
    %2399 = vmatprep.subr.mxu0 0.0
    %2400 = vmatpush1.msra.mxu0 0.0
    %2401 = vmatprep.subr.mxu0 0.0
    %2402 = vmatpush1.msra.mxu0 0.0
    %2403 = vmatprep.subr.mxu0 0.0
    %2404 = vmatpush1.msra.mxu0 0.0
    %2405 = vmatprep.mubr.f32.mxu0 0.0
    %2406 = vmatmul.mubr.f32.gmra.mrb[0].mxu0 %v2339
    %v2407 = vpop.f32.mrb[0].mxu0
    %v2408 = vadd.f32 0.0, %v2407
    %v2409 = vpop.f32.mrb[0].mxu0
    %2410 = vdwg.mxu0
    %2413 = vrot.lane.b32.xlu0 %v2331, 64
    %v2414 = vpop.permute.xlu0 %2413
    %2415 = vrot.lane.b32.xlu0 %v2408, 64
    %v2416 = vpop.permute.xlu0 %2415
    %v2419 = vsel %vm374, %v1999, %v2414
    %v2420 = vsel %vm374, %v2072, %v2416
    %s2421 = scalar_lea.vmem %s7, 128
    %v2422 = vld [vmem:[%s2421] sm:$0xff]
    %v2423 = vld [vmem:[%s2421 + $0x8] sm:$0xff]
    %v2424 = vld [vmem:[%s2421 + $0x10] sm:$0xff]
    %v2425 = vld [vmem:[%s2421 + $0x18] sm:$0xff]
    %v2426 = vld [vmem:[%s2421 + $0x20] sm:$0xff]
    %v2427 = vld [vmem:[%s2421 + $0x28] sm:$0xff]
    %v2428 = vld [vmem:[%s2421 + $0x30] sm:$0xff]
    %v2429 = vld [vmem:[%s2421 + $0x38] sm:$0xff]
    %v2430 = vld [vmem:[%s2421 + $0x40] sm:$0xff]
    %v2431 = vld [vmem:[%s2421 + $0x48] sm:$0xff]
    %v2432 = vld [vmem:[%s2421 + $0x50] sm:$0xff]
    %v2433 = vld [vmem:[%s2421 + $0x58] sm:$0xff]
    %v2434 = vld [vmem:[%s2421 + $0x60] sm:$0xff]
    %v2435 = vld [vmem:[%s2421 + $0x68] sm:$0xff]
    %v2436 = vld [vmem:[%s2421 + $0x70] sm:$0xff]
    %v2437 = vld [vmem:[%s2421 + $0x78] sm:$0xff]
    %s2438 = scalar_lea.vmem %s8, 1
    %v2439 = vld [vmem:[%s2438] sm:$0x1]
    %v2441 = vlaneseq
    %v2442 = vshrl.u32 %v2441, 7
    %v2443 = vsub.s32 0, %v2442
    %v2444 = vrot.slane %v2439, %v2443
    %2446 = vmatprep.subr.mxu0 0.0
    %2447 = vmatpush1.msra.mxu0 %v2422
    %2448 = vmatprep.subr.mxu0 0.0
    %2449 = vmatpush1.msra.mxu0 %v2423
    %2450 = vmatprep.subr.mxu0 0.0
    %2451 = vmatpush1.msra.mxu0 %v2424
    %2452 = vmatprep.subr.mxu0 0.0
    %2453 = vmatpush1.msra.mxu0 %v2425
    %2454 = vmatprep.subr.mxu0 0.0
    %2455 = vmatpush1.msra.mxu0 %v2426
    %2456 = vmatprep.subr.mxu0 0.0
    %2457 = vmatpush1.msra.mxu0 %v2427
    %2458 = vmatprep.subr.mxu0 0.0
    %2459 = vmatpush1.msra.mxu0 %v2428
    %2460 = vmatprep.subr.mxu0 0.0
    %2461 = vmatpush1.msra.mxu0 %v2429
    %2462 = vmatprep.subr.mxu0 0.0
    %2463 = vmatpush1.msra.mxu0 %v2430
    %2464 = vmatprep.subr.mxu0 0.0
    %2465 = vmatpush1.msra.mxu0 %v2431
    %2466 = vmatprep.subr.mxu0 0.0
    %2467 = vmatpush1.msra.mxu0 %v2432
    %2468 = vmatprep.subr.mxu0 0.0
    %2469 = vmatpush1.msra.mxu0 %v2433
    %2470 = vmatprep.subr.mxu0 0.0
    %2471 = vmatpush1.msra.mxu0 %v2434
    %2472 = vmatprep.subr.mxu0 0.0
    %2473 = vmatpush1.msra.mxu0 %v2435
    %2474 = vmatprep.subr.mxu0 0.0
    %2475 = vmatpush1.msra.mxu0 %v2436
    %2476 = vmatprep.subr.mxu0 0.0
    %2477 = vmatpush1.msra.mxu0 %v2437
    %2478 = vmatprep.subr.mxu0 0.0
    %2479 = vmatpush1.msra.mxu0 0.0
    %2480 = vmatprep.subr.mxu0 0.0
    %2481 = vmatpush1.msra.mxu0 0.0
    %2482 = vmatprep.subr.mxu0 0.0
    %2483 = vmatpush1.msra.mxu0 0.0
    %2484 = vmatprep.subr.mxu0 0.0
    %2485 = vmatpush1.msra.mxu0 0.0
    %2486 = vmatprep.subr.mxu0 0.0
    %2487 = vmatpush1.msra.mxu0 0.0
    %2488 = vmatprep.subr.mxu0 0.0
    %2489 = vmatpush1.msra.mxu0 0.0
    %2490 = vmatprep.subr.mxu0 0.0
    %2491 = vmatpush1.msra.mxu0 0.0
    %2492 = vmatprep.subr.mxu0 0.0
    %2493 = vmatpush1.msra.mxu0 0.0
    %2494 = vmatprep.subr.mxu0 0.0
    %2495 = vmatpush1.msra.mxu0 0.0
    %2496 = vmatprep.subr.mxu0 0.0
    %2497 = vmatpush1.msra.mxu0 0.0
    %2498 = vmatprep.subr.mxu0 0.0
    %2499 = vmatpush1.msra.mxu0 0.0
    %2500 = vmatprep.subr.mxu0 0.0
    %2501 = vmatpush1.msra.mxu0 0.0
    %2502 = vmatprep.subr.mxu0 0.0
    %2503 = vmatpush1.msra.mxu0 0.0
    %2504 = vmatprep.subr.mxu0 0.0
    %2505 = vmatpush1.msra.mxu0 0.0
    %2506 = vmatprep.subr.mxu0 0.0
    %2507 = vmatpush1.msra.mxu0 0.0
    %2508 = vmatprep.subr.mxu0 0.0
    %2509 = vmatpush1.msra.mxu0 0.0
    %2510 = vmatprep.mubr.f32.mxu0 0.0
    %2511 = vmatmul.mubr.f32.gmra.mrb[0].mxu0 %v2419
    %v2512 = vpop.f32.mrb[0].mxu0
    %v2513 = vadd.f32 %v2444, %v2512
    %v2514 = vpop.f32.mrb[0].mxu0
    %2515 = vmatprep.mubr.f32.mxu0 0.0
    %2516 = vmatmul.mubr.f32.gmra.mrb[0].mxu0 %v2420
    %v2517 = vpop.f32.mrb[0].mxu0
    %v2518 = vadd.f32 %v2444, %v2517
    %v2519 = vpop.f32.mrb[0].mxu0
    %2520 = vdwg.mxu0
    %v2521 = vadd.f32 %v2513, %v1530
    %v2522 = vadd.f32 %v2518, %v1531
    %s2523 = scalar_lea.vmem %s9, 1
    %v2524 = vld [vmem:[%s2523] sm:$0x1]
    %s2525 = scalar_lea.vmem %s10, 1
    %v2526 = vld [vmem:[%s2525] sm:$0x1]
    %2527 = vadd.xlane.f32.xlu0 %v2521
    %v2528 = vpop.xlane.xlu0 %2527
    %2529 = vadd.xlane.f32.xlu0 %v2522
    %v2530 = vpop.xlane.xlu0 %2529
    %v2531 = vmul.f32 %v2528, %v122
    %v2532 = vmul.f32 %v2530, %v122
    %v2533 = vsub.f32 %v2521, %v2531
    %v2534 = vsub.f32 %v2522, %v2532
    %v2535 = vmul.f32 %v2533, %v2533
    %v2536 = vmul.f32 %v2534, %v2534
    %2537 = vadd.xlane.f32.xlu0 %v2535
    %v2538 = vpop.xlane.xlu0 %2537
    %2539 = vadd.xlane.f32.xlu0 %v2536
    %v2540 = vpop.xlane.xlu0 %2539
    %v2541 = vmul.f32 %v2538, %v122
    %v2542 = vmul.f32 %v2540, %v122
    %v2543 = vadd.f32 %v2541, 1e-12
    %v2544 = vadd.f32 %v2542, 1e-12
    %v2545 = vrsqrt.pop %v2543
    %v2546 = vrsqrt.pop %v2544
    %v2547 = vmul.f32 %v2533, %v2545
    %v2548 = vmul.f32 %v2534, %v2546
    %v2550 = vlaneseq
    %v2551 = vshrl.u32 %v2550, 7
    %v2552 = vsub.s32 0, %v2551
    %v2553 = vrot.slane %v2524, %v2552
    %v2555 = vmul.f32 %v2547, %v2553
    %v2556 = vmul.f32 %v2548, %v2553
    %v2558 = vlaneseq
    %v2559 = vshrl.u32 %v2558, 7
    %v2560 = vsub.s32 0, %v2559
    %v2561 = vrot.slane %v2526, %v2560
    %v2563 = vadd.f32 %v2555, %v2561
    %v2564 = vadd.f32 %v2556, %v2561
    %s2565 = scalar_lea.vmem [#allocation2], 256
    %v2566 = vld [vmem:[%s2565] sm:$0xff]
    %v2567 = vld [vmem:[%s2565 + $0x8] sm:$0xff]
    %v2568 = vld [vmem:[%s2565 + $0x10] sm:$0xff]
    %v2569 = vld [vmem:[%s2565 + $0x18] sm:$0xff]
    %v2570 = vld [vmem:[%s2565 + $0x20] sm:$0xff]
    %v2571 = vld [vmem:[%s2565 + $0x28] sm:$0xff]
    %v2572 = vld [vmem:[%s2565 + $0x30] sm:$0xff]
    %v2573 = vld [vmem:[%s2565 + $0x38] sm:$0xff]
    %v2574 = vld [vmem:[%s2565 + $0x40] sm:$0xff]
    %v2575 = vld [vmem:[%s2565 + $0x48] sm:$0xff]
    %v2576 = vld [vmem:[%s2565 + $0x50] sm:$0xff]
    %v2577 = vld [vmem:[%s2565 + $0x58] sm:$0xff]
    %v2578 = vld [vmem:[%s2565 + $0x60] sm:$0xff]
    %v2579 = vld [vmem:[%s2565 + $0x68] sm:$0xff]
    %v2580 = vld [vmem:[%s2565 + $0x70] sm:$0xff]
    %v2581 = vld [vmem:[%s2565 + $0x78] sm:$0xff]
    %v2582 = vld [vmem:[%s2565 + $0x80] sm:$0xff]
    %v2583 = vld [vmem:[%s2565 + $0x88] sm:$0xff]
    %v2584 = vld [vmem:[%s2565 + $0x90] sm:$0xff]
    %v2585 = vld [vmem:[%s2565 + $0x98] sm:$0xff]
    %v2586 = vld [vmem:[%s2565 + $0xa0] sm:$0xff]
    %v2587 = vld [vmem:[%s2565 + $0xa8] sm:$0xff]
    %v2588 = vld [vmem:[%s2565 + $0xb0] sm:$0xff]
    %v2589 = vld [vmem:[%s2565 + $0xb8] sm:$0xff]
    %v2590 = vld [vmem:[%s2565 + $0xc0] sm:$0xff]
    %v2591 = vld [vmem:[%s2565 + $0xc8] sm:$0xff]
    %v2592 = vld [vmem:[%s2565 + $0xd0] sm:$0xff]
    %v2593 = vld [vmem:[%s2565 + $0xd8] sm:$0xff]
    %v2594 = vld [vmem:[%s2565 + $0xe0] sm:$0xff]
    %v2595 = vld [vmem:[%s2565 + $0xe8] sm:$0xff]
    %v2596 = vld [vmem:[%s2565 + $0xf0] sm:$0xff]
    %v2597 = vld [vmem:[%s2565 + $0xf8] sm:$0xff]
    %s2598 = scalar_lea.vmem %s12, 2
    %v2599 = vld [vmem:[%s2598] sm:$0x3]
    %v2601 = vlaneseq
    %v2602 = vshrl.u32 %v2601, 7
    %v2603 = vsub.s32 0, %v2602
    %v2604 = vrot.slane %v2599, %v2603
    %v2605 = vlaneseq
    %v2606 = vshrl.u32 %v2605, 7
    %v2607 = vsub.s32 1, %v2606
    %v2608 = vrot.slane %v2599, %v2607
    %2611 = vmatprep.subr.mxu0 %v2567
    %2612 = vmatpush1.msra.mxu0 %v2566
    %2613 = vmatprep.subr.mxu0 %v2569
    %2614 = vmatpush1.msra.mxu0 %v2568
    %2615 = vmatprep.subr.mxu0 %v2571
    %2616 = vmatpush1.msra.mxu0 %v2570
    %2617 = vmatprep.subr.mxu0 %v2573
    %2618 = vmatpush1.msra.mxu0 %v2572
    %2619 = vmatprep.subr.mxu0 %v2575
    %2620 = vmatpush1.msra.mxu0 %v2574
    %2621 = vmatprep.subr.mxu0 %v2577
    %2622 = vmatpush1.msra.mxu0 %v2576
    %2623 = vmatprep.subr.mxu0 %v2579
    %2624 = vmatpush1.msra.mxu0 %v2578
    %2625 = vmatprep.subr.mxu0 %v2581
    %2626 = vmatpush1.msra.mxu0 %v2580
    %2627 = vmatprep.subr.mxu0 %v2583
    %2628 = vmatpush1.msra.mxu0 %v2582
    %2629 = vmatprep.subr.mxu0 %v2585
    %2630 = vmatpush1.msra.mxu0 %v2584
    %2631 = vmatprep.subr.mxu0 %v2587
    %2632 = vmatpush1.msra.mxu0 %v2586
    %2633 = vmatprep.subr.mxu0 %v2589
    %2634 = vmatpush1.msra.mxu0 %v2588
    %2635 = vmatprep.subr.mxu0 %v2591
    %2636 = vmatpush1.msra.mxu0 %v2590
    %2637 = vmatprep.subr.mxu0 %v2593
    %2638 = vmatpush1.msra.mxu0 %v2592
    %2639 = vmatprep.subr.mxu0 %v2595
    %2640 = vmatpush1.msra.mxu0 %v2594
    %2641 = vmatprep.subr.mxu0 %v2597
    %2642 = vmatpush1.msra.mxu0 %v2596
    %2643 = vmatprep.subr.mxu0 0.0
    %2644 = vmatpush1.msra.mxu0 0.0
    %2645 = vmatprep.subr.mxu0 0.0
    %2646 = vmatpush1.msra.mxu0 0.0
    %2647 = vmatprep.subr.mxu0 0.0
    %2648 = vmatpush1.msra.mxu0 0.0
    %2649 = vmatprep.subr.mxu0 0.0
    %2650 = vmatpush1.msra.mxu0 0.0
    %2651 = vmatprep.subr.mxu0 0.0
    %2652 = vmatpush1.msra.mxu0 0.0
    %2653 = vmatprep.subr.mxu0 0.0
    %2654 = vmatpush1.msra.mxu0 0.0
    %2655 = vmatprep.subr.mxu0 0.0
    %2656 = vmatpush1.msra.mxu0 0.0
    %2657 = vmatprep.subr.mxu0 0.0
    %2658 = vmatpush1.msra.mxu0 0.0
    %2659 = vmatprep.subr.mxu0 0.0
    %2660 = vmatpush1.msra.mxu0 0.0
    %2661 = vmatprep.subr.mxu0 0.0
    %2662 = vmatpush1.msra.mxu0 0.0
    %2663 = vmatprep.subr.mxu0 0.0
    %2664 = vmatpush1.msra.mxu0 0.0
    %2665 = vmatprep.subr.mxu0 0.0
    %2666 = vmatpush1.msra.mxu0 0.0
    %2667 = vmatprep.subr.mxu0 0.0
    %2668 = vmatpush1.msra.mxu0 0.0
    %2669 = vmatprep.subr.mxu0 0.0
    %2670 = vmatpush1.msra.mxu0 0.0
    %2671 = vmatprep.subr.mxu0 0.0
    %2672 = vmatpush1.msra.mxu0 0.0
    %2673 = vmatprep.subr.mxu0 0.0
    %2674 = vmatpush1.msra.mxu0 0.0
    %2675 = vmatprep.mubr.f32.mxu0 0.0
    %2676 = vmatmul.mubr.f32.gmra.mrb[0].mxu0 %v2563
    %v2677 = vpop.f32.mrb[0].mxu0
    %v2678 = vadd.f32 %v2604, %v2677
    %v2679 = vpop.f32.mrb[0].mxu0
    %v2680 = vadd.f32 %v2608, %v2679
    %2681 = vmatprep.mubr.f32.mxu0 0.0
    %2682 = vmatmul.mubr.f32.gmra.mrb[0].mxu0 %v2564
    %v2683 = vpop.f32.mrb[0].mxu0
    %v2684 = vadd.f32 %v2604, %v2683
    %v2685 = vpop.f32.mrb[0].mxu0
    %v2686 = vadd.f32 %v2608, %v2685
    %2687 = vdwg.mxu0
    %v2688 = vmul.f32 %v2678, %v2678
    %v2689 = vmul.f32 %v2680, %v2680
    %v2690 = vmul.f32 %v2684, %v2684
    %v2691 = vmul.f32 %v2686, %v2686
    %v2692 = vmul.f32 %v2678, %v2688
    %v2693 = vmul.f32 %v2680, %v2689
    %v2694 = vmul.f32 %v2684, %v2690
    %v2695 = vmul.f32 %v2686, %v2691
    %v2696 = vmul.f32 %v2692, 0.044715
    %v2697 = vmul.f32 %v2693, 0.044715
    %v2698 = vmul.f32 %v2694, 0.044715
    %v2699 = vmul.f32 %v2695, 0.044715
    %v2700 = vadd.f32 %v2678, %v2696
    %v2701 = vadd.f32 %v2680, %v2697
    %v2702 = vadd.f32 %v2684, %v2698
    %v2703 = vadd.f32 %v2686, %v2699
    %v2704 = vmul.f32 %v2700, 0.7978846
    %v2705 = vmul.f32 %v2701, 0.7978846
    %v2706 = vmul.f32 %v2702, 0.7978846
    %v2707 = vmul.f32 %v2703, 0.7978846
    %v2708 = vtanh.pop %v2704
    %v2709 = vtanh.pop %v2705
    %v2710 = vtanh.pop %v2706
    %v2711 = vtanh.pop %v2707
    %v2712 = vadd.f32 %v2708, 1.0
    %v2713 = vadd.f32 %v2709, 1.0
    %v2714 = vadd.f32 %v2710, 1.0
    %v2715 = vadd.f32 %v2711, 1.0
    %v2716 = vmul.f32 %v2712, 0.5
    %v2717 = vmul.f32 %v2713, 0.5
    %v2718 = vmul.f32 %v2714, 0.5
    %v2719 = vmul.f32 %v2715, 0.5
    %v2720 = vmul.f32 %v2678, %v2716
    %v2721 = vmul.f32 %v2680, %v2717
    %v2722 = vmul.f32 %v2684, %v2718
    %v2723 = vmul.f32 %v2686, %v2719
    %s2724 = scalar_lea.vmem [#allocation5], 256
    %v2725 = vld [vmem:[%s2724] sm:$0xff]
    %v2726 = vld [vmem:[%s2724 + $0x8] sm:$0xff]
    %v2727 = vld [vmem:[%s2724 + $0x10] sm:$0xff]
    %v2728 = vld [vmem:[%s2724 + $0x18] sm:$0xff]
    %v2729 = vld [vmem:[%s2724 + $0x20] sm:$0xff]
    %v2730 = vld [vmem:[%s2724 + $0x28] sm:$0xff]
    %v2731 = vld [vmem:[%s2724 + $0x30] sm:$0xff]
    %v2732 = vld [vmem:[%s2724 + $0x38] sm:$0xff]
    %v2733 = vld [vmem:[%s2724 + $0x40] sm:$0xff]
    %v2734 = vld [vmem:[%s2724 + $0x48] sm:$0xff]
    %v2735 = vld [vmem:[%s2724 + $0x50] sm:$0xff]
    %v2736 = vld [vmem:[%s2724 + $0x58] sm:$0xff]
    %v2737 = vld [vmem:[%s2724 + $0x60] sm:$0xff]
    %v2738 = vld [vmem:[%s2724 + $0x68] sm:$0xff]
    %v2739 = vld [vmem:[%s2724 + $0x70] sm:$0xff]
    %v2740 = vld [vmem:[%s2724 + $0x78] sm:$0xff]
    %v2741 = vld [vmem:[%s2724 + $0x80] sm:$0xff]
    %v2742 = vld [vmem:[%s2724 + $0x88] sm:$0xff]
    %v2743 = vld [vmem:[%s2724 + $0x90] sm:$0xff]
    %v2744 = vld [vmem:[%s2724 + $0x98] sm:$0xff]
    %v2745 = vld [vmem:[%s2724 + $0xa0] sm:$0xff]
    %v2746 = vld [vmem:[%s2724 + $0xa8] sm:$0xff]
    %v2747 = vld [vmem:[%s2724 + $0xb0] sm:$0xff]
    %v2748 = vld [vmem:[%s2724 + $0xb8] sm:$0xff]
    %v2749 = vld [vmem:[%s2724 + $0xc0] sm:$0xff]
    %v2750 = vld [vmem:[%s2724 + $0xc8] sm:$0xff]
    %v2751 = vld [vmem:[%s2724 + $0xd0] sm:$0xff]
    %v2752 = vld [vmem:[%s2724 + $0xd8] sm:$0xff]
    %v2753 = vld [vmem:[%s2724 + $0xe0] sm:$0xff]
    %v2754 = vld [vmem:[%s2724 + $0xe8] sm:$0xff]
    %v2755 = vld [vmem:[%s2724 + $0xf0] sm:$0xff]
    %v2756 = vld [vmem:[%s2724 + $0xf8] sm:$0xff]
    %s2757 = scalar_lea.vmem %s14, 1
    %v2758 = vld [vmem:[%s2757] sm:$0x1]
    %v2760 = vlaneseq
    %v2761 = vshrl.u32 %v2760, 7
    %v2762 = vsub.s32 0, %v2761
    %v2763 = vrot.slane %v2758, %v2762
    %2765 = vmatprep.subr.mxu0 0.0
    %2766 = vmatpush1.msra.mxu0 %v2725
    %2767 = vmatprep.subr.mxu0 0.0
    %2768 = vmatpush1.msra.mxu0 %v2726
    %2769 = vmatprep.subr.mxu0 0.0
    %2770 = vmatpush1.msra.mxu0 %v2727
    %2771 = vmatprep.subr.mxu0 0.0
    %2772 = vmatpush1.msra.mxu0 %v2728
    %2773 = vmatprep.subr.mxu0 0.0
    %2774 = vmatpush1.msra.mxu0 %v2729
    %2775 = vmatprep.subr.mxu0 0.0
    %2776 = vmatpush1.msra.mxu0 %v2730
    %2777 = vmatprep.subr.mxu0 0.0
    %2778 = vmatpush1.msra.mxu0 %v2731
    %2779 = vmatprep.subr.mxu0 0.0
    %2780 = vmatpush1.msra.mxu0 %v2732
    %2781 = vmatprep.subr.mxu0 0.0
    %2782 = vmatpush1.msra.mxu0 %v2733
    %2783 = vmatprep.subr.mxu0 0.0
    %2784 = vmatpush1.msra.mxu0 %v2734
    %2785 = vmatprep.subr.mxu0 0.0
    %2786 = vmatpush1.msra.mxu0 %v2735
    %2787 = vmatprep.subr.mxu0 0.0
    %2788 = vmatpush1.msra.mxu0 %v2736
    %2789 = vmatprep.subr.mxu0 0.0
    %2790 = vmatpush1.msra.mxu0 %v2737
    %2791 = vmatprep.subr.mxu0 0.0
    %2792 = vmatpush1.msra.mxu0 %v2738
    %2793 = vmatprep.subr.mxu0 0.0
    %2794 = vmatpush1.msra.mxu0 %v2739
    %2795 = vmatprep.subr.mxu0 0.0
    %2796 = vmatpush1.msra.mxu0 %v2740
    %2797 = vmatprep.subr.mxu0 0.0
    %2798 = vmatpush1.msra.mxu0 %v2741
    %2799 = vmatprep.subr.mxu0 0.0
    %2800 = vmatpush1.msra.mxu0 %v2742
    %2801 = vmatprep.subr.mxu0 0.0
    %2802 = vmatpush1.msra.mxu0 %v2743
    %2803 = vmatprep.subr.mxu0 0.0
    %2804 = vmatpush1.msra.mxu0 %v2744
    %2805 = vmatprep.subr.mxu0 0.0
    %2806 = vmatpush1.msra.mxu0 %v2745
    %2807 = vmatprep.subr.mxu0 0.0
    %2808 = vmatpush1.msra.mxu0 %v2746
    %2809 = vmatprep.subr.mxu0 0.0
    %2810 = vmatpush1.msra.mxu0 %v2747
    %2811 = vmatprep.subr.mxu0 0.0
    %2812 = vmatpush1.msra.mxu0 %v2748
    %2813 = vmatprep.subr.mxu0 0.0
    %2814 = vmatpush1.msra.mxu0 %v2749
    %2815 = vmatprep.subr.mxu0 0.0
    %2816 = vmatpush1.msra.mxu0 %v2750
    %2817 = vmatprep.subr.mxu0 0.0
    %2818 = vmatpush1.msra.mxu0 %v2751
    %2819 = vmatprep.subr.mxu0 0.0
    %2820 = vmatpush1.msra.mxu0 %v2752
    %2821 = vmatprep.subr.mxu0 0.0
    %2822 = vmatpush1.msra.mxu0 %v2753
    %2823 = vmatprep.subr.mxu0 0.0
    %2824 = vmatpush1.msra.mxu0 %v2754
    %2825 = vmatprep.subr.mxu0 0.0
    %2826 = vmatpush1.msra.mxu0 %v2755
    %2827 = vmatprep.subr.mxu0 0.0
    %2828 = vmatpush1.msra.mxu0 %v2756
    %2829 = vmatprep.mubr.f32.mxu0 %v2721
    %2830 = vmatmul.mubr.f32.gmra.mrb[0].mxu0 %v2720
    %v2831 = vpop.f32.mrb[0].mxu0
    %v2832 = vadd.f32 %v2763, %v2831
    %v2833 = vpop.f32.mrb[0].mxu0
    %2834 = vmatprep.mubr.f32.mxu0 %v2723
    %2835 = vmatmul.mubr.f32.gmra.mrb[0].mxu0 %v2722
    %v2836 = vpop.f32.mrb[0].mxu0
    %v2837 = vadd.f32 %v2763, %v2836
    %v2838 = vpop.f32.mrb[0].mxu0
    %2839 = vdwg.mxu0
    %v2840 = vadd.f32 %v2832, %v2563
    %v2841 = vadd.f32 %v2837, %v2564
    %s2842 = scalar_lea.vmem %s15, 1
    %v2843 = vld [vmem:[%s2842] sm:$0x1]
    %s2844 = scalar_lea.vmem %s16, 1
    %v2845 = vld [vmem:[%s2844] sm:$0x1]
    %2846 = vadd.xlane.f32.xlu0 %v2840
    %v2847 = vpop.xlane.xlu0 %2846
    %2848 = vadd.xlane.f32.xlu0 %v2841
    %v2849 = vpop.xlane.xlu0 %2848
    %v2850 = vmul.f32 %v2847, %v122
    %v2851 = vmul.f32 %v2849, %v122
    %v2852 = vsub.f32 %v2840, %v2850
    %v2853 = vsub.f32 %v2841, %v2851
    %v2854 = vmul.f32 %v2852, %v2852
    %v2855 = vmul.f32 %v2853, %v2853
    %2856 = vadd.xlane.f32.xlu0 %v2854
    %v2857 = vpop.xlane.xlu0 %2856
    %2858 = vadd.xlane.f32.xlu0 %v2855
    %v2859 = vpop.xlane.xlu0 %2858
    %v2860 = vmul.f32 %v2857, %v122
    %v2861 = vmul.f32 %v2859, %v122
    %v2862 = vadd.f32 %v2860, 1e-12
    %v2863 = vadd.f32 %v2861, 1e-12
    %v2864 = vrsqrt.pop %v2862
    %v2865 = vrsqrt.pop %v2863
    %v2866 = vmul.f32 %v2852, %v2864
    %v2867 = vmul.f32 %v2853, %v2865
    %v2869 = vlaneseq
    %v2870 = vshrl.u32 %v2869, 7
    %v2871 = vsub.s32 0, %v2870
    %v2872 = vrot.slane %v2843, %v2871
    %v2874 = vmul.f32 %v2866, %v2872
    %v2875 = vmul.f32 %v2867, %v2872
    %v2877 = vlaneseq
    %v2878 = vshrl.u32 %v2877, 7
    %v2879 = vsub.s32 0, %v2878
    %v2880 = vrot.slane %v2845, %v2879
    %v2882 = vadd.f32 %v2874, %v2880
    %v2883 = vadd.f32 %v2875, %v2880
    %v2884 = vld [vmem:[%s17] sm:$0xff]
    %v2885 = vld [vmem:[%s17 + $0x8] sm:$0xff]
    %v2886 = vld [vmem:[%s17 + $0x10] sm:$0xff]
    %v2887 = vld [vmem:[%s17 + $0x18] sm:$0xff]
    %v2888 = vld [vmem:[%s17 + $0x20] sm:$0xff]
    %v2889 = vld [vmem:[%s17 + $0x28] sm:$0xff]
    %v2890 = vld [vmem:[%s17 + $0x30] sm:$0xff]
    %v2891 = vld [vmem:[%s17 + $0x38] sm:$0xff]
    %v2892 = vld [vmem:[%s17 + $0x40] sm:$0xff]
    %v2893 = vld [vmem:[%s17 + $0x48] sm:$0xff]
    %v2894 = vld [vmem:[%s17 + $0x50] sm:$0xff]
    %v2895 = vld [vmem:[%s17 + $0x58] sm:$0xff]
    %v2896 = vld [vmem:[%s17 + $0x60] sm:$0xff]
    %v2897 = vld [vmem:[%s17 + $0x68] sm:$0xff]
    %v2898 = vld [vmem:[%s17 + $0x70] sm:$0xff]
    %v2899 = vld [vmem:[%s17 + $0x78] sm:$0xff]
    %v2900 = vld [vmem:[%s18] sm:$0x1]
    %v2902 = vlaneseq
    %v2903 = vshrl.u32 %v2902, 7
    %v2904 = vsub.s32 0, %v2903
    %v2905 = vrot.slane %v2900, %v2904
    %v2909 = vrot.slane %v2883, 7
    %vm2910 = vcmask 1041409
    %v2911 = vsel %vm2910, %v2909, %v2882
    %2913 = vmatprep.subr.mxu0 0.0
    %2914 = vmatpush1.msra.mxu0 %v2884
    %2915 = vmatprep.subr.mxu0 0.0
    %2916 = vmatpush1.msra.mxu0 %v2885
    %2917 = vmatprep.subr.mxu0 0.0
    %2918 = vmatpush1.msra.mxu0 %v2886
    %2919 = vmatprep.subr.mxu0 0.0
    %2920 = vmatpush1.msra.mxu0 %v2887
    %2921 = vmatprep.subr.mxu0 0.0
    %2922 = vmatpush1.msra.mxu0 %v2888
    %2923 = vmatprep.subr.mxu0 0.0
    %2924 = vmatpush1.msra.mxu0 %v2889
    %2925 = vmatprep.subr.mxu0 0.0
    %2926 = vmatpush1.msra.mxu0 %v2890
    %2927 = vmatprep.subr.mxu0 0.0
    %2928 = vmatpush1.msra.mxu0 %v2891
    %2929 = vmatprep.subr.mxu0 0.0
    %2930 = vmatpush1.msra.mxu0 %v2892
    %2931 = vmatprep.subr.mxu0 0.0
    %2932 = vmatpush1.msra.mxu0 %v2893
    %2933 = vmatprep.subr.mxu0 0.0
    %2934 = vmatpush1.msra.mxu0 %v2894
    %2935 = vmatprep.subr.mxu0 0.0
    %2936 = vmatpush1.msra.mxu0 %v2895
    %2937 = vmatprep.subr.mxu0 0.0
    %2938 = vmatpush1.msra.mxu0 %v2896
    %2939 = vmatprep.subr.mxu0 0.0
    %2940 = vmatpush1.msra.mxu0 %v2897
    %2941 = vmatprep.subr.mxu0 0.0
    %2942 = vmatpush1.msra.mxu0 %v2898
    %2943 = vmatprep.subr.mxu0 0.0
    %2944 = vmatpush1.msra.mxu0 %v2899
    %2945 = vmatprep.subr.mxu0 0.0
    %2946 = vmatpush1.msra.mxu0 0.0
    %2947 = vmatprep.subr.mxu0 0.0
    %2948 = vmatpush1.msra.mxu0 0.0
    %2949 = vmatprep.subr.mxu0 0.0
    %2950 = vmatpush1.msra.mxu0 0.0
    %2951 = vmatprep.subr.mxu0 0.0
    %2952 = vmatpush1.msra.mxu0 0.0
    %2953 = vmatprep.subr.mxu0 0.0
    %2954 = vmatpush1.msra.mxu0 0.0
    %2955 = vmatprep.subr.mxu0 0.0
    %2956 = vmatpush1.msra.mxu0 0.0
    %2957 = vmatprep.subr.mxu0 0.0
    %2958 = vmatpush1.msra.mxu0 0.0
    %2959 = vmatprep.subr.mxu0 0.0
    %2960 = vmatpush1.msra.mxu0 0.0
    %2961 = vmatprep.subr.mxu0 0.0
    %2962 = vmatpush1.msra.mxu0 0.0
    %2963 = vmatprep.subr.mxu0 0.0
    %2964 = vmatpush1.msra.mxu0 0.0
    %2965 = vmatprep.subr.mxu0 0.0
    %2966 = vmatpush1.msra.mxu0 0.0
    %2967 = vmatprep.subr.mxu0 0.0
    %2968 = vmatpush1.msra.mxu0 0.0
    %2969 = vmatprep.subr.mxu0 0.0
    %2970 = vmatpush1.msra.mxu0 0.0
    %2971 = vmatprep.subr.mxu0 0.0
    %2972 = vmatpush1.msra.mxu0 0.0
    %2973 = vmatprep.subr.mxu0 0.0
    %2974 = vmatpush1.msra.mxu0 0.0
    %2975 = vmatprep.subr.mxu0 0.0
    %2976 = vmatpush1.msra.mxu0 0.0
    %2977 = vmatprep.mubr.f32.mxu0 0.0
    %2978 = vmatmul.mubr.f32.gmra.mrb[0].mxu0 %v2911
    %v2979 = vpop.f32.mrb[0].mxu0
    %v2980 = vadd.f32 %v2905, %v2979
    %v2981 = vpop.f32.mrb[0].mxu0
    %2982 = vdwg.mxu0
    %v2983 = vtanh.pop %v2980
    %v2984 = vld [vmem:[%s19] sm:$0xff]
    %v2985 = vld [vmem:[%s19 + $0x8] sm:$0xff]
    %v2986 = vld [vmem:[%s19 + $0x10] sm:$0xff]
    %v2987 = vld [vmem:[%s19 + $0x18] sm:$0xff]
    %v2988 = vld [vmem:[%s19 + $0x20] sm:$0xff]
    %v2989 = vld [vmem:[%s19 + $0x28] sm:$0xff]
    %v2990 = vld [vmem:[%s19 + $0x30] sm:$0xff]
    %v2991 = vld [vmem:[%s19 + $0x38] sm:$0xff]
    %v2992 = vld [vmem:[%s19 + $0x40] sm:$0xff]
    %v2993 = vld [vmem:[%s19 + $0x48] sm:$0xff]
    %v2994 = vld [vmem:[%s19 + $0x50] sm:$0xff]
    %v2995 = vld [vmem:[%s19 + $0x58] sm:$0xff]
    %v2996 = vld [vmem:[%s19 + $0x60] sm:$0xff]
    %v2997 = vld [vmem:[%s19 + $0x68] sm:$0xff]
    %v2998 = vld [vmem:[%s19 + $0x70] sm:$0xff]
    %v2999 = vld [vmem:[%s19 + $0x78] sm:$0xff]
    %v3000 = vld [vmem:[%s20] sm:$0x1]
    %v3002 = vlaneseq
    %v3003 = vshrl.u32 %v3002, 7
    %v3004 = vsub.s32 0, %v3003
    %v3005 = vrot.slane %v3000, %v3004
    %3007 = vmatprep.subr.mxu0 0.0
    %3008 = vmatpush1.msra.mxu0 %v2984
    %3009 = vmatprep.subr.mxu0 0.0
    %3010 = vmatpush1.msra.mxu0 %v2985
    %3011 = vmatprep.subr.mxu0 0.0
    %3012 = vmatpush1.msra.mxu0 %v2986
    %3013 = vmatprep.subr.mxu0 0.0
    %3014 = vmatpush1.msra.mxu0 %v2987
    %3015 = vmatprep.subr.mxu0 0.0
    %3016 = vmatpush1.msra.mxu0 %v2988
    %3017 = vmatprep.subr.mxu0 0.0
    %3018 = vmatpush1.msra.mxu0 %v2989
    %3019 = vmatprep.subr.mxu0 0.0
    %3020 = vmatpush1.msra.mxu0 %v2990
    %3021 = vmatprep.subr.mxu0 0.0
    %3022 = vmatpush1.msra.mxu0 %v2991
    %3023 = vmatprep.subr.mxu0 0.0
    %3024 = vmatpush1.msra.mxu0 %v2992
    %3025 = vmatprep.subr.mxu0 0.0
    %3026 = vmatpush1.msra.mxu0 %v2993
    %3027 = vmatprep.subr.mxu0 0.0
    %3028 = vmatpush1.msra.mxu0 %v2994
    %3029 = vmatprep.subr.mxu0 0.0
    %3030 = vmatpush1.msra.mxu0 %v2995
    %3031 = vmatprep.subr.mxu0 0.0
    %3032 = vmatpush1.msra.mxu0 %v2996
    %3033 = vmatprep.subr.mxu0 0.0
    %3034 = vmatpush1.msra.mxu0 %v2997
    %3035 = vmatprep.subr.mxu0 0.0
    %3036 = vmatpush1.msra.mxu0 %v2998
    %3037 = vmatprep.subr.mxu0 0.0
    %3038 = vmatpush1.msra.mxu0 %v2999
    %3039 = vmatprep.subr.mxu0 0.0
    %3040 = vmatpush1.msra.mxu0 0.0
    %3041 = vmatprep.subr.mxu0 0.0
    %3042 = vmatpush1.msra.mxu0 0.0
    %3043 = vmatprep.subr.mxu0 0.0
    %3044 = vmatpush1.msra.mxu0 0.0
    %3045 = vmatprep.subr.mxu0 0.0
    %3046 = vmatpush1.msra.mxu0 0.0
    %3047 = vmatprep.subr.mxu0 0.0
    %3048 = vmatpush1.msra.mxu0 0.0
    %3049 = vmatprep.subr.mxu0 0.0
    %3050 = vmatpush1.msra.mxu0 0.0
    %3051 = vmatprep.subr.mxu0 0.0
    %3052 = vmatpush1.msra.mxu0 0.0
    %3053 = vmatprep.subr.mxu0 0.0
    %3054 = vmatpush1.msra.mxu0 0.0
    %3055 = vmatprep.subr.mxu0 0.0
    %3056 = vmatpush1.msra.mxu0 0.0
    %3057 = vmatprep.subr.mxu0 0.0
    %3058 = vmatpush1.msra.mxu0 0.0
    %3059 = vmatprep.subr.mxu0 0.0
    %3060 = vmatpush1.msra.mxu0 0.0
    %3061 = vmatprep.subr.mxu0 0.0
    %3062 = vmatpush1.msra.mxu0 0.0
    %3063 = vmatprep.subr.mxu0 0.0
    %3064 = vmatpush1.msra.mxu0 0.0
    %3065 = vmatprep.subr.mxu0 0.0
    %3066 = vmatpush1.msra.mxu0 0.0
    %3067 = vmatprep.subr.mxu0 0.0
    %3068 = vmatpush1.msra.mxu0 0.0
    %3069 = vmatprep.subr.mxu0 0.0
    %3070 = vmatpush1.msra.mxu0 0.0
    %3071 = vmatprep.mubr.f32.mxu0 0.0
    %3072 = vmatmul.mubr.f32.gmra.mrb[0].mxu0 %v2983
    %v3073 = vpop.f32.mrb[0].mxu0
    %v3074 = vadd.f32 %v3005, %v3073
    %v3075 = vpop.f32.mrb[0].mxu0
    %3076 = vdwg.mxu0
    %3077 = vst [vmem:[#allocation7] sm:$0x3] %v3074
    %v3078 = vld [vmem:[%s21] sm:$0xff]
    %v3079 = vld [vmem:[%s21 + $0x8] sm:$0xff]
    %v3080 = vld [vmem:[%s21 + $0x10] sm:$0xff]
    %v3081 = vld [vmem:[%s21 + $0x18] sm:$0xff]
    %v3082 = vld [vmem:[%s21 + $0x20] sm:$0xff]
    %v3083 = vld [vmem:[%s21 + $0x28] sm:$0xff]
    %v3084 = vld [vmem:[%s21 + $0x30] sm:$0xff]
    %v3085 = vld [vmem:[%s21 + $0x38] sm:$0xff]
    %v3086 = vld [vmem:[%s21 + $0x40] sm:$0xff]
    %v3087 = vld [vmem:[%s21 + $0x48] sm:$0xff]
    %v3088 = vld [vmem:[%s21 + $0x50] sm:$0xff]
    %v3089 = vld [vmem:[%s21 + $0x58] sm:$0xff]
    %v3090 = vld [vmem:[%s21 + $0x60] sm:$0xff]
    %v3091 = vld [vmem:[%s21 + $0x68] sm:$0xff]
    %v3092 = vld [vmem:[%s21 + $0x70] sm:$0xff]
    %v3093 = vld [vmem:[%s21 + $0x78] sm:$0xff]
    %v3094 = vld [vmem:[%s22] sm:$0x1]
    %v3096 = vlaneseq
    %v3097 = vshrl.u32 %v3096, 7
    %v3098 = vsub.s32 0, %v3097
    %v3099 = vrot.slane %v3094, %v3098
    %3101 = vmatprep.subr.mxu0 0.0
    %3102 = vmatpush1.msra.mxu0 %v3078
    %3103 = vmatprep.subr.mxu0 0.0
    %3104 = vmatpush1.msra.mxu0 %v3079
    %3105 = vmatprep.subr.mxu0 0.0
    %3106 = vmatpush1.msra.mxu0 %v3080
    %3107 = vmatprep.subr.mxu0 0.0
    %3108 = vmatpush1.msra.mxu0 %v3081
    %3109 = vmatprep.subr.mxu0 0.0
    %3110 = vmatpush1.msra.mxu0 %v3082
    %3111 = vmatprep.subr.mxu0 0.0
    %3112 = vmatpush1.msra.mxu0 %v3083
    %3113 = vmatprep.subr.mxu0 0.0
    %3114 = vmatpush1.msra.mxu0 %v3084
    %3115 = vmatprep.subr.mxu0 0.0
    %3116 = vmatpush1.msra.mxu0 %v3085
    %3117 = vmatprep.subr.mxu0 0.0
    %3118 = vmatpush1.msra.mxu0 %v3086
    %3119 = vmatprep.subr.mxu0 0.0
    %3120 = vmatpush1.msra.mxu0 %v3087
    %3121 = vmatprep.subr.mxu0 0.0
    %3122 = vmatpush1.msra.mxu0 %v3088
    %3123 = vmatprep.subr.mxu0 0.0
    %3124 = vmatpush1.msra.mxu0 %v3089
    %3125 = vmatprep.subr.mxu0 0.0
    %3126 = vmatpush1.msra.mxu0 %v3090
    %3127 = vmatprep.subr.mxu0 0.0
    %3128 = vmatpush1.msra.mxu0 %v3091
    %3129 = vmatprep.subr.mxu0 0.0
    %3130 = vmatpush1.msra.mxu0 %v3092
    %3131 = vmatprep.subr.mxu0 0.0
    %3132 = vmatpush1.msra.mxu0 %v3093
    %3133 = vmatprep.subr.mxu0 0.0
    %3134 = vmatpush1.msra.mxu0 0.0
    %3135 = vmatprep.subr.mxu0 0.0
    %3136 = vmatpush1.msra.mxu0 0.0
    %3137 = vmatprep.subr.mxu0 0.0
    %3138 = vmatpush1.msra.mxu0 0.0
    %3139 = vmatprep.subr.mxu0 0.0
    %3140 = vmatpush1.msra.mxu0 0.0
    %3141 = vmatprep.subr.mxu0 0.0
    %3142 = vmatpush1.msra.mxu0 0.0
    %3143 = vmatprep.subr.mxu0 0.0
    %3144 = vmatpush1.msra.mxu0 0.0
    %3145 = vmatprep.subr.mxu0 0.0
    %3146 = vmatpush1.msra.mxu0 0.0
    %3147 = vmatprep.subr.mxu0 0.0
    %3148 = vmatpush1.msra.mxu0 0.0
    %3149 = vmatprep.subr.mxu0 0.0
    %3150 = vmatpush1.msra.mxu0 0.0
    %3151 = vmatprep.subr.mxu0 0.0
    %3152 = vmatpush1.msra.mxu0 0.0
    %3153 = vmatprep.subr.mxu0 0.0
    %3154 = vmatpush1.msra.mxu0 0.0
    %3155 = vmatprep.subr.mxu0 0.0
    %3156 = vmatpush1.msra.mxu0 0.0
    %3157 = vmatprep.subr.mxu0 0.0
    %3158 = vmatpush1.msra.mxu0 0.0
    %3159 = vmatprep.subr.mxu0 0.0
    %3160 = vmatpush1.msra.mxu0 0.0
    %3161 = vmatprep.subr.mxu0 0.0
    %3162 = vmatpush1.msra.mxu0 0.0
    %3163 = vmatprep.subr.mxu0 0.0
    %3164 = vmatpush1.msra.mxu0 0.0
    %3165 = vmatprep.mubr.f32.mxu0 0.0
    %3166 = vmatmul.mubr.f32.gmra.mrb[0].mxu0 %v2882
    %v3167 = vpop.f32.mrb[0].mxu0
    %v3168 = vadd.f32 %v3099, %v3167
    %v3169 = vpop.f32.mrb[0].mxu0
    %3170 = vmatprep.mubr.f32.mxu0 0.0
    %3171 = vmatmul.mubr.f32.gmra.mrb[0].mxu0 %v2883
    %v3172 = vpop.f32.mrb[0].mxu0
    %v3173 = vadd.f32 %v3099, %v3172
    %v3174 = vpop.f32.mrb[0].mxu0
    %3175 = vdwg.mxu0
    %v3176 = vld [vmem:[%s2] sm:$0xff]
    %v3177 = vld [vmem:[%s2 + $0x8] sm:$0xff]
    %3179 = vset.pattern.permute.xlu0 0
    %3180 = vperm.xlu0 %3179, %v3176
    %v3181 = vpop.permute.xlu0 %3180
    %3184 = vset.pattern.permute.xlu0 0
    %3185 = vperm.xlu0 %3184, %v3177
    %v3186 = vpop.permute.xlu0 %3185
    %v3188 = vmul.f32 %v3168, %v3181
    %v3189 = vmul.f32 %v3173, %v3186
    %3190 = vst [vmem:[#allocation8] sm:$0xff] %v3188
    %3191 = vst [vmem:[#allocation8 + $0x8] sm:$0xff] %v3189
    %v3192 = vld [vmem:[%s23] sm:$0x3]
    %v3193 = vlaneseq
    %v3194 = vand.u32 %v3193, 127
    %vm3195 = vcmp.lt.s32.totalorder %v3194, 8
    %v3196 = vsel %vm3195, %v3074, -1e+30
    %vm3197 = vcmask 1041408
    %v3198 = vsel %vm3197, %v3196, -inf
    %3199 = vmax.xlane.f32.xlu0 %v3198
    %v3200 = vpop.xlane.xlu0 %3199
    %v3201 = vsub.f32 %v3196, %v3200
    %v3202 = vmul.f32 %v3201, 1.442695
    %v3203 = vpow.pop %v3202
    %v3204 = vsel %vm3197, %v3203, 0.0
    %3205 = vadd.xlane.f32.xlu0 %v3204
    %v3206 = vpop.xlane.xlu0 %3205
    %v3207 = vlog2.pop %v3206
    %v3208 = vmul.f32 %v3207, 0.6931472
    %v3209 = vadd.f32 %v3200, %v3208
    %v3210 = vmul.f32 %v3192, %v3074
    %v3211 = vsel %vm3197, %v3210, 0.0
    %3212 = vadd.xlane.f32.xlu0 %v3211
    %v3213 = vpop.xlane.xlu0 %3212
    %v3214 = vsub.f32 %v3209, %v3213
    %vm3215 = vcmask 1024
    %v3216 = vsel %vm3215, %v3214, 0.0
    %3217 = vadd.xlane.f32.xlu0 %v3216
    %v3218 = vpop.xlane.xlu0 %3217
    %v3219 = vrot.slane %v3218, 4
    %v3220 = vadd.f32 %v3218, %v3219
    %v3221 = vrot.slane %v3220, 2
    %v3222 = vadd.f32 %v3220, %v3221
    %v3223 = vrot.slane %v3222, 1
    %v3224 = vadd.f32 %v3222, %v3223
    %s3225 = vtos %v3224
    %v3226 = vrcp.pop 2.0
    %s3227 = vtos %v3226
    %s3228 = smul.f32 %s3225, %s3227
    %v3229 = vld [vmem:[%s24] sm:$0xff]
    %v3230 = vld [vmem:[%s24 + $0x8] sm:$0xff]
    %vm3231 = vcmp.lt.s32.totalorder %v3194, 16
    %v3232 = vsel %vm3231, %v3188, -1e+30
    %v3233 = vsel %vm3231, %v3189, -1e+30
    %3234 = vmax.xlane.f32.xlu0 %v3232
    %v3235 = vpop.xlane.xlu0 %3234
    %3236 = vmax.xlane.f32.xlu0 %v3233
    %v3237 = vpop.xlane.xlu0 %3236
    %v3238 = vsub.f32 %v3232, %v3235
    %v3239 = vsub.f32 %v3233, %v3237
    %v3240 = vmul.f32 %v3238, 1.442695
    %v3241 = vpow.pop %v3240
    %v3242 = vmul.f32 %v3239, 1.442695
    %v3243 = vpow.pop %v3242
    %3244 = vadd.xlane.f32.xlu0 %v3241
    %v3245 = vpop.xlane.xlu0 %3244
    %3246 = vadd.xlane.f32.xlu0 %v3243
    %v3247 = vpop.xlane.xlu0 %3246
    %v3248 = vlog2.pop %v3245
    %v3249 = vmul.f32 %v3248, 0.6931472
    %v3250 = vlog2.pop %v3247
    %v3251 = vmul.f32 %v3250, 0.6931472
    %v3252 = vadd.f32 %v3235, %v3249
    %v3253 = vadd.f32 %v3237, %v3251
    %v3254 = vmul.f32 %v3229, %v3188
    %v3255 = vmul.f32 %v3230, %v3189
    %3256 = vadd.xlane.f32.xlu0 %v3254
    %v3257 = vpop.xlane.xlu0 %3256
    %3258 = vadd.xlane.f32.xlu0 %v3255
    %v3259 = vpop.xlane.xlu0 %3258
    %v3260 = vsub.f32 %v3252, %v3257
    %v3261 = vsub.f32 %v3253, %v3259
    %vm3262 = vcmask 7168
    %v3263 = vsel %vm3262, %v3260, 0.0
    %v3264 = vsel %vm3262, %v3261, 0.0
    %v3265 = vadd.f32 %v3263, %v3264
    %3266 = vadd.xlane.f32.xlu0 %v3265
    %v3267 = vpop.xlane.xlu0 %3266
    %v3268 = vrot.slane %v3267, 4
    %v3269 = vadd.f32 %v3267, %v3268
    %v3270 = vrot.slane %v3269, 2
    %v3271 = vadd.f32 %v3269, %v3270
    %v3272 = vrot.slane %v3271, 1
    %v3273 = vadd.f32 %v3271, %v3272
    %s3274 = vtos %v3273
    %v3275 = vrcp.pop 16.0
    %s3276 = vtos %v3275
    %s3277 = smul.f32 %s3274, %s3276
    %v3278 = vlaneseq
    %v3279 = vshrl.u32 %v3278, 7
    %vm3280 = vcmp.eq.s32.totalorder %v3279, 0
    %v3281 = vstv %s3228
    %v3282 = vsel %vm3280, %v3281, 0.0
    %vm3283 = vcmp.eq.s32.totalorder %v3279, 1
    %v3284 = vstv %s3277
    %v3285 = vsel %vm3283, %v3284, 0.0
    %v3286 = vadd.f32 %v3282, %v3285
    %3287 = vst [vmem:[%s27] sm:$0xff] %v3286
    // Predicated region
    $region110: #{classifier_forward.1} parent=1 // pred_check
      _
    $region111: #{classifier_forward.1} parent=1 // pred_check_branch
      %3289 = sbr.rel (0) target = $region113
    $region112: #{classifier_forward.1} parent=1 // pred_region
      %s3291 = ssub.s32 32, 32
      %3292 = vsyncadd [#allocation4], %s3291
      %s3294 = sshll.u32 [#allocation7], 4
      %s3295 = int_to_ptr.vmem [resolvable:$true] %s3294
      %3297 = dma.vmem_to_hbm [thread:$0]  %s3295, 32, %s25, [#allocation4]
    $region113: #{classifier_forward.1} parent=1 // pred_fallthru
      _
    // Predicated region
    $region114: #{classifier_forward.1} parent=1 // pred_check
      _
    $region115: #{classifier_forward.1} parent=1 // pred_check_branch
      %3299 = sbr.rel (0) target = $region117
    $region116: #{classifier_forward.1} parent=1 // pred_region
      %s3301 = ssub.s32 256, 256
      %3302 = vsyncadd [#allocation9], %s3301
      %s3303 = sshll.u32 [#allocation8], 4
      %s3304 = int_to_ptr.vmem [resolvable:$true] %s3303
      %3309 = dma.vmem_to_hbm [thread:$0]  %s3304, 256, %s26, [#allocation9], 128, 128, 8
    $region117: #{classifier_forward.1} parent=1 // pred_fallthru
      _
    // Predicated region
    $region118: #{classifier_forward.1} parent=1 // pred_check
      _
    $region119: #{classifier_forward.1} parent=1 // pred_check_branch
      %3311 = sbr.rel (0) target = $region121
    $region120: #{classifier_forward.1} parent=1 // pred_region
      _
    $region121: #{classifier_forward.1} parent=1 // pred_fallthru
      _
    // Predicated region
    $region122: #{classifier_forward.1} parent=1 // pred_check
      _
    $region123: #{classifier_forward.1} parent=1 // pred_check_branch
      %3313 = sbr.rel (0) target = $region125
    $region124: #{classifier_forward.1} parent=1 // pred_region
      %3314 = dma.done [#allocation4], 32
    $region125: #{classifier_forward.1} parent=1 // pred_fallthru
      _
    // Predicated region
    $region126: #{classifier_forward.1} parent=1 // pred_check
      _
    $region127: #{classifier_forward.1} parent=1 // pred_check_branch
      %3316 = sbr.rel (0) target = $region129
    $region128: #{classifier_forward.1} parent=1 // pred_region
      %3317 = dma.done [#allocation9], 256
    $region129: #{classifier_forward.1} parent=1 // pred_fallthru
      _
    // Predicated region
    $region130: #{classifier_forward.1} parent=1 // pred_check
      _
    $region131: #{classifier_forward.1} parent=1 // pred_check_branch
      %3319 = sbr.rel (0) target = $region133
    $region132: #{classifier_forward.1} parent=1 // pred_region
      _
    $region133: #{classifier_forward.1} parent=1 // pred_fallthru
      _
    %3320 = vsyncpa [#allocation3], 1
    %3321 = vsyncpa [#allocation6], 1
    %3322 = vsyncpa [#allocation4], 1
    %3323 = vsyncpa [#allocation9], 1

</llo_original>
